<compile_context>
chip_gen: v7x
topology: tpu7x:2x2x1
jax: 0.10.0
libtpu: 0.0.40
codegen_flags: <defaults>
</compile_context>

<pallas_src>
import functools

import jax
import jax.numpy as jnp
import numpy as np
from jax.experimental import pallas as pl
from jax.experimental.pallas import tpu as pltpu

BN_EPS = 1e-5
LANE = 128


def _round_up(x, m):
    return (x + m - 1) // m * m


def _silu(y):
    # y * sigmoid(y) in f32; exp and the approximate reciprocal both ride the EUP slot.
    return y * pl.reciprocal(1.0 + jnp.exp(-y), approx=True)


# ---------------------------------------------------------------------------
# Fused C3 kernel: one grid step per batch element, everything VMEM-resident.
# ---------------------------------------------------------------------------
def _c3_kernel(x_ref, w12_ref, b12_ref, bw1_ref, bb1_ref, bw9_ref, bb2_ref,
               w3_ref, b3_ref, o_ref, *, H, W, cp, n_bottleneck):
    HW = H * W
    c1p = x_ref.shape[-1]
    c2p = o_ref.shape[-1]

    x = x_ref[0].reshape(HW, c1p)                                    # (HW, c1p) bf16

    # cv1 | cv2 as one N=2*cp matmul, split on a 128-lane boundary.
    y12 = jnp.dot(x, w12_ref[...], preferred_element_type=jnp.float32) + b12_ref[...]
    y12 = _silu(y12)                                                 # (HW, 2cp) f32
    m = y12[:, :cp].astype(jnp.bfloat16)                             # running (bottleneck) branch
    b = y12[:, cp:].astype(jnp.bfloat16)                             # bypass branch

    # Horizontal boundary masks for the 3x3 taps (vertical boundary handled by zero extension).
    w_pos = jax.lax.broadcasted_iota(jnp.int32, (HW, 1), 0) % W
    not_left = w_pos != 0                                            # tap reads column w-1
    not_right = w_pos != (W - 1)                                     # tap reads column w+1

    zrow = jnp.zeros((W + 1, cp), jnp.bfloat16)
    for bi in range(n_bottleneck):
        # Bottleneck 1x1 conv (c_->c_) + SiLU, fused in (no HBM round trip for t).
        t = jnp.dot(m, bw1_ref[bi], preferred_element_type=jnp.float32) + bb1_ref[bi]
        t = _silu(t).astype(jnp.bfloat16)                            # (HW, cp)

        # Zero-extended flat activation: t_ext[j] = t[j - (W+1)], zeros outside.
        t_ext = jnp.concatenate([zrow, t, zrow], axis=0)             # (HW + 2W + 2, cp)

        # 3x3 conv = 9 shifted (HW, cp) @ (cp, cp) MXU matmuls.
        acc = jnp.zeros((HW, cp), jnp.float32)
        for ky in range(3):
            for kx in range(3):
                s = ky * W + kx                                      # static sublane offset
                win = t_ext[s:s + HW]                                # (HW, cp) bf16
                if kx == 0:
                    win = jnp.where(not_left, win, jnp.zeros_like(win))
                elif kx == 2:
                    win = jnp.where(not_right, win, jnp.zeros_like(win))
                acc = acc + jnp.dot(win, bw9_ref[bi, ky * 3 + kx],
                                    preferred_element_type=jnp.float32)
        u = _silu(acc + bb2_ref[bi])
        m = (m.astype(jnp.float32) + u).astype(jnp.bfloat16)         # shortcut add

    # cv3 fused with the channel concat: one K=2*cp matmul, bf16 lane-dense output.
    cat = jnp.concatenate([m, b], axis=1)                            # (HW, 2cp) bf16
    y = jnp.dot(cat, w3_ref[...], preferred_element_type=jnp.float32) + b3_ref[...]
    o_ref[0] = _silu(y).reshape(H, W, c2p).astype(o_ref.dtype)


# ---------------------------------------------------------------------------
# Wrapper
# ---------------------------------------------------------------------------
def c3_forward(x_nchw, prep, *, c2):
    N, C1, H, W = x_nchw.shape
    c1p = prep["w12"].shape[0]
    cp = prep["w12"].shape[1] // 2
    c2p = prep["w3"].shape[1]
    nB = prep["bw1"].shape[0]

    x = jnp.transpose(x_nchw, (0, 2, 3, 1)).astype(jnp.bfloat16)     # NHWC bf16
    if c1p != C1:
        x = jnp.pad(x, ((0, 0), (0, 0), (0, 0), (0, c1p - C1)))

    kern = functools.partial(_c3_kernel, H=H, W=W, cp=cp, n_bottleneck=nB)
    out = pl.pallas_call(
        kern,
        out_shape=jax.ShapeDtypeStruct((N, H, W, c2p), jnp.bfloat16),
        grid=(N,),
        in_specs=[
            pl.BlockSpec((1, H, W, c1p), lambda n: (n, 0, 0, 0)),    # x image (per batch)
            pl.BlockSpec((c1p, 2 * cp), lambda n: (0, 0)),           # cv1|cv2 merged weight
            pl.BlockSpec((1, 2 * cp), lambda n: (0, 0)),             # cv1|cv2 bias
            pl.BlockSpec((nB, cp, cp), lambda n: (0, 0, 0)),         # bottleneck 1x1 weights
            pl.BlockSpec((nB, 1, cp), lambda n: (0, 0, 0)),          # bottleneck 1x1 biases
            pl.BlockSpec((nB, 9, cp, cp), lambda n: (0, 0, 0, 0)),   # bottleneck 3x3 weights
            pl.BlockSpec((nB, 1, cp), lambda n: (0, 0, 0)),          # bottleneck 3x3 biases
            pl.BlockSpec((2 * cp, c2p), lambda n: (0, 0)),           # cv3 stacked weight
            pl.BlockSpec((1, c2p), lambda n: (0, 0)),                # cv3 bias
        ],
        out_specs=pl.BlockSpec((1, H, W, c2p), lambda n: (n, 0, 0, 0)),
        compiler_params=pltpu.CompilerParams(
            dimension_semantics=("parallel",),
            vmem_limit_bytes=32 * 1024 * 1024),
    )(x, prep["w12"], prep["b12"], prep["bw1"], prep["bb1"],
      prep["bw9"], prep["bb2"], prep["w3"], prep["b3"])
    out = out[..., :c2]                                              # drop lane padding
    return jnp.transpose(out, (0, 3, 1, 2))                          # back to NCHW (bf16)


# ---------------------------------------------------------------------------
# Parameters: raw (Conv weight + BN stats) and kernel-ready (folded, padded, bf16)
# ---------------------------------------------------------------------------
def make_conv_params(key, cin, cout, k):
    kw, kg, kb, km, kv = jax.random.split(key, 5)
    if k == 1:
        w = jax.random.normal(kw, (cin, cout), jnp.float32) * 0.3
    else:
        w = jax.random.normal(kw, (k, k, cin, cout), jnp.float32) * 0.1   # HWIO
    gamma = 1.0 + 0.1 * jax.random.normal(kg, (cout,), jnp.float32)
    beta = 0.1 * jax.random.normal(kb, (cout,), jnp.float32)
    mean = 0.05 * jax.random.normal(km, (cout,), jnp.float32)
    var = jnp.abs(jax.random.normal(kv, (cout,), jnp.float32)) * 0.1 + 0.9
    scale = gamma / jnp.sqrt(var + BN_EPS)
    bias = beta - mean * scale
    return w, scale.reshape(1, cout), bias.reshape(1, cout)


def prepare_params(raw, c1, c2, c_):
    assert len(raw["bottlenecks"]) >= 1
    c1p = _round_up(c1, LANE)
    cp = _round_up(c_, LANE)
    c2p = _round_up(c2, LANE)

    def fold1x1(p, cin, cout, cinp, coutp):
        w, scale, bias = p
        wf = w * scale                                               # fold BN scale
        wpad = jnp.zeros((cinp, coutp), jnp.float32).at[:cin, :cout].set(wf)
        bpad = jnp.zeros((1, coutp), jnp.float32).at[:, :cout].set(bias)
        return wpad, bpad

    w1p, b1p = fold1x1(raw["cv1"], c1, c_, c1p, cp)
    w2p, b2p = fold1x1(raw["cv2"], c1, c_, c1p, cp)
    w12 = jnp.concatenate([w1p, w2p], axis=1).astype(jnp.bfloat16)   # (c1p, 2cp)
    b12 = jnp.concatenate([b1p, b2p], axis=1)                        # (1, 2cp) f32

    # cv3: stacked (2cp, c2p); rows [0:c_) act on m, rows [cp:cp+c_) act on b.
    w3, s3, bias3 = raw["cv3"]
    w3f = w3 * s3
    w3s = jnp.zeros((2 * cp, c2p), jnp.float32)
    w3s = w3s.at[:c_, :c2].set(w3f[:c_])
    w3s = w3s.at[cp:cp + c_, :c2].set(w3f[c_:])
    w3s = w3s.astype(jnp.bfloat16)
    b3p = jnp.zeros((1, c2p), jnp.float32).at[:, :c2].set(bias3)

    bw1_l, bb1_l, bw9_l, bb2_l = [], [], [], []
    for (p1, p2) in raw["bottlenecks"]:
        w1b, b1b = fold1x1(p1, c_, c_, cp, cp)
        bw1_l.append(w1b.astype(jnp.bfloat16))
        bb1_l.append(b1b)
        w, scale, bias = p2                                          # (3,3,c_,c_) HWIO
        wf = w * scale.reshape(1, 1, 1, c_)
        wpad = jnp.zeros((3, 3, cp, cp), jnp.float32).at[:, :, :c_, :c_].set(wf)
        bw9_l.append(wpad.reshape(9, cp, cp).astype(jnp.bfloat16))
        bb2_l.append(jnp.zeros((1, cp), jnp.float32).at[:, :c_].set(bias))

    return {"w12": w12, "b12": b12,
            "bw1": jnp.stack(bw1_l), "bb1": jnp.stack(bb1_l),
            "bw9": jnp.stack(bw9_l), "bb2": jnp.stack(bb2_l),
            "w3": w3s, "b3": b3p}


# ---------------------------------------------------------------------------
# Pure-JAX references (for correctness checks only)
# ---------------------------------------------------------------------------
def _silu_ref(y):
    return y * jax.nn.sigmoid(y)


def c3_ref_bf16(x_nchw, prep, c2):
    """Pure-JAX emulation of the exact bf16-inference pipeline the kernel runs."""
    N, C1, H, W = x_nchw.shape
    c1p = prep["w12"].shape[0]
    cp = prep["w12"].shape[1] // 2
    x = jnp.transpose(x_nchw, (0, 2, 3, 1)).astype(jnp.bfloat16)
    if c1p != C1:
        x = jnp.pad(x, ((0, 0), (0, 0), (0, 0), (0, c1p - C1)))
    y12 = jnp.einsum("nhwc,cd->nhwd", x, prep["w12"],
                     preferred_element_type=jnp.float32) + prep["b12"].reshape(1, 1, 1, -1)
    y12 = _silu_ref(y12)
    m = y12[..., :cp].astype(jnp.bfloat16)
    b = y12[..., cp:].astype(jnp.bfloat16)
    for bi in range(prep["bw1"].shape[0]):
        t = jnp.einsum("nhwc,cd->nhwd", m, prep["bw1"][bi],
                       preferred_element_type=jnp.float32) + prep["bb1"][bi].reshape(1, 1, 1, -1)
        t = _silu_ref(t).astype(jnp.bfloat16)
        wk = prep["bw9"][bi].reshape(3, 3, cp, cp)
        u = jax.lax.conv_general_dilated(
            t, wk, window_strides=(1, 1), padding="SAME",
            dimension_numbers=("NHWC", "HWIO", "NHWC"),
            preferred_element_type=jnp.float32)
        u = _silu_ref(u + prep["bb2"][bi].reshape(1, 1, 1, -1))
        m = (m.astype(jnp.float32) + u).astype(jnp.bfloat16)
    cat = jnp.concatenate([m, b], axis=-1)
    y = jnp.einsum("nhwc,cd->nhwd", cat, prep["w3"],
                   preferred_element_type=jnp.float32) + prep["b3"].reshape(1, 1, 1, -1)
    out = _silu_ref(y)[..., :c2]
    return jnp.transpose(out, (0, 3, 1, 2))


def _conv_ref_f32(x_nhwc, w, scale, bias, k):
    if k == 1:
        y = jnp.einsum("nhwc,cd->nhwd", x_nhwc, w)
    else:
        y = jax.lax.conv_general_dilated(
            x_nhwc, w, window_strides=(1, 1), padding="SAME",
            dimension_numbers=("NHWC", "HWIO", "NHWC"))
    y = y * scale.reshape(1, 1, 1, -1) + bias.reshape(1, 1, 1, -1)
    return y * jax.nn.sigmoid(y)


def c3_ref_f32(x_nchw, params):
    x = jnp.transpose(x_nchw, (0, 2, 3, 1)).astype(jnp.float32)
    a = _conv_ref_f32(x, *params["cv1"], 1)
    b = _conv_ref_f32(x, *params["cv2"], 1)
    m = a
    for (p1, p2) in params["bottlenecks"]:
        t = _conv_ref_f32(m, *p1, 1)
        u = _conv_ref_f32(t, *p2, 3)
        m = m + u
    cat = jnp.concatenate([m, b], axis=-1)
    out = _conv_ref_f32(cat, *params["cv3"], 1)
    return jnp.transpose(out, (0, 3, 1, 2))


if __name__ == "__main__":
    key = jax.random.PRNGKey(0)
    N, C1, C2, H, W = 2, 8, 8, 16, 16            # c_ = int(C2 * 0.5) = 4
    n_bottlenecks = 1
    c_ = int(C2 * 0.5)

    k_x, k_p = jax.random.split(key)
    x = jax.random.normal(k_x, (N, C1, H, W), jnp.float32)

    keys = jax.random.split(k_p, 3 + 2 * n_bottlenecks)
    raw = {
        "cv1": make_conv_params(keys[0], C1, c_, 1),
        "cv2": make_conv_params(keys[1], C1, c_, 1),
        "cv3": make_conv_params(keys[2], 2 * c_, C2, 1),
        "bottlenecks": [
            (make_conv_params(keys[3 + 2 * i], c_, c_, 1),
             make_conv_params(keys[4 + 2 * i], c_, c_, 3))
            for i in range(n_bottlenecks)
        ],
    }
    prep = prepare_params(raw, C1, C2, c_)

    fwd = jax.jit(functools.partial(c3_forward, c2=C2))
    out = jax.block_until_ready(fwd(x, prep))
    assert out.shape == (N, C2, H, W)
    out_f = np.asarray(out.astype(jnp.float32))

    # Tight check: pure-JAX emulation of the same bf16-inference computation.
    ref_q = np.asarray(c3_ref_bf16(x, prep, C2), dtype=np.float32)
    np.testing.assert_allclose(out_f, ref_q, rtol=1e-2, atol=1e-2)

    # Sanity check against the original full-f32 module semantics (bounds the bf16
    # quantization drift introduced as an inference-precision optimization).
    ref_f = np.asarray(c3_ref_f32(x, raw), dtype=np.float32)
    np.testing.assert_allclose(out_f, ref_f, rtol=3e-2, atol=3e-2)

    print("KERNEL_OK")
</pallas_src>

<mosaic_0001>
module attributes {stable_mosaic.version = 11 : i64} {
  func.func @_c3_kernel(%arg0: i32, %arg1: memref<1x16x16x128xbf16, #tpu.memory_space<vmem>>, %arg2: memref<128x256xbf16, #tpu.memory_space<vmem>>, %arg3: memref<1x256xf32, #tpu.memory_space<vmem>>, %arg4: memref<1x128x128xbf16, #tpu.memory_space<vmem>>, %arg5: memref<1x1x128xf32, #tpu.memory_space<vmem>>, %arg6: memref<1x9x128x128xbf16, #tpu.memory_space<vmem>>, %arg7: memref<1x1x128xf32, #tpu.memory_space<vmem>>, %arg8: memref<256x128xbf16, #tpu.memory_space<vmem>>, %arg9: memref<1x128xf32, #tpu.memory_space<vmem>>, %arg10: memref<1x16x16x128xbf16, #tpu.memory_space<vmem>>) attributes {dimension_semantics = [#tpu.dimension_semantics<parallel>], iteration_bounds = array<i64: 2>, scalar_prefetch = 0 : i64, scratch_operands = 0 : i64, tpu.core_type = #tpu.core_type<tc>, window_params = [{transform_indices = @transform_0, window_bounds = array<i64: 1, 16, 16, 128>}, {pipeline_mode = #tpu.pipeline_mode<synchronous>, transform_indices = @transform_1, window_bounds = array<i64: 128, 256>}, {pipeline_mode = #tpu.pipeline_mode<synchronous>, transform_indices = @transform_2, window_bounds = array<i64: 1, 256>}, {pipeline_mode = #tpu.pipeline_mode<synchronous>, transform_indices = @transform_3, window_bounds = array<i64: 1, 128, 128>}, {pipeline_mode = #tpu.pipeline_mode<synchronous>, transform_indices = @transform_4, window_bounds = array<i64: 1, 1, 128>}, {pipeline_mode = #tpu.pipeline_mode<synchronous>, transform_indices = @transform_5, window_bounds = array<i64: 1, 9, 128, 128>}, {pipeline_mode = #tpu.pipeline_mode<synchronous>, transform_indices = @transform_6, window_bounds = array<i64: 1, 1, 128>}, {pipeline_mode = #tpu.pipeline_mode<synchronous>, transform_indices = @transform_7, window_bounds = array<i64: 256, 128>}, {pipeline_mode = #tpu.pipeline_mode<synchronous>, transform_indices = @transform_8, window_bounds = array<i64: 1, 128>}, {transform_indices = @transform_9, window_bounds = array<i64: 1, 16, 16, 128>}]} {
    %c0 = arith.constant 0 : index
    %c0_0 = arith.constant 0 : index
    %c0_1 = arith.constant 0 : index
    %c0_2 = arith.constant 0 : index
    %0 = vector.load %arg1[%c0, %c0_0, %c0_1, %c0_2] : memref<1x16x16x128xbf16, #tpu.memory_space<vmem>>, vector<1x16x16x128xbf16>
    %1 = vector.shape_cast %0 : vector<1x16x16x128xbf16> to vector<16x16x128xbf16>
    %2 = vector.shape_cast %1 : vector<16x16x128xbf16> to vector<256x128xbf16>
    %c0_3 = arith.constant 0 : index
    %c0_4 = arith.constant 0 : index
    %3 = vector.load %arg2[%c0_3, %c0_4] : memref<128x256xbf16, #tpu.memory_space<vmem>>, vector<128x256xbf16>
    %cst = arith.constant dense<0.000000e+00> : vector<256x256xf32>
    %4 = tpu.matmul %2, %3, %cst {dimension_numbers = #tpu.dot_dimension_numbers<[1], [0], [0], [1], [0, 0, 1, 1], [], []>} : vector<256x128xbf16>, vector<128x256xbf16>, vector<256x256xf32> -> vector<256x256xf32>
    %c0_5 = arith.constant 0 : index
    %c0_6 = arith.constant 0 : index
    %5 = vector.load %arg3[%c0_5, %c0_6] : memref<1x256xf32, #tpu.memory_space<vmem>>, vector<1x256xf32>
    %6 = vector.broadcast %5 : vector<1x256xf32> to vector<256x256xf32>
    %7 = arith.addf %4, %6 : vector<256x256xf32>
    %cst_7 = arith.constant 0.000000e+00 : f32
    %8 = vector.broadcast %cst_7 : f32 to vector<256x256xf32>
    %9 = arith.subf %8, %7 : vector<256x256xf32>
    %10 = math.exp %9 : vector<256x256xf32>
    %cst_8 = arith.constant 1.000000e+00 : f32
    %11 = vector.broadcast %cst_8 : f32 to vector<256x256xf32>
    %12 = arith.addf %11, %10 : vector<256x256xf32>
    %13 = tpu.reciprocal %12 {approx = true} : vector<256x256xf32> -> vector<256x256xf32>
    %14 = arith.mulf %7, %13 : vector<256x256xf32>
    %15 = vector.extract_strided_slice %14 {offsets = [0, 0], sizes = [256, 128], strides = [1, 1]} : vector<256x256xf32> to vector<256x128xf32>
    %16 = arith.truncf %15 : vector<256x128xf32> to vector<256x128xbf16>
    %17 = vector.extract_strided_slice %14 {offsets = [0, 128], sizes = [256, 128], strides = [1, 1]} : vector<256x256xf32> to vector<256x128xf32>
    %18 = arith.truncf %17 : vector<256x128xf32> to vector<256x128xbf16>
    %19 = tpu.iota {dimensions = array<i32: 0>} : vector<256x1xi32>
    %c16_i32 = arith.constant 16 : i32
    %c0_i32 = arith.constant 0 : i32
    %20 = arith.cmpi eq, %c16_i32, %c0_i32 : i32
    %c1_i32 = arith.constant 1 : i32
    %21 = arith.select %20, %c1_i32, %c16_i32 : i32
    %22 = vector.broadcast %21 : i32 to vector<256x1xi32>
    %23 = arith.remsi %19, %22 : vector<256x1xi32>
    %c0_i32_9 = arith.constant 0 : i32
    %24 = vector.broadcast %c0_i32_9 : i32 to vector<256x1xi32>
    %25 = arith.cmpi ne, %23, %24 : vector<256x1xi32>
    %c0_i32_10 = arith.constant 0 : i32
    %26 = vector.broadcast %c0_i32_10 : i32 to vector<256x1xi32>
    %27 = arith.cmpi slt, %23, %26 : vector<256x1xi32>
    %c0_i32_11 = arith.constant 0 : i32
    %28 = arith.cmpi slt, %21, %c0_i32_11 : i32
    %29 = vector.broadcast %28 : i1 to vector<256x1xi1>
    %30 = vector.broadcast %29 : vector<256x1xi1> to vector<256x1xi1>
    %31 = arith.xori %27, %30 : vector<256x1xi1>
    %32 = arith.andi %31, %25 : vector<256x1xi1>
    %33 = vector.broadcast %21 : i32 to vector<256x1xi32>
    %34 = arith.addi %23, %33 : vector<256x1xi32>
    %35 = arith.select %32, %34, %23 : vector<256x1xi1>, vector<256x1xi32>
    %c0_i32_12 = arith.constant 0 : i32
    %36 = vector.broadcast %c0_i32_12 : i32 to vector<256x1xi32>
    %37 = arith.cmpi ne, %35, %36 : vector<256x1xi32>
    %c15_i32 = arith.constant 15 : i32
    %38 = vector.broadcast %c15_i32 : i32 to vector<256x1xi32>
    %39 = arith.cmpi ne, %35, %38 : vector<256x1xi32>
    %cst_13 = arith.constant 0.000000e+00 : bf16
    %40 = vector.broadcast %cst_13 : bf16 to vector<17x128xbf16>
    %c0_14 = arith.constant 0 : index
    %c0_15 = arith.constant 0 : index
    %c0_16 = arith.constant 0 : index
    %41 = vector.load %arg4[%c0_14, %c0_15, %c0_16] : memref<1x128x128xbf16, #tpu.memory_space<vmem>>, vector<1x128x128xbf16>
    %42 = vector.shape_cast %41 : vector<1x128x128xbf16> to vector<128x128xbf16>
    %cst_17 = arith.constant dense<0.000000e+00> : vector<256x128xf32>
    %43 = tpu.matmul %16, %42, %cst_17 {dimension_numbers = #tpu.dot_dimension_numbers<[1], [0], [0], [1], [0, 0, 1, 1], [], []>} : vector<256x128xbf16>, vector<128x128xbf16>, vector<256x128xf32> -> vector<256x128xf32>
    %c0_18 = arith.constant 0 : index
    %c0_19 = arith.constant 0 : index
    %c0_20 = arith.constant 0 : index
    %44 = vector.load %arg5[%c0_18, %c0_19, %c0_20] : memref<1x1x128xf32, #tpu.memory_space<vmem>>, vector<1x1x128xf32>
    %45 = vector.shape_cast %44 : vector<1x1x128xf32> to vector<1x128xf32>
    %46 = vector.broadcast %45 : vector<1x128xf32> to vector<256x128xf32>
    %47 = arith.addf %43, %46 : vector<256x128xf32>
    %cst_21 = arith.constant 0.000000e+00 : f32
    %48 = vector.broadcast %cst_21 : f32 to vector<256x128xf32>
    %49 = arith.subf %48, %47 : vector<256x128xf32>
    %50 = math.exp %49 : vector<256x128xf32>
    %cst_22 = arith.constant 1.000000e+00 : f32
    %51 = vector.broadcast %cst_22 : f32 to vector<256x128xf32>
    %52 = arith.addf %51, %50 : vector<256x128xf32>
    %53 = tpu.reciprocal %52 {approx = true} : vector<256x128xf32> -> vector<256x128xf32>
    %54 = arith.mulf %47, %53 : vector<256x128xf32>
    %55 = arith.truncf %54 : vector<256x128xf32> to vector<256x128xbf16>
    %56 = tpu.concatenate %40, %55, %40 in 0 : vector<17x128xbf16>, vector<256x128xbf16>, vector<17x128xbf16> -> vector<290x128xbf16>
    %cst_23 = arith.constant 0.000000e+00 : f32
    %57 = vector.broadcast %cst_23 : f32 to vector<256x128xf32>
    %58 = vector.extract_strided_slice %56 {offsets = [0, 0], sizes = [256, 128], strides = [1, 1]} : vector<290x128xbf16> to vector<256x128xbf16>
    %cst_24 = arith.constant 0.000000e+00 : bf16
    %59 = vector.broadcast %cst_24 : bf16 to vector<256x128xbf16>
    %60 = vector.shape_cast %37 : vector<256x1xi1> to vector<256x1xi1>
    %61 = vector.broadcast %60 : vector<256x1xi1> to vector<256x128xi1>
    %62 = arith.select %61, %58, %59 : vector<256x128xi1>, vector<256x128xbf16>
    %c0_25 = arith.constant 0 : index
    %c0_26 = arith.constant 0 : index
    %c0_27 = arith.constant 0 : index
    %c0_28 = arith.constant 0 : index
    %63 = vector.load %arg6[%c0_25, %c0_26, %c0_27, %c0_28] : memref<1x9x128x128xbf16, #tpu.memory_space<vmem>>, vector<1x1x128x128xbf16>
    %64 = vector.shape_cast %63 : vector<1x1x128x128xbf16> to vector<128x128xbf16>
    %cst_29 = arith.constant dense<0.000000e+00> : vector<256x128xf32>
    %65 = tpu.matmul %62, %64, %cst_29 {dimension_numbers = #tpu.dot_dimension_numbers<[1], [0], [0], [1], [0, 0, 1, 1], [], []>} : vector<256x128xbf16>, vector<128x128xbf16>, vector<256x128xf32> -> vector<256x128xf32>
    %66 = arith.addf %57, %65 : vector<256x128xf32>
    %67 = vector.extract_strided_slice %56 {offsets = [1, 0], sizes = [256, 128], strides = [1, 1]} : vector<290x128xbf16> to vector<256x128xbf16>
    %c0_30 = arith.constant 0 : index
    %c1 = arith.constant 1 : index
    %c0_31 = arith.constant 0 : index
    %c0_32 = arith.constant 0 : index
    %68 = vector.load %arg6[%c0_30, %c1, %c0_31, %c0_32] : memref<1x9x128x128xbf16, #tpu.memory_space<vmem>>, vector<1x1x128x128xbf16>
    %69 = vector.shape_cast %68 : vector<1x1x128x128xbf16> to vector<128x128xbf16>
    %cst_33 = arith.constant dense<0.000000e+00> : vector<256x128xf32>
    %70 = tpu.matmul %67, %69, %cst_33 {dimension_numbers = #tpu.dot_dimension_numbers<[1], [0], [0], [1], [0, 0, 1, 1], [], []>} : vector<256x128xbf16>, vector<128x128xbf16>, vector<256x128xf32> -> vector<256x128xf32>
    %71 = arith.addf %66, %70 : vector<256x128xf32>
    %72 = vector.extract_strided_slice %56 {offsets = [2, 0], sizes = [256, 128], strides = [1, 1]} : vector<290x128xbf16> to vector<256x128xbf16>
    %cst_34 = arith.constant 0.000000e+00 : bf16
    %73 = vector.broadcast %cst_34 : bf16 to vector<256x128xbf16>
    %74 = vector.shape_cast %39 : vector<256x1xi1> to vector<256x1xi1>
    %75 = vector.broadcast %74 : vector<256x1xi1> to vector<256x128xi1>
    %76 = arith.select %75, %72, %73 : vector<256x128xi1>, vector<256x128xbf16>
    %c0_35 = arith.constant 0 : index
    %c2 = arith.constant 2 : index
    %c0_36 = arith.constant 0 : index
    %c0_37 = arith.constant 0 : index
    %77 = vector.load %arg6[%c0_35, %c2, %c0_36, %c0_37] : memref<1x9x128x128xbf16, #tpu.memory_space<vmem>>, vector<1x1x128x128xbf16>
    %78 = vector.shape_cast %77 : vector<1x1x128x128xbf16> to vector<128x128xbf16>
    %cst_38 = arith.constant dense<0.000000e+00> : vector<256x128xf32>
    %79 = tpu.matmul %76, %78, %cst_38 {dimension_numbers = #tpu.dot_dimension_numbers<[1], [0], [0], [1], [0, 0, 1, 1], [], []>} : vector<256x128xbf16>, vector<128x128xbf16>, vector<256x128xf32> -> vector<256x128xf32>
    %80 = arith.addf %71, %79 : vector<256x128xf32>
    %81 = vector.extract_strided_slice %56 {offsets = [16, 0], sizes = [256, 128], strides = [1, 1]} : vector<290x128xbf16> to vector<256x128xbf16>
    %cst_39 = arith.constant 0.000000e+00 : bf16
    %82 = vector.broadcast %cst_39 : bf16 to vector<256x128xbf16>
    %83 = vector.shape_cast %37 : vector<256x1xi1> to vector<256x1xi1>
    %84 = vector.broadcast %83 : vector<256x1xi1> to vector<256x128xi1>
    %85 = arith.select %84, %81, %82 : vector<256x128xi1>, vector<256x128xbf16>
    %c0_40 = arith.constant 0 : index
    %c3 = arith.constant 3 : index
    %c0_41 = arith.constant 0 : index
    %c0_42 = arith.constant 0 : index
    %86 = vector.load %arg6[%c0_40, %c3, %c0_41, %c0_42] : memref<1x9x128x128xbf16, #tpu.memory_space<vmem>>, vector<1x1x128x128xbf16>
    %87 = vector.shape_cast %86 : vector<1x1x128x128xbf16> to vector<128x128xbf16>
    %cst_43 = arith.constant dense<0.000000e+00> : vector<256x128xf32>
    %88 = tpu.matmul %85, %87, %cst_43 {dimension_numbers = #tpu.dot_dimension_numbers<[1], [0], [0], [1], [0, 0, 1, 1], [], []>} : vector<256x128xbf16>, vector<128x128xbf16>, vector<256x128xf32> -> vector<256x128xf32>
    %89 = arith.addf %80, %88 : vector<256x128xf32>
    %90 = vector.extract_strided_slice %56 {offsets = [17, 0], sizes = [256, 128], strides = [1, 1]} : vector<290x128xbf16> to vector<256x128xbf16>
    %c0_44 = arith.constant 0 : index
    %c4 = arith.constant 4 : index
    %c0_45 = arith.constant 0 : index
    %c0_46 = arith.constant 0 : index
    %91 = vector.load %arg6[%c0_44, %c4, %c0_45, %c0_46] : memref<1x9x128x128xbf16, #tpu.memory_space<vmem>>, vector<1x1x128x128xbf16>
    %92 = vector.shape_cast %91 : vector<1x1x128x128xbf16> to vector<128x128xbf16>
    %cst_47 = arith.constant dense<0.000000e+00> : vector<256x128xf32>
    %93 = tpu.matmul %90, %92, %cst_47 {dimension_numbers = #tpu.dot_dimension_numbers<[1], [0], [0], [1], [0, 0, 1, 1], [], []>} : vector<256x128xbf16>, vector<128x128xbf16>, vector<256x128xf32> -> vector<256x128xf32>
    %94 = arith.addf %89, %93 : vector<256x128xf32>
    %95 = vector.extract_strided_slice %56 {offsets = [18, 0], sizes = [256, 128], strides = [1, 1]} : vector<290x128xbf16> to vector<256x128xbf16>
    %cst_48 = arith.constant 0.000000e+00 : bf16
    %96 = vector.broadcast %cst_48 : bf16 to vector<256x128xbf16>
    %97 = vector.shape_cast %39 : vector<256x1xi1> to vector<256x1xi1>
    %98 = vector.broadcast %97 : vector<256x1xi1> to vector<256x128xi1>
    %99 = arith.select %98, %95, %96 : vector<256x128xi1>, vector<256x128xbf16>
    %c0_49 = arith.constant 0 : index
    %c5 = arith.constant 5 : index
    %c0_50 = arith.constant 0 : index
    %c0_51 = arith.constant 0 : index
    %100 = vector.load %arg6[%c0_49, %c5, %c0_50, %c0_51] : memref<1x9x128x128xbf16, #tpu.memory_space<vmem>>, vector<1x1x128x128xbf16>
    %101 = vector.shape_cast %100 : vector<1x1x128x128xbf16> to vector<128x128xbf16>
    %cst_52 = arith.constant dense<0.000000e+00> : vector<256x128xf32>
    %102 = tpu.matmul %99, %101, %cst_52 {dimension_numbers = #tpu.dot_dimension_numbers<[1], [0], [0], [1], [0, 0, 1, 1], [], []>} : vector<256x128xbf16>, vector<128x128xbf16>, vector<256x128xf32> -> vector<256x128xf32>
    %103 = arith.addf %94, %102 : vector<256x128xf32>
    %104 = vector.extract_strided_slice %56 {offsets = [32, 0], sizes = [256, 128], strides = [1, 1]} : vector<290x128xbf16> to vector<256x128xbf16>
    %cst_53 = arith.constant 0.000000e+00 : bf16
    %105 = vector.broadcast %cst_53 : bf16 to vector<256x128xbf16>
    %106 = vector.shape_cast %37 : vector<256x1xi1> to vector<256x1xi1>
    %107 = vector.broadcast %106 : vector<256x1xi1> to vector<256x128xi1>
    %108 = arith.select %107, %104, %105 : vector<256x128xi1>, vector<256x128xbf16>
    %c0_54 = arith.constant 0 : index
    %c6 = arith.constant 6 : index
    %c0_55 = arith.constant 0 : index
    %c0_56 = arith.constant 0 : index
    %109 = vector.load %arg6[%c0_54, %c6, %c0_55, %c0_56] : memref<1x9x128x128xbf16, #tpu.memory_space<vmem>>, vector<1x1x128x128xbf16>
    %110 = vector.shape_cast %109 : vector<1x1x128x128xbf16> to vector<128x128xbf16>
    %cst_57 = arith.constant dense<0.000000e+00> : vector<256x128xf32>
    %111 = tpu.matmul %108, %110, %cst_57 {dimension_numbers = #tpu.dot_dimension_numbers<[1], [0], [0], [1], [0, 0, 1, 1], [], []>} : vector<256x128xbf16>, vector<128x128xbf16>, vector<256x128xf32> -> vector<256x128xf32>
    %112 = arith.addf %103, %111 : vector<256x128xf32>
    %113 = vector.extract_strided_slice %56 {offsets = [33, 0], sizes = [256, 128], strides = [1, 1]} : vector<290x128xbf16> to vector<256x128xbf16>
    %c0_58 = arith.constant 0 : index
    %c7 = arith.constant 7 : index
    %c0_59 = arith.constant 0 : index
    %c0_60 = arith.constant 0 : index
    %114 = vector.load %arg6[%c0_58, %c7, %c0_59, %c0_60] : memref<1x9x128x128xbf16, #tpu.memory_space<vmem>>, vector<1x1x128x128xbf16>
    %115 = vector.shape_cast %114 : vector<1x1x128x128xbf16> to vector<128x128xbf16>
    %cst_61 = arith.constant dense<0.000000e+00> : vector<256x128xf32>
    %116 = tpu.matmul %113, %115, %cst_61 {dimension_numbers = #tpu.dot_dimension_numbers<[1], [0], [0], [1], [0, 0, 1, 1], [], []>} : vector<256x128xbf16>, vector<128x128xbf16>, vector<256x128xf32> -> vector<256x128xf32>
    %117 = arith.addf %112, %116 : vector<256x128xf32>
    %118 = vector.extract_strided_slice %56 {offsets = [34, 0], sizes = [256, 128], strides = [1, 1]} : vector<290x128xbf16> to vector<256x128xbf16>
    %cst_62 = arith.constant 0.000000e+00 : bf16
    %119 = vector.broadcast %cst_62 : bf16 to vector<256x128xbf16>
    %120 = vector.shape_cast %39 : vector<256x1xi1> to vector<256x1xi1>
    %121 = vector.broadcast %120 : vector<256x1xi1> to vector<256x128xi1>
    %122 = arith.select %121, %118, %119 : vector<256x128xi1>, vector<256x128xbf16>
    %c0_63 = arith.constant 0 : index
    %c8 = arith.constant 8 : index
    %c0_64 = arith.constant 0 : index
    %c0_65 = arith.constant 0 : index
    %123 = vector.load %arg6[%c0_63, %c8, %c0_64, %c0_65] : memref<1x9x128x128xbf16, #tpu.memory_space<vmem>>, vector<1x1x128x128xbf16>
    %124 = vector.shape_cast %123 : vector<1x1x128x128xbf16> to vector<128x128xbf16>
    %cst_66 = arith.constant dense<0.000000e+00> : vector<256x128xf32>
    %125 = tpu.matmul %122, %124, %cst_66 {dimension_numbers = #tpu.dot_dimension_numbers<[1], [0], [0], [1], [0, 0, 1, 1], [], []>} : vector<256x128xbf16>, vector<128x128xbf16>, vector<256x128xf32> -> vector<256x128xf32>
    %126 = arith.addf %117, %125 : vector<256x128xf32>
    %c0_67 = arith.constant 0 : index
    %c0_68 = arith.constant 0 : index
    %c0_69 = arith.constant 0 : index
    %127 = vector.load %arg7[%c0_67, %c0_68, %c0_69] : memref<1x1x128xf32, #tpu.memory_space<vmem>>, vector<1x1x128xf32>
    %128 = vector.shape_cast %127 : vector<1x1x128xf32> to vector<1x128xf32>
    %129 = vector.broadcast %128 : vector<1x128xf32> to vector<256x128xf32>
    %130 = arith.addf %126, %129 : vector<256x128xf32>
    %cst_70 = arith.constant 0.000000e+00 : f32
    %131 = vector.broadcast %cst_70 : f32 to vector<256x128xf32>
    %132 = arith.subf %131, %130 : vector<256x128xf32>
    %133 = math.exp %132 : vector<256x128xf32>
    %cst_71 = arith.constant 1.000000e+00 : f32
    %134 = vector.broadcast %cst_71 : f32 to vector<256x128xf32>
    %135 = arith.addf %134, %133 : vector<256x128xf32>
    %136 = tpu.reciprocal %135 {approx = true} : vector<256x128xf32> -> vector<256x128xf32>
    %137 = arith.mulf %130, %136 : vector<256x128xf32>
    %138 = arith.extf %16 : vector<256x128xbf16> to vector<256x128xf32>
    %139 = arith.addf %138, %137 : vector<256x128xf32>
    %140 = arith.truncf %139 : vector<256x128xf32> to vector<256x128xbf16>
    %141 = tpu.concatenate %140, %18 in 1 : vector<256x128xbf16>, vector<256x128xbf16> -> vector<256x256xbf16>
    %c0_72 = arith.constant 0 : index
    %c0_73 = arith.constant 0 : index
    %142 = vector.load %arg8[%c0_72, %c0_73] : memref<256x128xbf16, #tpu.memory_space<vmem>>, vector<256x128xbf16>
    %cst_74 = arith.constant dense<0.000000e+00> : vector<256x128xf32>
    %143 = tpu.matmul %141, %142, %cst_74 {dimension_numbers = #tpu.dot_dimension_numbers<[1], [0], [0], [1], [0, 0, 1, 1], [], []>} : vector<256x256xbf16>, vector<256x128xbf16>, vector<256x128xf32> -> vector<256x128xf32>
    %c0_75 = arith.constant 0 : index
    %c0_76 = arith.constant 0 : index
    %144 = vector.load %arg9[%c0_75, %c0_76] : memref<1x128xf32, #tpu.memory_space<vmem>>, vector<1x128xf32>
    %145 = vector.broadcast %144 : vector<1x128xf32> to vector<256x128xf32>
    %146 = arith.addf %143, %145 : vector<256x128xf32>
    %cst_77 = arith.constant 0.000000e+00 : f32
    %147 = vector.broadcast %cst_77 : f32 to vector<256x128xf32>
    %148 = arith.subf %147, %146 : vector<256x128xf32>
    %149 = math.exp %148 : vector<256x128xf32>
    %cst_78 = arith.constant 1.000000e+00 : f32
    %150 = vector.broadcast %cst_78 : f32 to vector<256x128xf32>
    %151 = arith.addf %150, %149 : vector<256x128xf32>
    %152 = tpu.reciprocal %151 {approx = true} : vector<256x128xf32> -> vector<256x128xf32>
    %153 = arith.mulf %146, %152 : vector<256x128xf32>
    %154 = vector.shape_cast %153 : vector<256x128xf32> to vector<16x16x128xf32>
    %155 = arith.truncf %154 : vector<16x16x128xf32> to vector<16x16x128xbf16>
    %c0_79 = arith.constant 0 : index
    %c0_80 = arith.constant 0 : index
    %c0_81 = arith.constant 0 : index
    %c0_82 = arith.constant 0 : index
    %156 = vector.load %arg10[%c0_79, %c0_80, %c0_81, %c0_82] : memref<1x16x16x128xbf16, #tpu.memory_space<vmem>>, vector<1x16x16x128xbf16>
    %157 = vector.shape_cast %156 : vector<1x16x16x128xbf16> to vector<16x16x128xbf16>
    %158 = vector.shape_cast %155 : vector<16x16x128xbf16> to vector<1x16x16x128xbf16>
    tpu.vector_store %arg10[%c0_79, %c0_80, %c0_81, %c0_82], %158 {strides = array<i32>} : memref<1x16x16x128xbf16, #tpu.memory_space<vmem>>, vector<1x16x16x128xbf16>,
    return
  }
  func.func @transform_0(%arg0: i32) -> (i32, i32, i32, i32) {
    %c0_i32 = arith.constant 0 : i32
    %c0_i32_0 = arith.constant 0 : i32
    %c0_i32_1 = arith.constant 0 : i32
    %c0_i32_2 = arith.constant 0 : i32
    return %arg0, %c0_i32, %c0_i32_0, %c0_i32_1 : i32, i32, i32, i32
  }
  func.func @transform_1(%arg0: i32) -> (i32, i32) {
    %c0_i32 = arith.constant 0 : i32
    %c0_i32_0 = arith.constant 0 : i32
    %c0_i32_1 = arith.constant 0 : i32
    return %c0_i32, %c0_i32_0 : i32, i32
  }
  func.func @transform_2(%arg0: i32) -> (i32, i32) {
    %c0_i32 = arith.constant 0 : i32
    %c0_i32_0 = arith.constant 0 : i32
    %c0_i32_1 = arith.constant 0 : i32
    return %c0_i32, %c0_i32_0 : i32, i32
  }
  func.func @transform_3(%arg0: i32) -> (i32, i32, i32) {
    %c0_i32 = arith.constant 0 : i32
    %c0_i32_0 = arith.constant 0 : i32
    %c0_i32_1 = arith.constant 0 : i32
    %c0_i32_2 = arith.constant 0 : i32
    return %c0_i32, %c0_i32_0, %c0_i32_1 : i32, i32, i32
  }
  func.func @transform_4(%arg0: i32) -> (i32, i32, i32) {
    %c0_i32 = arith.constant 0 : i32
    %c0_i32_0 = arith.constant 0 : i32
    %c0_i32_1 = arith.constant 0 : i32
    %c0_i32_2 = arith.constant 0 : i32
    return %c0_i32, %c0_i32_0, %c0_i32_1 : i32, i32, i32
  }
  func.func @transform_5(%arg0: i32) -> (i32, i32, i32, i32) {
    %c0_i32 = arith.constant 0 : i32
    %c0_i32_0 = arith.constant 0 : i32
    %c0_i32_1 = arith.constant 0 : i32
    %c0_i32_2 = arith.constant 0 : i32
    %c0_i32_3 = arith.constant 0 : i32
    return %c0_i32, %c0_i32_0, %c0_i32_1, %c0_i32_2 : i32, i32, i32, i32
  }
  func.func @transform_6(%arg0: i32) -> (i32, i32, i32) {
    %c0_i32 = arith.constant 0 : i32
    %c0_i32_0 = arith.constant 0 : i32
    %c0_i32_1 = arith.constant 0 : i32
    %c0_i32_2 = arith.constant 0 : i32
    return %c0_i32, %c0_i32_0, %c0_i32_1 : i32, i32, i32
  }
  func.func @transform_7(%arg0: i32) -> (i32, i32) {
    %c0_i32 = arith.constant 0 : i32
    %c0_i32_0 = arith.constant 0 : i32
    %c0_i32_1 = arith.constant 0 : i32
    return %c0_i32, %c0_i32_0 : i32, i32
  }
  func.func @transform_8(%arg0: i32) -> (i32, i32) {
    %c0_i32 = arith.constant 0 : i32
    %c0_i32_0 = arith.constant 0 : i32
    %c0_i32_1 = arith.constant 0 : i32
    return %c0_i32, %c0_i32_0 : i32, i32
  }
  func.func @transform_9(%arg0: i32) -> (i32, i32, i32, i32) {
    %c0_i32 = arith.constant 0 : i32
    %c0_i32_0 = arith.constant 0 : i32
    %c0_i32_1 = arith.constant 0 : i32
    %c0_i32_2 = arith.constant 0 : i32
    return %arg0, %c0_i32, %c0_i32_0, %c0_i32_1 : i32, i32, i32, i32
  }
}

</mosaic_0001>

<llo_original>
// kernel: c3_forward.1
$region0: #{c3_forward.1}
  #allocation0 [shape = 'u32[]', space=smem, size = 0x4, offset = 0x4, fixed_abs, tag = 'smem constant byte address 0x4 - core index']
  #allocation1 [shape = 'u32[144,128]{1,0:T(1,128)}', space=vmem, size = 0x12000, scoped, tag = 'internal scratch']
  %s0 = inlined_call_operand.vmem [shape: bf16[2,16,16,128], index: 0, kind: input, shape index: {}]
  %s1 = inlined_call_operand.vmem [shape: bf16[128,256], index: 1, kind: input, shape index: {}]
  %s2 = inlined_call_operand.vmem [shape: f32[1,256], index: 2, kind: input, shape index: {}]
  %s3 = inlined_call_operand.vmem [shape: bf16[1,128,128], index: 3, kind: input, shape index: {}]
  %s4 = inlined_call_operand.vmem [shape: f32[1,1,128], index: 4, kind: input, shape index: {}]
  %s5 = inlined_call_operand.vmem [shape: bf16[1,9,128,128], index: 5, kind: input, shape index: {}]
  %s6 = inlined_call_operand.vmem [shape: f32[1,1,128], index: 6, kind: input, shape index: {}]
  %s7 = inlined_call_operand.vmem [shape: bf16[256,128], index: 7, kind: input, shape index: {}]
  %s8 = inlined_call_operand.vmem [shape: f32[1,128], index: 8, kind: input, shape index: {}]
  %s9 = inlined_call_operand.vmem [shape: bf16[2,16,16,128], index: 9, kind: output, shape index: {}]
  %s10 = sld [smem:[#allocation0]]
  $region69: #{c3_forward.1} parent=0
    _
  %s12 = ssub.s32 1, %s10
  %s13 = scalar_select 0, %s12, %s10
  loop: start=0, step=1, limit=4
  $region2: #{c3_forward.1} parent=0 // loop_pre_header
    _
  $region3: #{c3_forward.1} parent=0 // loop_header
    %s15 = sphi 0, %s19
    %p16 = scmp.ge.s32.totalorder %s15, 4
    %s25 = sphi 0, %s27
    %s28 = sphi 0, %s25
    %s29 = sphi 0, %s28
    %s45 = sphi 0, %s29
    %s49 = sphi 0, %s49
    %s51 = sphi 0, %s49
    %s52 = sphi 0, %s51
    %s66 = sphi 0, %s52
    %s70 = sphi 0, %s70
    %s72 = sphi 0, %s70
    %s73 = sphi 0, %s72
    %s87 = sphi 0, %s73
    %s91 = sphi 0, %s91
    %s93 = sphi 0, %s91
    %s94 = sphi 0, %s93
    %s108 = sphi 0, %s94
    %s112 = sphi 0, %s112
    %s114 = sphi 0, %s112
    %s115 = sphi 0, %s114
    %s129 = sphi 0, %s115
    %s133 = sphi 0, %s133
    %s135 = sphi 0, %s133
    %s136 = sphi 0, %s135
    %s150 = sphi 0, %s136
    %s154 = sphi 0, %s154
    %s156 = sphi 0, %s154
    %s157 = sphi 0, %s156
    %s171 = sphi 0, %s157
    %s175 = sphi 0, %s175
    %s177 = sphi 0, %s175
    %s178 = sphi 0, %s177
    %s192 = sphi 0, %s178
    %s196 = sphi 0, %s196
    %s198 = sphi 0, %s196
    %s199 = sphi 0, %s198
    %s213 = sphi 0, %s199
    %s219 = sphi 0, %s221
    %s222 = sphi 0, %s219
    %s223 = sphi 0, %s222
    %s239 = sphi 0, %s223
  $region4: #{c3_forward.1} parent=0 // loop_header_branch
    %18 = sbr.rel (%p16) target = $region8
  $region5: #{c3_forward.1} parent=0 // loop_body
    %s20 = ssub.s32 %s15, 1
    %s21 = ssub.s32 %s15, 2
    %s22 = sadd.s32 %s15, 1
    %s23 = ssub.s32 %s15, %s22
    %p24 = scmp.eq.s32.totalorder %s23, 0
    %s26 = sadd.s32 %s25, 1
    %s27 = scalar_select %p24, %s25, %s26
    %p30 = pneg %p24
    %p31 = scmp.eq.s32.totalorder %s15, 1
    %p32 = por %p30, %p31
    %p33 = scmp.ne.s32.totalorder %s25, %s28
    %p34 = scmp.eq.s32.totalorder %s15, 0
    %p35 = por %p33, %p34
    %p36 = scmp.ne.s32.totalorder %s25, %s28
    %p37 = scmp.eq.s32.totalorder %s20, 1
    %p38 = por %p36, %p37
    %p39 = scmp.ne.s32.totalorder %s28, %s29
    %p40 = scmp.eq.s32.totalorder %s20, 0
    %p41 = por %p39, %p40
    %p42 = scmp.ne.s32.totalorder %s28, %s29
    %p43 = scmp.eq.s32.totalorder %s21, 1
    %p44 = por %p42, %p43
    %p46 = scmp.ne.s32.totalorder %s29, %s45
    %p47 = scmp.eq.s32.totalorder %s21, 0
    %p48 = por %p46, %p47
    %s50 = sadd.s32 %s49, 1
    %p53 = scmp.eq.s32.totalorder %s15, 1
    %p54 = scmp.ne.s32.totalorder %s49, %s51
    %p55 = scmp.eq.s32.totalorder %s15, 0
    %p56 = por %p54, %p55
    %p57 = scmp.ne.s32.totalorder %s49, %s51
    %p58 = scmp.eq.s32.totalorder %s20, 1
    %p59 = por %p57, %p58
    %p60 = scmp.ne.s32.totalorder %s51, %s52
    %p61 = scmp.eq.s32.totalorder %s20, 0
    %p62 = por %p60, %p61
    %p63 = scmp.ne.s32.totalorder %s51, %s52
    %p64 = scmp.eq.s32.totalorder %s21, 1
    %p65 = por %p63, %p64
    %p67 = scmp.ne.s32.totalorder %s52, %s66
    %p68 = scmp.eq.s32.totalorder %s21, 0
    %p69 = por %p67, %p68
    %s71 = sadd.s32 %s70, 1
    %p74 = scmp.eq.s32.totalorder %s15, 1
    %p75 = scmp.ne.s32.totalorder %s70, %s72
    %p76 = scmp.eq.s32.totalorder %s15, 0
    %p77 = por %p75, %p76
    %p78 = scmp.ne.s32.totalorder %s70, %s72
    %p79 = scmp.eq.s32.totalorder %s20, 1
    %p80 = por %p78, %p79
    %p81 = scmp.ne.s32.totalorder %s72, %s73
    %p82 = scmp.eq.s32.totalorder %s20, 0
    %p83 = por %p81, %p82
    %p84 = scmp.ne.s32.totalorder %s72, %s73
    %p85 = scmp.eq.s32.totalorder %s21, 1
    %p86 = por %p84, %p85
    %p88 = scmp.ne.s32.totalorder %s73, %s87
    %p89 = scmp.eq.s32.totalorder %s21, 0
    %p90 = por %p88, %p89
    %s92 = sadd.s32 %s91, 1
    %p95 = scmp.eq.s32.totalorder %s15, 1
    %p96 = scmp.ne.s32.totalorder %s91, %s93
    %p97 = scmp.eq.s32.totalorder %s15, 0
    %p98 = por %p96, %p97
    %p99 = scmp.ne.s32.totalorder %s91, %s93
    %p100 = scmp.eq.s32.totalorder %s20, 1
    %p101 = por %p99, %p100
    %p102 = scmp.ne.s32.totalorder %s93, %s94
    %p103 = scmp.eq.s32.totalorder %s20, 0
    %p104 = por %p102, %p103
    %p105 = scmp.ne.s32.totalorder %s93, %s94
    %p106 = scmp.eq.s32.totalorder %s21, 1
    %p107 = por %p105, %p106
    %p109 = scmp.ne.s32.totalorder %s94, %s108
    %p110 = scmp.eq.s32.totalorder %s21, 0
    %p111 = por %p109, %p110
    %s113 = sadd.s32 %s112, 1
    %p116 = scmp.eq.s32.totalorder %s15, 1
    %p117 = scmp.ne.s32.totalorder %s112, %s114
    %p118 = scmp.eq.s32.totalorder %s15, 0
    %p119 = por %p117, %p118
    %p120 = scmp.ne.s32.totalorder %s112, %s114
    %p121 = scmp.eq.s32.totalorder %s20, 1
    %p122 = por %p120, %p121
    %p123 = scmp.ne.s32.totalorder %s114, %s115
    %p124 = scmp.eq.s32.totalorder %s20, 0
    %p125 = por %p123, %p124
    %p126 = scmp.ne.s32.totalorder %s114, %s115
    %p127 = scmp.eq.s32.totalorder %s21, 1
    %p128 = por %p126, %p127
    %p130 = scmp.ne.s32.totalorder %s115, %s129
    %p131 = scmp.eq.s32.totalorder %s21, 0
    %p132 = por %p130, %p131
    %s134 = sadd.s32 %s133, 1
    %p137 = scmp.eq.s32.totalorder %s15, 1
    %p138 = scmp.ne.s32.totalorder %s133, %s135
    %p139 = scmp.eq.s32.totalorder %s15, 0
    %p140 = por %p138, %p139
    %p141 = scmp.ne.s32.totalorder %s133, %s135
    %p142 = scmp.eq.s32.totalorder %s20, 1
    %p143 = por %p141, %p142
    %p144 = scmp.ne.s32.totalorder %s135, %s136
    %p145 = scmp.eq.s32.totalorder %s20, 0
    %p146 = por %p144, %p145
    %p147 = scmp.ne.s32.totalorder %s135, %s136
    %p148 = scmp.eq.s32.totalorder %s21, 1
    %p149 = por %p147, %p148
    %p151 = scmp.ne.s32.totalorder %s136, %s150
    %p152 = scmp.eq.s32.totalorder %s21, 0
    %p153 = por %p151, %p152
    %s155 = sadd.s32 %s154, 1
    %p158 = scmp.eq.s32.totalorder %s15, 1
    %p159 = scmp.ne.s32.totalorder %s154, %s156
    %p160 = scmp.eq.s32.totalorder %s15, 0
    %p161 = por %p159, %p160
    %p162 = scmp.ne.s32.totalorder %s154, %s156
    %p163 = scmp.eq.s32.totalorder %s20, 1
    %p164 = por %p162, %p163
    %p165 = scmp.ne.s32.totalorder %s156, %s157
    %p166 = scmp.eq.s32.totalorder %s20, 0
    %p167 = por %p165, %p166
    %p168 = scmp.ne.s32.totalorder %s156, %s157
    %p169 = scmp.eq.s32.totalorder %s21, 1
    %p170 = por %p168, %p169
    %p172 = scmp.ne.s32.totalorder %s157, %s171
    %p173 = scmp.eq.s32.totalorder %s21, 0
    %p174 = por %p172, %p173
    %s176 = sadd.s32 %s175, 1
    %p179 = scmp.eq.s32.totalorder %s15, 1
    %p180 = scmp.ne.s32.totalorder %s175, %s177
    %p181 = scmp.eq.s32.totalorder %s15, 0
    %p182 = por %p180, %p181
    %p183 = scmp.ne.s32.totalorder %s175, %s177
    %p184 = scmp.eq.s32.totalorder %s20, 1
    %p185 = por %p183, %p184
    %p186 = scmp.ne.s32.totalorder %s177, %s178
    %p187 = scmp.eq.s32.totalorder %s20, 0
    %p188 = por %p186, %p187
    %p189 = scmp.ne.s32.totalorder %s177, %s178
    %p190 = scmp.eq.s32.totalorder %s21, 1
    %p191 = por %p189, %p190
    %p193 = scmp.ne.s32.totalorder %s178, %s192
    %p194 = scmp.eq.s32.totalorder %s21, 0
    %p195 = por %p193, %p194
    %s197 = sadd.s32 %s196, 1
    %p200 = scmp.eq.s32.totalorder %s15, 1
    %p201 = scmp.ne.s32.totalorder %s196, %s198
    %p202 = scmp.eq.s32.totalorder %s15, 0
    %p203 = por %p201, %p202
    %p204 = scmp.ne.s32.totalorder %s196, %s198
    %p205 = scmp.eq.s32.totalorder %s20, 1
    %p206 = por %p204, %p205
    %p207 = scmp.ne.s32.totalorder %s198, %s199
    %p208 = scmp.eq.s32.totalorder %s20, 0
    %p209 = por %p207, %p208
    %p210 = scmp.ne.s32.totalorder %s198, %s199
    %p211 = scmp.eq.s32.totalorder %s21, 1
    %p212 = por %p210, %p211
    %p214 = scmp.ne.s32.totalorder %s199, %s213
    %p215 = scmp.eq.s32.totalorder %s21, 0
    %p216 = por %p214, %p215
    %s217 = ssub.s32 %s15, %s22
    %p218 = scmp.eq.s32.totalorder %s217, 0
    %s220 = sadd.s32 %s219, 1
    %s221 = scalar_select %p218, %s219, %s220
    %p224 = pneg %p218
    %p225 = scmp.eq.s32.totalorder %s15, 1
    %p226 = por %p224, %p225
    %p227 = scmp.ne.s32.totalorder %s219, %s222
    %p228 = scmp.eq.s32.totalorder %s15, 0
    %p229 = por %p227, %p228
    %p230 = scmp.ne.s32.totalorder %s219, %s222
    %p231 = scmp.eq.s32.totalorder %s20, 1
    %p232 = por %p230, %p231
    %p233 = scmp.ne.s32.totalorder %s222, %s223
    %p234 = scmp.eq.s32.totalorder %s20, 0
    %p235 = por %p233, %p234
    %p236 = scmp.ne.s32.totalorder %s222, %s223
    %p237 = scmp.eq.s32.totalorder %s21, 1
    %p238 = por %p236, %p237
    %p240 = scmp.ne.s32.totalorder %s223, %s239
    %p241 = scmp.eq.s32.totalorder %s21, 0
    %p242 = por %p240, %p241
    %p243 = scmp.le.s32.totalorder 1, %s15
    %p244 = scmp.lt.s32.totalorder %s15, 3
    %p245 = pnand %p243, %p244
    %p246 = pneg %p245
    // Predicated region
    $region9: #{c3_forward.1} parent=5 // pred_check
      _
    $region10: #{c3_forward.1} parent=5 // pred_check_branch
      %248 = sbr.rel (%p245) target = $region12
    $region11: #{c3_forward.1} parent=5 // pred_region
      %s249 = ssub.s32 %s15, 1
      // Predicated region
      $region13: #{c3_forward.1} parent=11 // pred_check
        %p250 = pneg %p62
      $region14: #{c3_forward.1} parent=11 // pred_check_branch
        %252 = sbr.rel (%p250) target = $region16
      $region15: #{c3_forward.1} parent=11 // pred_region
        _
      $region16: #{c3_forward.1} parent=11 // pred_fallthru
        _
      // Predicated region
      $region17: #{c3_forward.1} parent=11 // pred_check
        %p253 = pneg %p83
      $region18: #{c3_forward.1} parent=11 // pred_check_branch
        %255 = sbr.rel (%p253) target = $region20
      $region19: #{c3_forward.1} parent=11 // pred_region
        _
      $region20: #{c3_forward.1} parent=11 // pred_fallthru
        _
      // Predicated region
      $region21: #{c3_forward.1} parent=11 // pred_check
        %p256 = pneg %p104
      $region22: #{c3_forward.1} parent=11 // pred_check_branch
        %258 = sbr.rel (%p256) target = $region24
      $region23: #{c3_forward.1} parent=11 // pred_region
        _
      $region24: #{c3_forward.1} parent=11 // pred_fallthru
        _
      // Predicated region
      $region25: #{c3_forward.1} parent=11 // pred_check
        %p259 = pneg %p125
      $region26: #{c3_forward.1} parent=11 // pred_check_branch
        %261 = sbr.rel (%p259) target = $region28
      $region27: #{c3_forward.1} parent=11 // pred_region
        _
      $region28: #{c3_forward.1} parent=11 // pred_fallthru
        _
      // Predicated region
      $region29: #{c3_forward.1} parent=11 // pred_check
        %p262 = pneg %p146
      $region30: #{c3_forward.1} parent=11 // pred_check_branch
        %264 = sbr.rel (%p262) target = $region32
      $region31: #{c3_forward.1} parent=11 // pred_region
        _
      $region32: #{c3_forward.1} parent=11 // pred_fallthru
        _
      // Predicated region
      $region33: #{c3_forward.1} parent=11 // pred_check
        %p265 = pneg %p167
      $region34: #{c3_forward.1} parent=11 // pred_check_branch
        %267 = sbr.rel (%p265) target = $region36
      $region35: #{c3_forward.1} parent=11 // pred_region
        _
      $region36: #{c3_forward.1} parent=11 // pred_fallthru
        _
      // Predicated region
      $region37: #{c3_forward.1} parent=11 // pred_check
        %p268 = pneg %p188
      $region38: #{c3_forward.1} parent=11 // pred_check_branch
        %270 = sbr.rel (%p268) target = $region40
      $region39: #{c3_forward.1} parent=11 // pred_region
        _
      $region40: #{c3_forward.1} parent=11 // pred_fallthru
        _
      // Predicated region
      $region41: #{c3_forward.1} parent=11 // pred_check
        %p271 = pneg %p209
      $region42: #{c3_forward.1} parent=11 // pred_check_branch
        %273 = sbr.rel (%p271) target = $region44
      $region43: #{c3_forward.1} parent=11 // pred_region
        _
      $region44: #{c3_forward.1} parent=11 // pred_fallthru
        _
    $region12: #{c3_forward.1} parent=5 // pred_fallthru
      _
    %p274 = scmp.lt.s32.totalorder %s15, 2
    // Predicated region
    $region45: #{c3_forward.1} parent=5 // pred_check
      %p275 = pneg %p274
    $region46: #{c3_forward.1} parent=5 // pred_check_branch
      %277 = sbr.rel (%p275) target = $region48
    $region47: #{c3_forward.1} parent=5 // pred_region
      // Predicated region
      $region49: #{c3_forward.1} parent=47 // pred_check
        %p278 = pneg %p35
      $region50: #{c3_forward.1} parent=47 // pred_check_branch
        %280 = sbr.rel (%p278) target = $region52
      $region51: #{c3_forward.1} parent=47 // pred_region
        %p281 = scmp.lt.s32.totalorder %s15, 1
        %s282 = scalar_select %p281, %s15, 1
        %s283 = smul.addr %s282, 32
        %s284 = smul.addr %s283, 4
        %s285 = scalar_lea.vmem %s0, %s284
      $region52: #{c3_forward.1} parent=47 // pred_fallthru
        _
    $region48: #{c3_forward.1} parent=5 // pred_fallthru
      _
    %p286 = scmp.le.s32.totalorder 1, %s15
    %p287 = scmp.lt.s32.totalorder %s15, 3
    %p288 = pnand %p286, %p287
    %p289 = pneg %p288
    // Predicated region
    $region53: #{c3_forward.1} parent=5 // pred_check
      _
    $region54: #{c3_forward.1} parent=5 // pred_check_branch
      %291 = sbr.rel (%p288) target = $region56
    $region55: #{c3_forward.1} parent=5 // pred_region
      %s292 = ssub.s32 %s15, 1
      %p293 = scmp.lt.s32.totalorder %s20, 1
      %s294 = scalar_select %p293, %s20, 1
      %s295 = smul.addr %s294, 32
      %s296 = smul.addr %s295, 4
      %s297 = scalar_lea.vmem %s0, %s296
      %p298 = pneg %p41
      %p299 = pneg %p38
      %p300 = pneg %p62
      %p301 = pneg %p59
      %p302 = pneg %p83
      %p303 = pneg %p80
      %p304 = pneg %p104
      %p305 = pneg %p101
      %p306 = pneg %p125
      %p307 = pneg %p122
      %p308 = pneg %p146
      %p309 = pneg %p143
      %p310 = pneg %p167
      %p311 = pneg %p164
      %p312 = pneg %p188
      %p313 = pneg %p185
      %p314 = pneg %p209
      %p315 = pneg %p206
      %p316 = pneg %p235
      %p317 = pneg %p232
      %p318 = scmp.lt.s32.totalorder %s20, 1
      %s319 = scalar_select %p318, %s20, 1
      %s320 = smul.addr %s319, 32
      %s321 = smul.addr %s320, 4
      %s322 = scalar_lea.vmem %s9, %s321
      %p323 = scmp.lt.s32.totalorder %s20, 1
      %s324 = scalar_select %p323, %s20, 1
      %s325 = smul.addr %s324, 32
      %s326 = smul.addr %s325, 4
      %s327 = scalar_lea.vmem %s0, %s326
      %p328 = scmp.lt.s32.totalorder %s20, 1
      %s329 = scalar_select %p328, %s20, 1
      %s330 = smul.addr %s329, 32
      %s331 = smul.addr %s330, 4
      %s332 = scalar_lea.vmem %s9, %s331
      %v336 = vld [vmem:[%s327] sm:$0xf]
      %v337 = vld [vmem:[%s327 + $0x4] sm:$0xf]
      %v338 = vld [vmem:[%s327 + $0x8] sm:$0xf]
      %v339 = vld [vmem:[%s327 + $0xc] sm:$0xf]
      %v340 = vld [vmem:[%s327 + $0x10] sm:$0xf]
      %v341 = vld [vmem:[%s327 + $0x14] sm:$0xf]
      %v342 = vld [vmem:[%s327 + $0x18] sm:$0xf]
      %v343 = vld [vmem:[%s327 + $0x1c] sm:$0xf]
      %v344 = vld [vmem:[%s327 + $0x20] sm:$0xf]
      %v345 = vld [vmem:[%s327 + $0x24] sm:$0xf]
      %v346 = vld [vmem:[%s327 + $0x28] sm:$0xf]
      %v347 = vld [vmem:[%s327 + $0x2c] sm:$0xf]
      %v348 = vld [vmem:[%s327 + $0x30] sm:$0xf]
      %v349 = vld [vmem:[%s327 + $0x34] sm:$0xf]
      %v350 = vld [vmem:[%s327 + $0x38] sm:$0xf]
      %v351 = vld [vmem:[%s327 + $0x3c] sm:$0xf]
      %v352 = vld [vmem:[%s327 + $0x40] sm:$0xf]
      %v353 = vld [vmem:[%s327 + $0x44] sm:$0xf]
      %v354 = vld [vmem:[%s327 + $0x48] sm:$0xf]
      %v355 = vld [vmem:[%s327 + $0x4c] sm:$0xf]
      %v356 = vld [vmem:[%s327 + $0x50] sm:$0xf]
      %v357 = vld [vmem:[%s327 + $0x54] sm:$0xf]
      %v358 = vld [vmem:[%s327 + $0x58] sm:$0xf]
      %v359 = vld [vmem:[%s327 + $0x5c] sm:$0xf]
      %v360 = vld [vmem:[%s327 + $0x60] sm:$0xf]
      %v361 = vld [vmem:[%s327 + $0x64] sm:$0xf]
      %v362 = vld [vmem:[%s327 + $0x68] sm:$0xf]
      %v363 = vld [vmem:[%s327 + $0x6c] sm:$0xf]
      %v364 = vld [vmem:[%s327 + $0x70] sm:$0xf]
      %v365 = vld [vmem:[%s327 + $0x74] sm:$0xf]
      %v366 = vld [vmem:[%s327 + $0x78] sm:$0xf]
      %v367 = vld [vmem:[%s327 + $0x7c] sm:$0xf]
      %v368 = vld [vmem:[%s1] sm:$0xff]
      %v369 = vld [vmem:[%s1 + $0x8] sm:$0xff]
      %v370 = vld [vmem:[%s1 + $0x10] sm:$0xff]
      %v371 = vld [vmem:[%s1 + $0x18] sm:$0xff]
      %v372 = vld [vmem:[%s1 + $0x20] sm:$0xff]
      %v373 = vld [vmem:[%s1 + $0x28] sm:$0xff]
      %v374 = vld [vmem:[%s1 + $0x30] sm:$0xff]
      %v375 = vld [vmem:[%s1 + $0x38] sm:$0xff]
      %v376 = vld [vmem:[%s1 + $0x40] sm:$0xff]
      %v377 = vld [vmem:[%s1 + $0x48] sm:$0xff]
      %v378 = vld [vmem:[%s1 + $0x50] sm:$0xff]
      %v379 = vld [vmem:[%s1 + $0x58] sm:$0xff]
      %v380 = vld [vmem:[%s1 + $0x60] sm:$0xff]
      %v381 = vld [vmem:[%s1 + $0x68] sm:$0xff]
      %v382 = vld [vmem:[%s1 + $0x70] sm:$0xff]
      %v383 = vld [vmem:[%s1 + $0x78] sm:$0xff]
      %v384 = vld [vmem:[%s2] sm:$0x3]
      %v386 = vlaneseq
      %v387 = vshrl.u32 %v386, 7
      %v388 = vsub.s32 0, %v387
      %v389 = vrot.slane %v384, %v388
      %v390 = vlaneseq
      %v391 = vshrl.u32 %v390, 7
      %v392 = vsub.s32 1, %v391
      %v393 = vrot.slane %v384, %v392
      %v428 = vunpack.c.l.b16 %v336
      %v429 = vunpack.c.l.b16 %v337
      %v430 = vunpack.c.l.b16 %v338
      %v431 = vunpack.c.l.b16 %v339
      %v432 = vunpack.c.l.b16 %v340
      %v433 = vunpack.c.l.b16 %v341
      %v434 = vunpack.c.l.b16 %v342
      %v435 = vunpack.c.l.b16 %v343
      %v436 = vunpack.c.l.b16 %v344
      %v437 = vunpack.c.l.b16 %v345
      %v438 = vunpack.c.l.b16 %v346
      %v439 = vunpack.c.l.b16 %v347
      %v440 = vunpack.c.l.b16 %v348
      %v441 = vunpack.c.l.b16 %v349
      %v442 = vunpack.c.l.b16 %v350
      %v443 = vunpack.c.l.b16 %v351
      %v444 = vunpack.c.l.b16 %v352
      %v445 = vunpack.c.l.b16 %v353
      %v446 = vunpack.c.l.b16 %v354
      %v447 = vunpack.c.l.b16 %v355
      %v448 = vunpack.c.l.b16 %v356
      %v449 = vunpack.c.l.b16 %v357
      %v450 = vunpack.c.l.b16 %v358
      %v451 = vunpack.c.l.b16 %v359
      %v452 = vunpack.c.l.b16 %v360
      %v453 = vunpack.c.l.b16 %v361
      %v454 = vunpack.c.l.b16 %v362
      %v455 = vunpack.c.l.b16 %v363
      %v456 = vunpack.c.l.b16 %v364
      %v457 = vunpack.c.l.b16 %v365
      %v458 = vunpack.c.l.b16 %v366
      %v459 = vunpack.c.l.b16 %v367
      %v460 = vpack.c.b16 %v429, %v428
      %v461 = vpack.c.b16 %v431, %v430
      %v462 = vpack.c.b16 %v433, %v432
      %v463 = vpack.c.b16 %v435, %v434
      %v464 = vpack.c.b16 %v437, %v436
      %v465 = vpack.c.b16 %v439, %v438
      %v466 = vpack.c.b16 %v441, %v440
      %v467 = vpack.c.b16 %v443, %v442
      %v468 = vpack.c.b16 %v445, %v444
      %v469 = vpack.c.b16 %v447, %v446
      %v470 = vpack.c.b16 %v449, %v448
      %v471 = vpack.c.b16 %v451, %v450
      %v472 = vpack.c.b16 %v453, %v452
      %v473 = vpack.c.b16 %v455, %v454
      %v474 = vpack.c.b16 %v457, %v456
      %v475 = vpack.c.b16 %v459, %v458
      %v508 = vunpack.c.l.b16 %v368
      %v509 = vunpack.c.h.b16 %v368
      %v510 = vunpack.c.l.b16 %v369
      %v511 = vunpack.c.h.b16 %v369
      %v512 = vunpack.c.l.b16 %v370
      %v513 = vunpack.c.h.b16 %v370
      %v514 = vunpack.c.l.b16 %v371
      %v515 = vunpack.c.h.b16 %v371
      %v516 = vunpack.c.l.b16 %v372
      %v517 = vunpack.c.h.b16 %v372
      %v518 = vunpack.c.l.b16 %v373
      %v519 = vunpack.c.h.b16 %v373
      %v520 = vunpack.c.l.b16 %v374
      %v521 = vunpack.c.h.b16 %v374
      %v522 = vunpack.c.l.b16 %v375
      %v523 = vunpack.c.h.b16 %v375
      %v524 = vunpack.c.l.b16 %v376
      %v525 = vunpack.c.h.b16 %v376
      %v526 = vunpack.c.l.b16 %v377
      %v527 = vunpack.c.h.b16 %v377
      %v528 = vunpack.c.l.b16 %v378
      %v529 = vunpack.c.h.b16 %v378
      %v530 = vunpack.c.l.b16 %v379
      %v531 = vunpack.c.h.b16 %v379
      %v532 = vunpack.c.l.b16 %v380
      %v533 = vunpack.c.h.b16 %v380
      %v534 = vunpack.c.l.b16 %v381
      %v535 = vunpack.c.h.b16 %v381
      %v536 = vunpack.c.l.b16 %v382
      %v537 = vunpack.c.h.b16 %v382
      %v538 = vunpack.c.l.b16 %v383
      %v539 = vunpack.c.h.b16 %v383
      %v540 = vpack.c.b16 %v510, %v508
      %v541 = vpack.c.b16 %v511, %v509
      %v542 = vpack.c.b16 %v514, %v512
      %v543 = vpack.c.b16 %v515, %v513
      %v544 = vpack.c.b16 %v518, %v516
      %v545 = vpack.c.b16 %v519, %v517
      %v546 = vpack.c.b16 %v522, %v520
      %v547 = vpack.c.b16 %v523, %v521
      %v548 = vpack.c.b16 %v526, %v524
      %v549 = vpack.c.b16 %v527, %v525
      %v550 = vpack.c.b16 %v530, %v528
      %v551 = vpack.c.b16 %v531, %v529
      %v552 = vpack.c.b16 %v534, %v532
      %v553 = vpack.c.b16 %v535, %v533
      %v554 = vpack.c.b16 %v538, %v536
      %v555 = vpack.c.b16 %v539, %v537
      %572 = vmatprep.subr.bf16.mxu0 %v541
      %573 = vmatpush1.bf16.msra.mxu0 %v540
      %574 = vmatprep.subr.bf16.mxu0 %v543
      %575 = vmatpush1.bf16.msra.mxu0 %v542
      %576 = vmatprep.subr.bf16.mxu0 %v545
      %577 = vmatpush1.bf16.msra.mxu0 %v544
      %578 = vmatprep.subr.bf16.mxu0 %v547
      %579 = vmatpush1.bf16.msra.mxu0 %v546
      %580 = vmatprep.subr.bf16.mxu0 %v549
      %581 = vmatpush1.bf16.msra.mxu0 %v548
      %582 = vmatprep.subr.bf16.mxu0 %v551
      %583 = vmatpush1.bf16.msra.mxu0 %v550
      %584 = vmatprep.subr.bf16.mxu0 %v553
      %585 = vmatpush1.bf16.msra.mxu0 %v552
      %586 = vmatprep.subr.bf16.mxu0 %v555
      %587 = vmatpush1.bf16.msra.mxu0 %v554
      %588 = vmatprep.subr.bf16.mxu0 0
      %589 = vmatpush1.bf16.msra.mxu0 0
      %590 = vmatprep.subr.bf16.mxu0 0
      %591 = vmatpush1.bf16.msra.mxu0 0
      %592 = vmatprep.subr.bf16.mxu0 0
      %593 = vmatpush1.bf16.msra.mxu0 0
      %594 = vmatprep.subr.bf16.mxu0 0
      %595 = vmatpush1.bf16.msra.mxu0 0
      %596 = vmatprep.subr.bf16.mxu0 0
      %597 = vmatpush1.bf16.msra.mxu0 0
      %598 = vmatprep.subr.bf16.mxu0 0
      %599 = vmatpush1.bf16.msra.mxu0 0
      %600 = vmatprep.subr.bf16.mxu0 0
      %601 = vmatpush1.bf16.msra.mxu0 0
      %602 = vmatprep.subr.bf16.mxu0 0
      %603 = vmatpush1.bf16.msra.mxu0 0
      %604 = vmatprep.mubr.bf16.mxu0 0
      %605 = vmatmul.mubr.bf16.gmra.mrb[0].mxu0 %v460
      %v606 = vpop.f32.mrb[0].mxu0
      %v607 = vadd.f32 %v389, %v606
      %v608 = vpop.f32.mrb[0].mxu0
      %v609 = vadd.f32 %v393, %v608
      %v610 = vpop.f32.mrb[0].mxu0
      %v611 = vadd.f32 %v389, %v610
      %v612 = vpop.f32.mrb[0].mxu0
      %v613 = vadd.f32 %v393, %v612
      %614 = vmatprep.mubr.bf16.mxu0 0
      %615 = vmatmul.mubr.bf16.gmra.mrb[0].mxu0 %v461
      %v616 = vpop.f32.mrb[0].mxu0
      %v617 = vadd.f32 %v389, %v616
      %v618 = vpop.f32.mrb[0].mxu0
      %v619 = vadd.f32 %v393, %v618
      %v620 = vpop.f32.mrb[0].mxu0
      %v621 = vadd.f32 %v389, %v620
      %v622 = vpop.f32.mrb[0].mxu0
      %v623 = vadd.f32 %v393, %v622
      %624 = vmatprep.mubr.bf16.mxu0 0
      %625 = vmatmul.mubr.bf16.gmra.mrb[0].mxu0 %v462
      %v626 = vpop.f32.mrb[0].mxu0
      %v627 = vadd.f32 %v389, %v626
      %v628 = vpop.f32.mrb[0].mxu0
      %v629 = vadd.f32 %v393, %v628
      %v630 = vpop.f32.mrb[0].mxu0
      %v631 = vadd.f32 %v389, %v630
      %v632 = vpop.f32.mrb[0].mxu0
      %v633 = vadd.f32 %v393, %v632
      %634 = vmatprep.mubr.bf16.mxu0 0
      %635 = vmatmul.mubr.bf16.gmra.mrb[0].mxu0 %v463
      %v636 = vpop.f32.mrb[0].mxu0
      %v637 = vadd.f32 %v389, %v636
      %v638 = vpop.f32.mrb[0].mxu0
      %v639 = vadd.f32 %v393, %v638
      %v640 = vpop.f32.mrb[0].mxu0
      %v641 = vadd.f32 %v389, %v640
      %v642 = vpop.f32.mrb[0].mxu0
      %v643 = vadd.f32 %v393, %v642
      %644 = vmatprep.mubr.bf16.mxu0 0
      %645 = vmatmul.mubr.bf16.gmra.mrb[0].mxu0 %v464
      %v646 = vpop.f32.mrb[0].mxu0
      %v647 = vadd.f32 %v389, %v646
      %v648 = vpop.f32.mrb[0].mxu0
      %v649 = vadd.f32 %v393, %v648
      %v650 = vpop.f32.mrb[0].mxu0
      %v651 = vadd.f32 %v389, %v650
      %v652 = vpop.f32.mrb[0].mxu0
      %v653 = vadd.f32 %v393, %v652
      %654 = vmatprep.mubr.bf16.mxu0 0
      %655 = vmatmul.mubr.bf16.gmra.mrb[0].mxu0 %v465
      %v656 = vpop.f32.mrb[0].mxu0
      %v657 = vadd.f32 %v389, %v656
      %v658 = vpop.f32.mrb[0].mxu0
      %v659 = vadd.f32 %v393, %v658
      %v660 = vpop.f32.mrb[0].mxu0
      %v661 = vadd.f32 %v389, %v660
      %v662 = vpop.f32.mrb[0].mxu0
      %v663 = vadd.f32 %v393, %v662
      %664 = vmatprep.mubr.bf16.mxu0 0
      %665 = vmatmul.mubr.bf16.gmra.mrb[0].mxu0 %v466
      %v666 = vpop.f32.mrb[0].mxu0
      %v667 = vadd.f32 %v389, %v666
      %v668 = vpop.f32.mrb[0].mxu0
      %v669 = vadd.f32 %v393, %v668
      %v670 = vpop.f32.mrb[0].mxu0
      %v671 = vadd.f32 %v389, %v670
      %v672 = vpop.f32.mrb[0].mxu0
      %v673 = vadd.f32 %v393, %v672
      %674 = vmatprep.mubr.bf16.mxu0 0
      %675 = vmatmul.mubr.bf16.gmra.mrb[0].mxu0 %v467
      %v676 = vpop.f32.mrb[0].mxu0
      %v677 = vadd.f32 %v389, %v676
      %v678 = vpop.f32.mrb[0].mxu0
      %v679 = vadd.f32 %v393, %v678
      %v680 = vpop.f32.mrb[0].mxu0
      %v681 = vadd.f32 %v389, %v680
      %v682 = vpop.f32.mrb[0].mxu0
      %v683 = vadd.f32 %v393, %v682
      %684 = vmatprep.mubr.bf16.mxu0 0
      %685 = vmatmul.mubr.bf16.gmra.mrb[0].mxu0 %v468
      %v686 = vpop.f32.mrb[0].mxu0
      %v687 = vadd.f32 %v389, %v686
      %v688 = vpop.f32.mrb[0].mxu0
      %v689 = vadd.f32 %v393, %v688
      %v690 = vpop.f32.mrb[0].mxu0
      %v691 = vadd.f32 %v389, %v690
      %v692 = vpop.f32.mrb[0].mxu0
      %v693 = vadd.f32 %v393, %v692
      %694 = vmatprep.mubr.bf16.mxu0 0
      %695 = vmatmul.mubr.bf16.gmra.mrb[0].mxu0 %v469
      %v696 = vpop.f32.mrb[0].mxu0
      %v697 = vadd.f32 %v389, %v696
      %v698 = vpop.f32.mrb[0].mxu0
      %v699 = vadd.f32 %v393, %v698
      %v700 = vpop.f32.mrb[0].mxu0
      %v701 = vadd.f32 %v389, %v700
      %v702 = vpop.f32.mrb[0].mxu0
      %v703 = vadd.f32 %v393, %v702
      %704 = vmatprep.mubr.bf16.mxu0 0
      %705 = vmatmul.mubr.bf16.gmra.mrb[0].mxu0 %v470
      %v706 = vpop.f32.mrb[0].mxu0
      %v707 = vadd.f32 %v389, %v706
      %v708 = vpop.f32.mrb[0].mxu0
      %v709 = vadd.f32 %v393, %v708
      %v710 = vpop.f32.mrb[0].mxu0
      %v711 = vadd.f32 %v389, %v710
      %v712 = vpop.f32.mrb[0].mxu0
      %v713 = vadd.f32 %v393, %v712
      %714 = vmatprep.mubr.bf16.mxu0 0
      %715 = vmatmul.mubr.bf16.gmra.mrb[0].mxu0 %v471
      %v716 = vpop.f32.mrb[0].mxu0
      %v717 = vadd.f32 %v389, %v716
      %v718 = vpop.f32.mrb[0].mxu0
      %v719 = vadd.f32 %v393, %v718
      %v720 = vpop.f32.mrb[0].mxu0
      %v721 = vadd.f32 %v389, %v720
      %v722 = vpop.f32.mrb[0].mxu0
      %v723 = vadd.f32 %v393, %v722
      %724 = vmatprep.mubr.bf16.mxu0 0
      %725 = vmatmul.mubr.bf16.gmra.mrb[0].mxu0 %v472
      %v726 = vpop.f32.mrb[0].mxu0
      %v727 = vadd.f32 %v389, %v726
      %v728 = vpop.f32.mrb[0].mxu0
      %v729 = vadd.f32 %v393, %v728
      %v730 = vpop.f32.mrb[0].mxu0
      %v731 = vadd.f32 %v389, %v730
      %v732 = vpop.f32.mrb[0].mxu0
      %v733 = vadd.f32 %v393, %v732
      %734 = vmatprep.mubr.bf16.mxu0 0
      %735 = vmatmul.mubr.bf16.gmra.mrb[0].mxu0 %v473
      %v736 = vpop.f32.mrb[0].mxu0
      %v737 = vadd.f32 %v389, %v736
      %v738 = vpop.f32.mrb[0].mxu0
      %v739 = vadd.f32 %v393, %v738
      %v740 = vpop.f32.mrb[0].mxu0
      %v741 = vadd.f32 %v389, %v740
      %v742 = vpop.f32.mrb[0].mxu0
      %v743 = vadd.f32 %v393, %v742
      %744 = vmatprep.mubr.bf16.mxu0 0
      %745 = vmatmul.mubr.bf16.gmra.mrb[0].mxu0 %v474
      %v746 = vpop.f32.mrb[0].mxu0
      %v747 = vadd.f32 %v389, %v746
      %v748 = vpop.f32.mrb[0].mxu0
      %v749 = vadd.f32 %v393, %v748
      %v750 = vpop.f32.mrb[0].mxu0
      %v751 = vadd.f32 %v389, %v750
      %v752 = vpop.f32.mrb[0].mxu0
      %v753 = vadd.f32 %v393, %v752
      %754 = vmatprep.mubr.bf16.mxu0 0
      %755 = vmatmul.mubr.bf16.gmra.mrb[0].mxu0 %v475
      %v756 = vpop.f32.mrb[0].mxu0
      %v757 = vadd.f32 %v389, %v756
      %v758 = vpop.f32.mrb[0].mxu0
      %v759 = vadd.f32 %v393, %v758
      %v760 = vpop.f32.mrb[0].mxu0
      %v761 = vadd.f32 %v389, %v760
      %v762 = vpop.f32.mrb[0].mxu0
      %v763 = vadd.f32 %v393, %v762
      %764 = vdwg.mxu0
      %v765 = vsub.f32 0.0, %v607
      %v766 = vsub.f32 0.0, %v609
      %v767 = vsub.f32 0.0, %v611
      %v768 = vsub.f32 0.0, %v613
      %v769 = vsub.f32 0.0, %v617
      %v770 = vsub.f32 0.0, %v619
      %v771 = vsub.f32 0.0, %v621
      %v772 = vsub.f32 0.0, %v623
      %v773 = vsub.f32 0.0, %v627
      %v774 = vsub.f32 0.0, %v629
      %v775 = vsub.f32 0.0, %v631
      %v776 = vsub.f32 0.0, %v633
      %v777 = vsub.f32 0.0, %v637
      %v778 = vsub.f32 0.0, %v639
      %v779 = vsub.f32 0.0, %v641
      %v780 = vsub.f32 0.0, %v643
      %v781 = vsub.f32 0.0, %v647
      %v782 = vsub.f32 0.0, %v649
      %v783 = vsub.f32 0.0, %v651
      %v784 = vsub.f32 0.0, %v653
      %v785 = vsub.f32 0.0, %v657
      %v786 = vsub.f32 0.0, %v659
      %v787 = vsub.f32 0.0, %v661
      %v788 = vsub.f32 0.0, %v663
      %v789 = vsub.f32 0.0, %v667
      %v790 = vsub.f32 0.0, %v669
      %v791 = vsub.f32 0.0, %v671
      %v792 = vsub.f32 0.0, %v673
      %v793 = vsub.f32 0.0, %v677
      %v794 = vsub.f32 0.0, %v679
      %v795 = vsub.f32 0.0, %v681
      %v796 = vsub.f32 0.0, %v683
      %v797 = vsub.f32 0.0, %v687
      %v798 = vsub.f32 0.0, %v689
      %v799 = vsub.f32 0.0, %v691
      %v800 = vsub.f32 0.0, %v693
      %v801 = vsub.f32 0.0, %v697
      %v802 = vsub.f32 0.0, %v699
      %v803 = vsub.f32 0.0, %v701
      %v804 = vsub.f32 0.0, %v703
      %v805 = vsub.f32 0.0, %v707
      %v806 = vsub.f32 0.0, %v709
      %v807 = vsub.f32 0.0, %v711
      %v808 = vsub.f32 0.0, %v713
      %v809 = vsub.f32 0.0, %v717
      %v810 = vsub.f32 0.0, %v719
      %v811 = vsub.f32 0.0, %v721
      %v812 = vsub.f32 0.0, %v723
      %v813 = vsub.f32 0.0, %v727
      %v814 = vsub.f32 0.0, %v729
      %v815 = vsub.f32 0.0, %v731
      %v816 = vsub.f32 0.0, %v733
      %v817 = vsub.f32 0.0, %v737
      %v818 = vsub.f32 0.0, %v739
      %v819 = vsub.f32 0.0, %v741
      %v820 = vsub.f32 0.0, %v743
      %v821 = vsub.f32 0.0, %v747
      %v822 = vsub.f32 0.0, %v749
      %v823 = vsub.f32 0.0, %v751
      %v824 = vsub.f32 0.0, %v753
      %v825 = vsub.f32 0.0, %v757
      %v826 = vsub.f32 0.0, %v759
      %v827 = vsub.f32 0.0, %v761
      %v828 = vsub.f32 0.0, %v763
      %v829 = vmul.f32 %v765, 1.442695
      %v830 = vpow.pop %v829
      %v831 = vmul.f32 %v766, 1.442695
      %v832 = vpow.pop %v831
      %v833 = vmul.f32 %v767, 1.442695
      %v834 = vpow.pop %v833
      %v835 = vmul.f32 %v768, 1.442695
      %v836 = vpow.pop %v835
      %v837 = vmul.f32 %v769, 1.442695
      %v838 = vpow.pop %v837
      %v839 = vmul.f32 %v770, 1.442695
      %v840 = vpow.pop %v839
      %v841 = vmul.f32 %v771, 1.442695
      %v842 = vpow.pop %v841
      %v843 = vmul.f32 %v772, 1.442695
      %v844 = vpow.pop %v843
      %v845 = vmul.f32 %v773, 1.442695
      %v846 = vpow.pop %v845
      %v847 = vmul.f32 %v774, 1.442695
      %v848 = vpow.pop %v847
      %v849 = vmul.f32 %v775, 1.442695
      %v850 = vpow.pop %v849
      %v851 = vmul.f32 %v776, 1.442695
      %v852 = vpow.pop %v851
      %v853 = vmul.f32 %v777, 1.442695
      %v854 = vpow.pop %v853
      %v855 = vmul.f32 %v778, 1.442695
      %v856 = vpow.pop %v855
      %v857 = vmul.f32 %v779, 1.442695
      %v858 = vpow.pop %v857
      %v859 = vmul.f32 %v780, 1.442695
      %v860 = vpow.pop %v859
      %v861 = vmul.f32 %v781, 1.442695
      %v862 = vpow.pop %v861
      %v863 = vmul.f32 %v782, 1.442695
      %v864 = vpow.pop %v863
      %v865 = vmul.f32 %v783, 1.442695
      %v866 = vpow.pop %v865
      %v867 = vmul.f32 %v784, 1.442695
      %v868 = vpow.pop %v867
      %v869 = vmul.f32 %v785, 1.442695
      %v870 = vpow.pop %v869
      %v871 = vmul.f32 %v786, 1.442695
      %v872 = vpow.pop %v871
      %v873 = vmul.f32 %v787, 1.442695
      %v874 = vpow.pop %v873
      %v875 = vmul.f32 %v788, 1.442695
      %v876 = vpow.pop %v875
      %v877 = vmul.f32 %v789, 1.442695
      %v878 = vpow.pop %v877
      %v879 = vmul.f32 %v790, 1.442695
      %v880 = vpow.pop %v879
      %v881 = vmul.f32 %v791, 1.442695
      %v882 = vpow.pop %v881
      %v883 = vmul.f32 %v792, 1.442695
      %v884 = vpow.pop %v883
      %v885 = vmul.f32 %v793, 1.442695
      %v886 = vpow.pop %v885
      %v887 = vmul.f32 %v794, 1.442695
      %v888 = vpow.pop %v887
      %v889 = vmul.f32 %v795, 1.442695
      %v890 = vpow.pop %v889
      %v891 = vmul.f32 %v796, 1.442695
      %v892 = vpow.pop %v891
      %v893 = vmul.f32 %v797, 1.442695
      %v894 = vpow.pop %v893
      %v895 = vmul.f32 %v798, 1.442695
      %v896 = vpow.pop %v895
      %v897 = vmul.f32 %v799, 1.442695
      %v898 = vpow.pop %v897
      %v899 = vmul.f32 %v800, 1.442695
      %v900 = vpow.pop %v899
      %v901 = vmul.f32 %v801, 1.442695
      %v902 = vpow.pop %v901
      %v903 = vmul.f32 %v802, 1.442695
      %v904 = vpow.pop %v903
      %v905 = vmul.f32 %v803, 1.442695
      %v906 = vpow.pop %v905
      %v907 = vmul.f32 %v804, 1.442695
      %v908 = vpow.pop %v907
      %v909 = vmul.f32 %v805, 1.442695
      %v910 = vpow.pop %v909
      %v911 = vmul.f32 %v806, 1.442695
      %v912 = vpow.pop %v911
      %v913 = vmul.f32 %v807, 1.442695
      %v914 = vpow.pop %v913
      %v915 = vmul.f32 %v808, 1.442695
      %v916 = vpow.pop %v915
      %v917 = vmul.f32 %v809, 1.442695
      %v918 = vpow.pop %v917
      %v919 = vmul.f32 %v810, 1.442695
      %v920 = vpow.pop %v919
      %v921 = vmul.f32 %v811, 1.442695
      %v922 = vpow.pop %v921
      %v923 = vmul.f32 %v812, 1.442695
      %v924 = vpow.pop %v923
      %v925 = vmul.f32 %v813, 1.442695
      %v926 = vpow.pop %v925
      %v927 = vmul.f32 %v814, 1.442695
      %v928 = vpow.pop %v927
      %v929 = vmul.f32 %v815, 1.442695
      %v930 = vpow.pop %v929
      %v931 = vmul.f32 %v816, 1.442695
      %v932 = vpow.pop %v931
      %v933 = vmul.f32 %v817, 1.442695
      %v934 = vpow.pop %v933
      %v935 = vmul.f32 %v818, 1.442695
      %v936 = vpow.pop %v935
      %v937 = vmul.f32 %v819, 1.442695
      %v938 = vpow.pop %v937
      %v939 = vmul.f32 %v820, 1.442695
      %v940 = vpow.pop %v939
      %v941 = vmul.f32 %v821, 1.442695
      %v942 = vpow.pop %v941
      %v943 = vmul.f32 %v822, 1.442695
      %v944 = vpow.pop %v943
      %v945 = vmul.f32 %v823, 1.442695
      %v946 = vpow.pop %v945
      %v947 = vmul.f32 %v824, 1.442695
      %v948 = vpow.pop %v947
      %v949 = vmul.f32 %v825, 1.442695
      %v950 = vpow.pop %v949
      %v951 = vmul.f32 %v826, 1.442695
      %v952 = vpow.pop %v951
      %v953 = vmul.f32 %v827, 1.442695
      %v954 = vpow.pop %v953
      %v955 = vmul.f32 %v828, 1.442695
      %v956 = vpow.pop %v955
      %v957 = vadd.f32 %v830, 1.0
      %v958 = vadd.f32 %v832, 1.0
      %v959 = vadd.f32 %v834, 1.0
      %v960 = vadd.f32 %v836, 1.0
      %v961 = vadd.f32 %v838, 1.0
      %v962 = vadd.f32 %v840, 1.0
      %v963 = vadd.f32 %v842, 1.0
      %v964 = vadd.f32 %v844, 1.0
      %v965 = vadd.f32 %v846, 1.0
      %v966 = vadd.f32 %v848, 1.0
      %v967 = vadd.f32 %v850, 1.0
      %v968 = vadd.f32 %v852, 1.0
      %v969 = vadd.f32 %v854, 1.0
      %v970 = vadd.f32 %v856, 1.0
      %v971 = vadd.f32 %v858, 1.0
      %v972 = vadd.f32 %v860, 1.0
      %v973 = vadd.f32 %v862, 1.0
      %v974 = vadd.f32 %v864, 1.0
      %v975 = vadd.f32 %v866, 1.0
      %v976 = vadd.f32 %v868, 1.0
      %v977 = vadd.f32 %v870, 1.0
      %v978 = vadd.f32 %v872, 1.0
      %v979 = vadd.f32 %v874, 1.0
      %v980 = vadd.f32 %v876, 1.0
      %v981 = vadd.f32 %v878, 1.0
      %v982 = vadd.f32 %v880, 1.0
      %v983 = vadd.f32 %v882, 1.0
      %v984 = vadd.f32 %v884, 1.0
      %v985 = vadd.f32 %v886, 1.0
      %v986 = vadd.f32 %v888, 1.0
      %v987 = vadd.f32 %v890, 1.0
      %v988 = vadd.f32 %v892, 1.0
      %v989 = vadd.f32 %v894, 1.0
      %v990 = vadd.f32 %v896, 1.0
      %v991 = vadd.f32 %v898, 1.0
      %v992 = vadd.f32 %v900, 1.0
      %v993 = vadd.f32 %v902, 1.0
      %v994 = vadd.f32 %v904, 1.0
      %v995 = vadd.f32 %v906, 1.0
      %v996 = vadd.f32 %v908, 1.0
      %v997 = vadd.f32 %v910, 1.0
      %v998 = vadd.f32 %v912, 1.0
      %v999 = vadd.f32 %v914, 1.0
      %v1000 = vadd.f32 %v916, 1.0
      %v1001 = vadd.f32 %v918, 1.0
      %v1002 = vadd.f32 %v920, 1.0
      %v1003 = vadd.f32 %v922, 1.0
      %v1004 = vadd.f32 %v924, 1.0
      %v1005 = vadd.f32 %v926, 1.0
      %v1006 = vadd.f32 %v928, 1.0
      %v1007 = vadd.f32 %v930, 1.0
      %v1008 = vadd.f32 %v932, 1.0
      %v1009 = vadd.f32 %v934, 1.0
      %v1010 = vadd.f32 %v936, 1.0
      %v1011 = vadd.f32 %v938, 1.0
      %v1012 = vadd.f32 %v940, 1.0
      %v1013 = vadd.f32 %v942, 1.0
      %v1014 = vadd.f32 %v944, 1.0
      %v1015 = vadd.f32 %v946, 1.0
      %v1016 = vadd.f32 %v948, 1.0
      %v1017 = vadd.f32 %v950, 1.0
      %v1018 = vadd.f32 %v952, 1.0
      %v1019 = vadd.f32 %v954, 1.0
      %v1020 = vadd.f32 %v956, 1.0
      %v1021 = vrcp.pop %v957
      %v1022 = vrcp.pop %v958
      %v1023 = vrcp.pop %v959
      %v1024 = vrcp.pop %v960
      %v1025 = vrcp.pop %v961
      %v1026 = vrcp.pop %v962
      %v1027 = vrcp.pop %v963
      %v1028 = vrcp.pop %v964
      %v1029 = vrcp.pop %v965
      %v1030 = vrcp.pop %v966
      %v1031 = vrcp.pop %v967
      %v1032 = vrcp.pop %v968
      %v1033 = vrcp.pop %v969
      %v1034 = vrcp.pop %v970
      %v1035 = vrcp.pop %v971
      %v1036 = vrcp.pop %v972
      %v1037 = vrcp.pop %v973
      %v1038 = vrcp.pop %v974
      %v1039 = vrcp.pop %v975
      %v1040 = vrcp.pop %v976
      %v1041 = vrcp.pop %v977
      %v1042 = vrcp.pop %v978
      %v1043 = vrcp.pop %v979
      %v1044 = vrcp.pop %v980
      %v1045 = vrcp.pop %v981
      %v1046 = vrcp.pop %v982
      %v1047 = vrcp.pop %v983
      %v1048 = vrcp.pop %v984
      %v1049 = vrcp.pop %v985
      %v1050 = vrcp.pop %v986
      %v1051 = vrcp.pop %v987
      %v1052 = vrcp.pop %v988
      %v1053 = vrcp.pop %v989
      %v1054 = vrcp.pop %v990
      %v1055 = vrcp.pop %v991
      %v1056 = vrcp.pop %v992
      %v1057 = vrcp.pop %v993
      %v1058 = vrcp.pop %v994
      %v1059 = vrcp.pop %v995
      %v1060 = vrcp.pop %v996
      %v1061 = vrcp.pop %v997
      %v1062 = vrcp.pop %v998
      %v1063 = vrcp.pop %v999
      %v1064 = vrcp.pop %v1000
      %v1065 = vrcp.pop %v1001
      %v1066 = vrcp.pop %v1002
      %v1067 = vrcp.pop %v1003
      %v1068 = vrcp.pop %v1004
      %v1069 = vrcp.pop %v1005
      %v1070 = vrcp.pop %v1006
      %v1071 = vrcp.pop %v1007
      %v1072 = vrcp.pop %v1008
      %v1073 = vrcp.pop %v1009
      %v1074 = vrcp.pop %v1010
      %v1075 = vrcp.pop %v1011
      %v1076 = vrcp.pop %v1012
      %v1077 = vrcp.pop %v1013
      %v1078 = vrcp.pop %v1014
      %v1079 = vrcp.pop %v1015
      %v1080 = vrcp.pop %v1016
      %v1081 = vrcp.pop %v1017
      %v1082 = vrcp.pop %v1018
      %v1083 = vrcp.pop %v1019
      %v1084 = vrcp.pop %v1020
      %v1085 = vmul.f32 %v607, %v1021
      %v1086 = vmul.f32 %v609, %v1022
      %v1087 = vmul.f32 %v611, %v1023
      %v1088 = vmul.f32 %v613, %v1024
      %v1089 = vmul.f32 %v617, %v1025
      %v1090 = vmul.f32 %v619, %v1026
      %v1091 = vmul.f32 %v621, %v1027
      %v1092 = vmul.f32 %v623, %v1028
      %v1093 = vmul.f32 %v627, %v1029
      %v1094 = vmul.f32 %v629, %v1030
      %v1095 = vmul.f32 %v631, %v1031
      %v1096 = vmul.f32 %v633, %v1032
      %v1097 = vmul.f32 %v637, %v1033
      %v1098 = vmul.f32 %v639, %v1034
      %v1099 = vmul.f32 %v641, %v1035
      %v1100 = vmul.f32 %v643, %v1036
      %v1101 = vmul.f32 %v647, %v1037
      %v1102 = vmul.f32 %v649, %v1038
      %v1103 = vmul.f32 %v651, %v1039
      %v1104 = vmul.f32 %v653, %v1040
      %v1105 = vmul.f32 %v657, %v1041
      %v1106 = vmul.f32 %v659, %v1042
      %v1107 = vmul.f32 %v661, %v1043
      %v1108 = vmul.f32 %v663, %v1044
      %v1109 = vmul.f32 %v667, %v1045
      %v1110 = vmul.f32 %v669, %v1046
      %v1111 = vmul.f32 %v671, %v1047
      %v1112 = vmul.f32 %v673, %v1048
      %v1113 = vmul.f32 %v677, %v1049
      %v1114 = vmul.f32 %v679, %v1050
      %v1115 = vmul.f32 %v681, %v1051
      %v1116 = vmul.f32 %v683, %v1052
      %v1117 = vmul.f32 %v687, %v1053
      %v1118 = vmul.f32 %v689, %v1054
      %v1119 = vmul.f32 %v691, %v1055
      %v1120 = vmul.f32 %v693, %v1056
      %v1121 = vmul.f32 %v697, %v1057
      %v1122 = vmul.f32 %v699, %v1058
      %v1123 = vmul.f32 %v701, %v1059
      %v1124 = vmul.f32 %v703, %v1060
      %v1125 = vmul.f32 %v707, %v1061
      %v1126 = vmul.f32 %v709, %v1062
      %v1127 = vmul.f32 %v711, %v1063
      %v1128 = vmul.f32 %v713, %v1064
      %v1129 = vmul.f32 %v717, %v1065
      %v1130 = vmul.f32 %v719, %v1066
      %v1131 = vmul.f32 %v721, %v1067
      %v1132 = vmul.f32 %v723, %v1068
      %v1133 = vmul.f32 %v727, %v1069
      %v1134 = vmul.f32 %v729, %v1070
      %v1135 = vmul.f32 %v731, %v1071
      %v1136 = vmul.f32 %v733, %v1072
      %v1137 = vmul.f32 %v737, %v1073
      %v1138 = vmul.f32 %v739, %v1074
      %v1139 = vmul.f32 %v741, %v1075
      %v1140 = vmul.f32 %v743, %v1076
      %v1141 = vmul.f32 %v747, %v1077
      %v1142 = vmul.f32 %v749, %v1078
      %v1143 = vmul.f32 %v751, %v1079
      %v1144 = vmul.f32 %v753, %v1080
      %v1145 = vmul.f32 %v757, %v1081
      %v1146 = vmul.f32 %v759, %v1082
      %v1147 = vmul.f32 %v761, %v1083
      %v1148 = vmul.f32 %v763, %v1084
      %v1149 = vpack.c.bf16 %v1087, %v1085
      %v1150 = vpack.c.bf16 %v1091, %v1089
      %v1151 = vpack.c.bf16 %v1095, %v1093
      %v1152 = vpack.c.bf16 %v1099, %v1097
      %v1153 = vpack.c.bf16 %v1103, %v1101
      %v1154 = vpack.c.bf16 %v1107, %v1105
      %v1155 = vpack.c.bf16 %v1111, %v1109
      %v1156 = vpack.c.bf16 %v1115, %v1113
      %v1157 = vpack.c.bf16 %v1119, %v1117
      %v1158 = vpack.c.bf16 %v1123, %v1121
      %v1159 = vpack.c.bf16 %v1127, %v1125
      %v1160 = vpack.c.bf16 %v1131, %v1129
      %v1161 = vpack.c.bf16 %v1135, %v1133
      %v1162 = vpack.c.bf16 %v1139, %v1137
      %v1163 = vpack.c.bf16 %v1143, %v1141
      %v1164 = vpack.c.bf16 %v1147, %v1145
      %v1165 = vpack.c.bf16 %v1088, %v1086
      %v1166 = vpack.c.bf16 %v1092, %v1090
      %v1167 = vpack.c.bf16 %v1096, %v1094
      %v1168 = vpack.c.bf16 %v1100, %v1098
      %v1169 = vpack.c.bf16 %v1104, %v1102
      %v1170 = vpack.c.bf16 %v1108, %v1106
      %v1171 = vpack.c.bf16 %v1112, %v1110
      %v1172 = vpack.c.bf16 %v1116, %v1114
      %v1173 = vpack.c.bf16 %v1120, %v1118
      %v1174 = vpack.c.bf16 %v1124, %v1122
      %v1175 = vpack.c.bf16 %v1128, %v1126
      %v1176 = vpack.c.bf16 %v1132, %v1130
      %v1177 = vpack.c.bf16 %v1136, %v1134
      %v1178 = vpack.c.bf16 %v1140, %v1138
      %v1179 = vpack.c.bf16 %v1144, %v1142
      %v1180 = vpack.c.bf16 %v1148, %v1146
      %v1181 = vlaneseq
      %v1182 = vshrl.u32 %v1181, 7
      %v1183 = vadd.s32 %v1182, 8
      %v1184 = vadd.s32 %v1182, 16
      %v1185 = vadd.s32 %v1182, 24
      %v1186 = vadd.s32 %v1182, 32
      %v1187 = vadd.s32 %v1182, 40
      %v1188 = vadd.s32 %v1182, 48
      %v1189 = vadd.s32 %v1182, 56
      %v1190 = vadd.s32 %v1182, 64
      %v1191 = vadd.s32 %v1182, 72
      %v1192 = vadd.s32 %v1182, 80
      %v1193 = vadd.s32 %v1182, 88
      %v1194 = vadd.s32 %v1182, 96
      %v1195 = vadd.s32 %v1182, 104
      %v1196 = vadd.s32 %v1182, 112
      %v1197 = vadd.s32 %v1182, 120
      %v1198 = vadd.s32 %v1182, 128
      %v1199 = vadd.s32 %v1182, 136
      %v1200 = vadd.s32 %v1182, 144
      %v1201 = vadd.s32 %v1182, 152
      %v1202 = vadd.s32 %v1182, 160
      %v1203 = vadd.s32 %v1182, 168
      %v1204 = vadd.s32 %v1182, 176
      %v1205 = vadd.s32 %v1182, 184
      %v1206 = vadd.s32 %v1182, 192
      %v1207 = vadd.s32 %v1182, 200
      %v1208 = vadd.s32 %v1182, 208
      %v1209 = vadd.s32 %v1182, 216
      %v1210 = vadd.s32 %v1182, 224
      %v1211 = vadd.s32 %v1182, 232
      %v1212 = vadd.s32 %v1182, 240
      %v1213 = vadd.s32 %v1182, 248
      %vm1214 = vcmp.lt.s32.totalorder %v1182, 0
      %v1215 = vsub.s32 0, %v1182
      %v1216 = vsel %vm1214, %v1215, %v1182
      %v1217 = vshrl.u32 %v1216, 4
      %v1218 = vand.u32 %v1216, 15
      %v1219 = vsub.s32 0, %v1218
      %v1220 = vsel %vm1214, %v1219, %v1218
      %vm1221 = vcmp.lt.s32.totalorder %v1183, 0
      %v1222 = vsub.s32 0, %v1183
      %v1223 = vsel %vm1221, %v1222, %v1183
      %v1224 = vshrl.u32 %v1223, 4
      %v1225 = vand.u32 %v1223, 15
      %v1226 = vsub.s32 0, %v1225
      %v1227 = vsel %vm1221, %v1226, %v1225
      %vm1228 = vcmp.lt.s32.totalorder %v1184, 0
      %v1229 = vsub.s32 0, %v1184
      %v1230 = vsel %vm1228, %v1229, %v1184
      %v1231 = vshrl.u32 %v1230, 4
      %v1232 = vand.u32 %v1230, 15
      %v1233 = vsub.s32 0, %v1232
      %v1234 = vsel %vm1228, %v1233, %v1232
      %vm1235 = vcmp.lt.s32.totalorder %v1185, 0
      %v1236 = vsub.s32 0, %v1185
      %v1237 = vsel %vm1235, %v1236, %v1185
      %v1238 = vshrl.u32 %v1237, 4
      %v1239 = vand.u32 %v1237, 15
      %v1240 = vsub.s32 0, %v1239
      %v1241 = vsel %vm1235, %v1240, %v1239
      %vm1242 = vcmp.lt.s32.totalorder %v1186, 0
      %v1243 = vsub.s32 0, %v1186
      %v1244 = vsel %vm1242, %v1243, %v1186
      %v1245 = vshrl.u32 %v1244, 4
      %v1246 = vand.u32 %v1244, 15
      %v1247 = vsub.s32 0, %v1246
      %v1248 = vsel %vm1242, %v1247, %v1246
      %vm1249 = vcmp.lt.s32.totalorder %v1187, 0
      %v1250 = vsub.s32 0, %v1187
      %v1251 = vsel %vm1249, %v1250, %v1187
      %v1252 = vshrl.u32 %v1251, 4
      %v1253 = vand.u32 %v1251, 15
      %v1254 = vsub.s32 0, %v1253
      %v1255 = vsel %vm1249, %v1254, %v1253
      %vm1256 = vcmp.lt.s32.totalorder %v1188, 0
      %v1257 = vsub.s32 0, %v1188
      %v1258 = vsel %vm1256, %v1257, %v1188
      %v1259 = vshrl.u32 %v1258, 4
      %v1260 = vand.u32 %v1258, 15
      %v1261 = vsub.s32 0, %v1260
      %v1262 = vsel %vm1256, %v1261, %v1260
      %vm1263 = vcmp.lt.s32.totalorder %v1189, 0
      %v1264 = vsub.s32 0, %v1189
      %v1265 = vsel %vm1263, %v1264, %v1189
      %v1266 = vshrl.u32 %v1265, 4
      %v1267 = vand.u32 %v1265, 15
      %v1268 = vsub.s32 0, %v1267
      %v1269 = vsel %vm1263, %v1268, %v1267
      %vm1270 = vcmp.lt.s32.totalorder %v1190, 0
      %v1271 = vsub.s32 0, %v1190
      %v1272 = vsel %vm1270, %v1271, %v1190
      %v1273 = vshrl.u32 %v1272, 4
      %v1274 = vand.u32 %v1272, 15
      %v1275 = vsub.s32 0, %v1274
      %v1276 = vsel %vm1270, %v1275, %v1274
      %vm1277 = vcmp.lt.s32.totalorder %v1191, 0
      %v1278 = vsub.s32 0, %v1191
      %v1279 = vsel %vm1277, %v1278, %v1191
      %v1280 = vshrl.u32 %v1279, 4
      %v1281 = vand.u32 %v1279, 15
      %v1282 = vsub.s32 0, %v1281
      %v1283 = vsel %vm1277, %v1282, %v1281
      %vm1284 = vcmp.lt.s32.totalorder %v1192, 0
      %v1285 = vsub.s32 0, %v1192
      %v1286 = vsel %vm1284, %v1285, %v1192
      %v1287 = vshrl.u32 %v1286, 4
      %v1288 = vand.u32 %v1286, 15
      %v1289 = vsub.s32 0, %v1288
      %v1290 = vsel %vm1284, %v1289, %v1288
      %vm1291 = vcmp.lt.s32.totalorder %v1193, 0
      %v1292 = vsub.s32 0, %v1193
      %v1293 = vsel %vm1291, %v1292, %v1193
      %v1294 = vshrl.u32 %v1293, 4
      %v1295 = vand.u32 %v1293, 15
      %v1296 = vsub.s32 0, %v1295
      %v1297 = vsel %vm1291, %v1296, %v1295
      %vm1298 = vcmp.lt.s32.totalorder %v1194, 0
      %v1299 = vsub.s32 0, %v1194
      %v1300 = vsel %vm1298, %v1299, %v1194
      %v1301 = vshrl.u32 %v1300, 4
      %v1302 = vand.u32 %v1300, 15
      %v1303 = vsub.s32 0, %v1302
      %v1304 = vsel %vm1298, %v1303, %v1302
      %vm1305 = vcmp.lt.s32.totalorder %v1195, 0
      %v1306 = vsub.s32 0, %v1195
      %v1307 = vsel %vm1305, %v1306, %v1195
      %v1308 = vshrl.u32 %v1307, 4
      %v1309 = vand.u32 %v1307, 15
      %v1310 = vsub.s32 0, %v1309
      %v1311 = vsel %vm1305, %v1310, %v1309
      %vm1312 = vcmp.lt.s32.totalorder %v1196, 0
      %v1313 = vsub.s32 0, %v1196
      %v1314 = vsel %vm1312, %v1313, %v1196
      %v1315 = vshrl.u32 %v1314, 4
      %v1316 = vand.u32 %v1314, 15
      %v1317 = vsub.s32 0, %v1316
      %v1318 = vsel %vm1312, %v1317, %v1316
      %vm1319 = vcmp.lt.s32.totalorder %v1197, 0
      %v1320 = vsub.s32 0, %v1197
      %v1321 = vsel %vm1319, %v1320, %v1197
      %v1322 = vshrl.u32 %v1321, 4
      %v1323 = vand.u32 %v1321, 15
      %v1324 = vsub.s32 0, %v1323
      %v1325 = vsel %vm1319, %v1324, %v1323
      %vm1326 = vcmp.lt.s32.totalorder %v1198, 0
      %v1327 = vsub.s32 0, %v1198
      %v1328 = vsel %vm1326, %v1327, %v1198
      %v1329 = vshrl.u32 %v1328, 4
      %v1330 = vand.u32 %v1328, 15
      %v1331 = vsub.s32 0, %v1330
      %v1332 = vsel %vm1326, %v1331, %v1330
      %vm1333 = vcmp.lt.s32.totalorder %v1199, 0
      %v1334 = vsub.s32 0, %v1199
      %v1335 = vsel %vm1333, %v1334, %v1199
      %v1336 = vshrl.u32 %v1335, 4
      %v1337 = vand.u32 %v1335, 15
      %v1338 = vsub.s32 0, %v1337
      %v1339 = vsel %vm1333, %v1338, %v1337
      %vm1340 = vcmp.lt.s32.totalorder %v1200, 0
      %v1341 = vsub.s32 0, %v1200
      %v1342 = vsel %vm1340, %v1341, %v1200
      %v1343 = vshrl.u32 %v1342, 4
      %v1344 = vand.u32 %v1342, 15
      %v1345 = vsub.s32 0, %v1344
      %v1346 = vsel %vm1340, %v1345, %v1344
      %vm1347 = vcmp.lt.s32.totalorder %v1201, 0
      %v1348 = vsub.s32 0, %v1201
      %v1349 = vsel %vm1347, %v1348, %v1201
      %v1350 = vshrl.u32 %v1349, 4
      %v1351 = vand.u32 %v1349, 15
      %v1352 = vsub.s32 0, %v1351
      %v1353 = vsel %vm1347, %v1352, %v1351
      %vm1354 = vcmp.lt.s32.totalorder %v1202, 0
      %v1355 = vsub.s32 0, %v1202
      %v1356 = vsel %vm1354, %v1355, %v1202
      %v1357 = vshrl.u32 %v1356, 4
      %v1358 = vand.u32 %v1356, 15
      %v1359 = vsub.s32 0, %v1358
      %v1360 = vsel %vm1354, %v1359, %v1358
      %vm1361 = vcmp.lt.s32.totalorder %v1203, 0
      %v1362 = vsub.s32 0, %v1203
      %v1363 = vsel %vm1361, %v1362, %v1203
      %v1364 = vshrl.u32 %v1363, 4
      %v1365 = vand.u32 %v1363, 15
      %v1366 = vsub.s32 0, %v1365
      %v1367 = vsel %vm1361, %v1366, %v1365
      %vm1368 = vcmp.lt.s32.totalorder %v1204, 0
      %v1369 = vsub.s32 0, %v1204
      %v1370 = vsel %vm1368, %v1369, %v1204
      %v1371 = vshrl.u32 %v1370, 4
      %v1372 = vand.u32 %v1370, 15
      %v1373 = vsub.s32 0, %v1372
      %v1374 = vsel %vm1368, %v1373, %v1372
      %vm1375 = vcmp.lt.s32.totalorder %v1205, 0
      %v1376 = vsub.s32 0, %v1205
      %v1377 = vsel %vm1375, %v1376, %v1205
      %v1378 = vshrl.u32 %v1377, 4
      %v1379 = vand.u32 %v1377, 15
      %v1380 = vsub.s32 0, %v1379
      %v1381 = vsel %vm1375, %v1380, %v1379
      %vm1382 = vcmp.lt.s32.totalorder %v1206, 0
      %v1383 = vsub.s32 0, %v1206
      %v1384 = vsel %vm1382, %v1383, %v1206
      %v1385 = vshrl.u32 %v1384, 4
      %v1386 = vand.u32 %v1384, 15
      %v1387 = vsub.s32 0, %v1386
      %v1388 = vsel %vm1382, %v1387, %v1386
      %vm1389 = vcmp.lt.s32.totalorder %v1207, 0
      %v1390 = vsub.s32 0, %v1207
      %v1391 = vsel %vm1389, %v1390, %v1207
      %v1392 = vshrl.u32 %v1391, 4
      %v1393 = vand.u32 %v1391, 15
      %v1394 = vsub.s32 0, %v1393
      %v1395 = vsel %vm1389, %v1394, %v1393
      %vm1396 = vcmp.lt.s32.totalorder %v1208, 0
      %v1397 = vsub.s32 0, %v1208
      %v1398 = vsel %vm1396, %v1397, %v1208
      %v1399 = vshrl.u32 %v1398, 4
      %v1400 = vand.u32 %v1398, 15
      %v1401 = vsub.s32 0, %v1400
      %v1402 = vsel %vm1396, %v1401, %v1400
      %vm1403 = vcmp.lt.s32.totalorder %v1209, 0
      %v1404 = vsub.s32 0, %v1209
      %v1405 = vsel %vm1403, %v1404, %v1209
      %v1406 = vshrl.u32 %v1405, 4
      %v1407 = vand.u32 %v1405, 15
      %v1408 = vsub.s32 0, %v1407
      %v1409 = vsel %vm1403, %v1408, %v1407
      %vm1410 = vcmp.lt.s32.totalorder %v1210, 0
      %v1411 = vsub.s32 0, %v1210
      %v1412 = vsel %vm1410, %v1411, %v1210
      %v1413 = vshrl.u32 %v1412, 4
      %v1414 = vand.u32 %v1412, 15
      %v1415 = vsub.s32 0, %v1414
      %v1416 = vsel %vm1410, %v1415, %v1414
      %vm1417 = vcmp.lt.s32.totalorder %v1211, 0
      %v1418 = vsub.s32 0, %v1211
      %v1419 = vsel %vm1417, %v1418, %v1211
      %v1420 = vshrl.u32 %v1419, 4
      %v1421 = vand.u32 %v1419, 15
      %v1422 = vsub.s32 0, %v1421
      %v1423 = vsel %vm1417, %v1422, %v1421
      %vm1424 = vcmp.lt.s32.totalorder %v1212, 0
      %v1425 = vsub.s32 0, %v1212
      %v1426 = vsel %vm1424, %v1425, %v1212
      %v1427 = vshrl.u32 %v1426, 4
      %v1428 = vand.u32 %v1426, 15
      %v1429 = vsub.s32 0, %v1428
      %v1430 = vsel %vm1424, %v1429, %v1428
      %vm1431 = vcmp.lt.s32.totalorder %v1213, 0
      %v1432 = vsub.s32 0, %v1213
      %v1433 = vsel %vm1431, %v1432, %v1213
      %v1434 = vshrl.u32 %v1433, 4
      %v1435 = vand.u32 %v1433, 15
      %v1436 = vsub.s32 0, %v1435
      %v1437 = vsel %vm1431, %v1436, %v1435
      %vm1438 = vcmp.ne.s32.totalorder %v1220, 0
      %vm1439 = vcmp.ne.s32.totalorder %v1227, 0
      %vm1440 = vcmp.ne.s32.totalorder %v1234, 0
      %vm1441 = vcmp.ne.s32.totalorder %v1241, 0
      %vm1442 = vcmp.ne.s32.totalorder %v1248, 0
      %vm1443 = vcmp.ne.s32.totalorder %v1255, 0
      %vm1444 = vcmp.ne.s32.totalorder %v1262, 0
      %vm1445 = vcmp.ne.s32.totalorder %v1269, 0
      %vm1446 = vcmp.ne.s32.totalorder %v1276, 0
      %vm1447 = vcmp.ne.s32.totalorder %v1283, 0
      %vm1448 = vcmp.ne.s32.totalorder %v1290, 0
      %vm1449 = vcmp.ne.s32.totalorder %v1297, 0
      %vm1450 = vcmp.ne.s32.totalorder %v1304, 0
      %vm1451 = vcmp.ne.s32.totalorder %v1311, 0
      %vm1452 = vcmp.ne.s32.totalorder %v1318, 0
      %vm1453 = vcmp.ne.s32.totalorder %v1325, 0
      %vm1454 = vcmp.ne.s32.totalorder %v1332, 0
      %vm1455 = vcmp.ne.s32.totalorder %v1339, 0
      %vm1456 = vcmp.ne.s32.totalorder %v1346, 0
      %vm1457 = vcmp.ne.s32.totalorder %v1353, 0
      %vm1458 = vcmp.ne.s32.totalorder %v1360, 0
      %vm1459 = vcmp.ne.s32.totalorder %v1367, 0
      %vm1460 = vcmp.ne.s32.totalorder %v1374, 0
      %vm1461 = vcmp.ne.s32.totalorder %v1381, 0
      %vm1462 = vcmp.ne.s32.totalorder %v1388, 0
      %vm1463 = vcmp.ne.s32.totalorder %v1395, 0
      %vm1464 = vcmp.ne.s32.totalorder %v1402, 0
      %vm1465 = vcmp.ne.s32.totalorder %v1409, 0
      %vm1466 = vcmp.ne.s32.totalorder %v1416, 0
      %vm1467 = vcmp.ne.s32.totalorder %v1423, 0
      %vm1468 = vcmp.ne.s32.totalorder %v1430, 0
      %vm1469 = vcmp.ne.s32.totalorder %v1437, 0
      %vm1470 = vcmp.lt.s32.totalorder %v1220, 0
      %vm1471 = vcmp.lt.s32.totalorder %v1227, 0
      %vm1472 = vcmp.lt.s32.totalorder %v1234, 0
      %vm1473 = vcmp.lt.s32.totalorder %v1241, 0
      %vm1474 = vcmp.lt.s32.totalorder %v1248, 0
      %vm1475 = vcmp.lt.s32.totalorder %v1255, 0
      %vm1476 = vcmp.lt.s32.totalorder %v1262, 0
      %vm1477 = vcmp.lt.s32.totalorder %v1269, 0
      %vm1478 = vcmp.lt.s32.totalorder %v1276, 0
      %vm1479 = vcmp.lt.s32.totalorder %v1283, 0
      %vm1480 = vcmp.lt.s32.totalorder %v1290, 0
      %vm1481 = vcmp.lt.s32.totalorder %v1297, 0
      %vm1482 = vcmp.lt.s32.totalorder %v1304, 0
      %vm1483 = vcmp.lt.s32.totalorder %v1311, 0
      %vm1484 = vcmp.lt.s32.totalorder %v1318, 0
      %vm1485 = vcmp.lt.s32.totalorder %v1325, 0
      %vm1486 = vcmp.lt.s32.totalorder %v1332, 0
      %vm1487 = vcmp.lt.s32.totalorder %v1339, 0
      %vm1488 = vcmp.lt.s32.totalorder %v1346, 0
      %vm1489 = vcmp.lt.s32.totalorder %v1353, 0
      %vm1490 = vcmp.lt.s32.totalorder %v1360, 0
      %vm1491 = vcmp.lt.s32.totalorder %v1367, 0
      %vm1492 = vcmp.lt.s32.totalorder %v1374, 0
      %vm1493 = vcmp.lt.s32.totalorder %v1381, 0
      %vm1494 = vcmp.lt.s32.totalorder %v1388, 0
      %vm1495 = vcmp.lt.s32.totalorder %v1395, 0
      %vm1496 = vcmp.lt.s32.totalorder %v1402, 0
      %vm1497 = vcmp.lt.s32.totalorder %v1409, 0
      %vm1498 = vcmp.lt.s32.totalorder %v1416, 0
      %vm1499 = vcmp.lt.s32.totalorder %v1423, 0
      %vm1500 = vcmp.lt.s32.totalorder %v1430, 0
      %vm1501 = vcmp.lt.s32.totalorder %v1437, 0
      %vm1502 = vmand %vm1470, %vm1438
      %vm1503 = vmand %vm1471, %vm1439
      %vm1504 = vmand %vm1472, %vm1440
      %vm1505 = vmand %vm1473, %vm1441
      %vm1506 = vmand %vm1474, %vm1442
      %vm1507 = vmand %vm1475, %vm1443
      %vm1508 = vmand %vm1476, %vm1444
      %vm1509 = vmand %vm1477, %vm1445
      %vm1510 = vmand %vm1478, %vm1446
      %vm1511 = vmand %vm1479, %vm1447
      %vm1512 = vmand %vm1480, %vm1448
      %vm1513 = vmand %vm1481, %vm1449
      %vm1514 = vmand %vm1482, %vm1450
      %vm1515 = vmand %vm1483, %vm1451
      %vm1516 = vmand %vm1484, %vm1452
      %vm1517 = vmand %vm1485, %vm1453
      %vm1518 = vmand %vm1486, %vm1454
      %vm1519 = vmand %vm1487, %vm1455
      %vm1520 = vmand %vm1488, %vm1456
      %vm1521 = vmand %vm1489, %vm1457
      %vm1522 = vmand %vm1490, %vm1458
      %vm1523 = vmand %vm1491, %vm1459
      %vm1524 = vmand %vm1492, %vm1460
      %vm1525 = vmand %vm1493, %vm1461
      %vm1526 = vmand %vm1494, %vm1462
      %vm1527 = vmand %vm1495, %vm1463
      %vm1528 = vmand %vm1496, %vm1464
      %vm1529 = vmand %vm1497, %vm1465
      %vm1530 = vmand %vm1498, %vm1466
      %vm1531 = vmand %vm1499, %vm1467
      %vm1532 = vmand %vm1500, %vm1468
      %vm1533 = vmand %vm1501, %vm1469
      %v1534 = vadd.s32 %v1220, 16
      %v1535 = vadd.s32 %v1227, 16
      %v1536 = vadd.s32 %v1234, 16
      %v1537 = vadd.s32 %v1241, 16
      %v1538 = vadd.s32 %v1248, 16
      %v1539 = vadd.s32 %v1255, 16
      %v1540 = vadd.s32 %v1262, 16
      %v1541 = vadd.s32 %v1269, 16
      %v1542 = vadd.s32 %v1276, 16
      %v1543 = vadd.s32 %v1283, 16
      %v1544 = vadd.s32 %v1290, 16
      %v1545 = vadd.s32 %v1297, 16
      %v1546 = vadd.s32 %v1304, 16
      %v1547 = vadd.s32 %v1311, 16
      %v1548 = vadd.s32 %v1318, 16
      %v1549 = vadd.s32 %v1325, 16
      %v1550 = vadd.s32 %v1332, 16
      %v1551 = vadd.s32 %v1339, 16
      %v1552 = vadd.s32 %v1346, 16
      %v1553 = vadd.s32 %v1353, 16
      %v1554 = vadd.s32 %v1360, 16
      %v1555 = vadd.s32 %v1367, 16
      %v1556 = vadd.s32 %v1374, 16
      %v1557 = vadd.s32 %v1381, 16
      %v1558 = vadd.s32 %v1388, 16
      %v1559 = vadd.s32 %v1395, 16
      %v1560 = vadd.s32 %v1402, 16
      %v1561 = vadd.s32 %v1409, 16
      %v1562 = vadd.s32 %v1416, 16
      %v1563 = vadd.s32 %v1423, 16
      %v1564 = vadd.s32 %v1430, 16
      %v1565 = vadd.s32 %v1437, 16
      %v1566 = vsel %vm1502, %v1534, %v1220
      %v1567 = vsel %vm1503, %v1535, %v1227
      %v1568 = vsel %vm1504, %v1536, %v1234
      %v1569 = vsel %vm1505, %v1537, %v1241
      %v1570 = vsel %vm1506, %v1538, %v1248
      %v1571 = vsel %vm1507, %v1539, %v1255
      %v1572 = vsel %vm1508, %v1540, %v1262
      %v1573 = vsel %vm1509, %v1541, %v1269
      %v1574 = vsel %vm1510, %v1542, %v1276
      %v1575 = vsel %vm1511, %v1543, %v1283
      %v1576 = vsel %vm1512, %v1544, %v1290
      %v1577 = vsel %vm1513, %v1545, %v1297
      %v1578 = vsel %vm1514, %v1546, %v1304
      %v1579 = vsel %vm1515, %v1547, %v1311
      %v1580 = vsel %vm1516, %v1548, %v1318
      %v1581 = vsel %vm1517, %v1549, %v1325
      %v1582 = vsel %vm1518, %v1550, %v1332
      %v1583 = vsel %vm1519, %v1551, %v1339
      %v1584 = vsel %vm1520, %v1552, %v1346
      %v1585 = vsel %vm1521, %v1553, %v1353
      %v1586 = vsel %vm1522, %v1554, %v1360
      %v1587 = vsel %vm1523, %v1555, %v1367
      %v1588 = vsel %vm1524, %v1556, %v1374
      %v1589 = vsel %vm1525, %v1557, %v1381
      %v1590 = vsel %vm1526, %v1558, %v1388
      %v1591 = vsel %vm1527, %v1559, %v1395
      %v1592 = vsel %vm1528, %v1560, %v1402
      %v1593 = vsel %vm1529, %v1561, %v1409
      %v1594 = vsel %vm1530, %v1562, %v1416
      %v1595 = vsel %vm1531, %v1563, %v1423
      %v1596 = vsel %vm1532, %v1564, %v1430
      %v1597 = vsel %vm1533, %v1565, %v1437
      %vm1598 = vcmp.ne.s32.totalorder %v1566, 0
      %vm1599 = vcmp.ne.s32.totalorder %v1567, 0
      %vm1600 = vcmp.ne.s32.totalorder %v1568, 0
      %vm1601 = vcmp.ne.s32.totalorder %v1569, 0
      %vm1602 = vcmp.ne.s32.totalorder %v1570, 0
      %vm1603 = vcmp.ne.s32.totalorder %v1571, 0
      %vm1604 = vcmp.ne.s32.totalorder %v1572, 0
      %vm1605 = vcmp.ne.s32.totalorder %v1573, 0
      %vm1606 = vcmp.ne.s32.totalorder %v1574, 0
      %vm1607 = vcmp.ne.s32.totalorder %v1575, 0
      %vm1608 = vcmp.ne.s32.totalorder %v1576, 0
      %vm1609 = vcmp.ne.s32.totalorder %v1577, 0
      %vm1610 = vcmp.ne.s32.totalorder %v1578, 0
      %vm1611 = vcmp.ne.s32.totalorder %v1579, 0
      %vm1612 = vcmp.ne.s32.totalorder %v1580, 0
      %vm1613 = vcmp.ne.s32.totalorder %v1581, 0
      %vm1614 = vcmp.ne.s32.totalorder %v1582, 0
      %vm1615 = vcmp.ne.s32.totalorder %v1583, 0
      %vm1616 = vcmp.ne.s32.totalorder %v1584, 0
      %vm1617 = vcmp.ne.s32.totalorder %v1585, 0
      %vm1618 = vcmp.ne.s32.totalorder %v1586, 0
      %vm1619 = vcmp.ne.s32.totalorder %v1587, 0
      %vm1620 = vcmp.ne.s32.totalorder %v1588, 0
      %vm1621 = vcmp.ne.s32.totalorder %v1589, 0
      %vm1622 = vcmp.ne.s32.totalorder %v1590, 0
      %vm1623 = vcmp.ne.s32.totalorder %v1591, 0
      %vm1624 = vcmp.ne.s32.totalorder %v1592, 0
      %vm1625 = vcmp.ne.s32.totalorder %v1593, 0
      %vm1626 = vcmp.ne.s32.totalorder %v1594, 0
      %vm1627 = vcmp.ne.s32.totalorder %v1595, 0
      %vm1628 = vcmp.ne.s32.totalorder %v1596, 0
      %vm1629 = vcmp.ne.s32.totalorder %v1597, 0
      %vm1630 = vcmp.ne.s32.totalorder %v1566, 15
      %vm1631 = vcmp.ne.s32.totalorder %v1567, 15
      %vm1632 = vcmp.ne.s32.totalorder %v1568, 15
      %vm1633 = vcmp.ne.s32.totalorder %v1569, 15
      %vm1634 = vcmp.ne.s32.totalorder %v1570, 15
      %vm1635 = vcmp.ne.s32.totalorder %v1571, 15
      %vm1636 = vcmp.ne.s32.totalorder %v1572, 15
      %vm1637 = vcmp.ne.s32.totalorder %v1573, 15
      %vm1638 = vcmp.ne.s32.totalorder %v1574, 15
      %vm1639 = vcmp.ne.s32.totalorder %v1575, 15
      %vm1640 = vcmp.ne.s32.totalorder %v1576, 15
      %vm1641 = vcmp.ne.s32.totalorder %v1577, 15
      %vm1642 = vcmp.ne.s32.totalorder %v1578, 15
      %vm1643 = vcmp.ne.s32.totalorder %v1579, 15
      %vm1644 = vcmp.ne.s32.totalorder %v1580, 15
      %vm1645 = vcmp.ne.s32.totalorder %v1581, 15
      %vm1646 = vcmp.ne.s32.totalorder %v1582, 15
      %vm1647 = vcmp.ne.s32.totalorder %v1583, 15
      %vm1648 = vcmp.ne.s32.totalorder %v1584, 15
      %vm1649 = vcmp.ne.s32.totalorder %v1585, 15
      %vm1650 = vcmp.ne.s32.totalorder %v1586, 15
      %vm1651 = vcmp.ne.s32.totalorder %v1587, 15
      %vm1652 = vcmp.ne.s32.totalorder %v1588, 15
      %vm1653 = vcmp.ne.s32.totalorder %v1589, 15
      %vm1654 = vcmp.ne.s32.totalorder %v1590, 15
      %vm1655 = vcmp.ne.s32.totalorder %v1591, 15
      %vm1656 = vcmp.ne.s32.totalorder %v1592, 15
      %vm1657 = vcmp.ne.s32.totalorder %v1593, 15
      %vm1658 = vcmp.ne.s32.totalorder %v1594, 15
      %vm1659 = vcmp.ne.s32.totalorder %v1595, 15
      %vm1660 = vcmp.ne.s32.totalorder %v1596, 15
      %vm1661 = vcmp.ne.s32.totalorder %v1597, 15
      %v1662 = vld [vmem:[%s3] sm:$0xf]
      %v1663 = vld [vmem:[%s3 + $0x4] sm:$0xf]
      %v1664 = vld [vmem:[%s3 + $0x8] sm:$0xf]
      %v1665 = vld [vmem:[%s3 + $0xc] sm:$0xf]
      %v1666 = vld [vmem:[%s3 + $0x10] sm:$0xf]
      %v1667 = vld [vmem:[%s3 + $0x14] sm:$0xf]
      %v1668 = vld [vmem:[%s3 + $0x18] sm:$0xf]
      %v1669 = vld [vmem:[%s3 + $0x1c] sm:$0xf]
      %v1670 = vld [vmem:[%s3 + $0x20] sm:$0xf]
      %v1671 = vld [vmem:[%s3 + $0x24] sm:$0xf]
      %v1672 = vld [vmem:[%s3 + $0x28] sm:$0xf]
      %v1673 = vld [vmem:[%s3 + $0x2c] sm:$0xf]
      %v1674 = vld [vmem:[%s3 + $0x30] sm:$0xf]
      %v1675 = vld [vmem:[%s3 + $0x34] sm:$0xf]
      %v1676 = vld [vmem:[%s3 + $0x38] sm:$0xf]
      %v1677 = vld [vmem:[%s3 + $0x3c] sm:$0xf]
      %v1678 = vld [vmem:[%s4] sm:$0x1]
      %v1680 = vlaneseq
      %v1681 = vshrl.u32 %v1680, 7
      %v1682 = vsub.s32 0, %v1681
      %v1683 = vrot.slane %v1678, %v1682
      %v1701 = vunpack.c.l.b16 %v1662
      %v1702 = vunpack.c.l.b16 %v1663
      %v1703 = vunpack.c.l.b16 %v1664
      %v1704 = vunpack.c.l.b16 %v1665
      %v1705 = vunpack.c.l.b16 %v1666
      %v1706 = vunpack.c.l.b16 %v1667
      %v1707 = vunpack.c.l.b16 %v1668
      %v1708 = vunpack.c.l.b16 %v1669
      %v1709 = vunpack.c.l.b16 %v1670
      %v1710 = vunpack.c.l.b16 %v1671
      %v1711 = vunpack.c.l.b16 %v1672
      %v1712 = vunpack.c.l.b16 %v1673
      %v1713 = vunpack.c.l.b16 %v1674
      %v1714 = vunpack.c.l.b16 %v1675
      %v1715 = vunpack.c.l.b16 %v1676
      %v1716 = vunpack.c.l.b16 %v1677
      %v1717 = vpack.c.b16 %v1702, %v1701
      %v1718 = vpack.c.b16 %v1704, %v1703
      %v1719 = vpack.c.b16 %v1706, %v1705
      %v1720 = vpack.c.b16 %v1708, %v1707
      %v1721 = vpack.c.b16 %v1710, %v1709
      %v1722 = vpack.c.b16 %v1712, %v1711
      %v1723 = vpack.c.b16 %v1714, %v1713
      %v1724 = vpack.c.b16 %v1716, %v1715
      %1733 = vmatprep.subr.bf16.mxu0 0
      %1734 = vmatpush1.bf16.msra.mxu0 %v1717
      %1735 = vmatprep.subr.bf16.mxu0 0
      %1736 = vmatpush1.bf16.msra.mxu0 %v1718
      %1737 = vmatprep.subr.bf16.mxu0 0
      %1738 = vmatpush1.bf16.msra.mxu0 %v1719
      %1739 = vmatprep.subr.bf16.mxu0 0
      %1740 = vmatpush1.bf16.msra.mxu0 %v1720
      %1741 = vmatprep.subr.bf16.mxu0 0
      %1742 = vmatpush1.bf16.msra.mxu0 %v1721
      %1743 = vmatprep.subr.bf16.mxu0 0
      %1744 = vmatpush1.bf16.msra.mxu0 %v1722
      %1745 = vmatprep.subr.bf16.mxu0 0
      %1746 = vmatpush1.bf16.msra.mxu0 %v1723
      %1747 = vmatprep.subr.bf16.mxu0 0
      %1748 = vmatpush1.bf16.msra.mxu0 %v1724
      %1749 = vmatprep.subr.bf16.mxu0 0
      %1750 = vmatpush1.bf16.msra.mxu0 0
      %1751 = vmatprep.subr.bf16.mxu0 0
      %1752 = vmatpush1.bf16.msra.mxu0 0
      %1753 = vmatprep.subr.bf16.mxu0 0
      %1754 = vmatpush1.bf16.msra.mxu0 0
      %1755 = vmatprep.subr.bf16.mxu0 0
      %1756 = vmatpush1.bf16.msra.mxu0 0
      %1757 = vmatprep.subr.bf16.mxu0 0
      %1758 = vmatpush1.bf16.msra.mxu0 0
      %1759 = vmatprep.subr.bf16.mxu0 0
      %1760 = vmatpush1.bf16.msra.mxu0 0
      %1761 = vmatprep.subr.bf16.mxu0 0
      %1762 = vmatpush1.bf16.msra.mxu0 0
      %1763 = vmatprep.subr.bf16.mxu0 0
      %1764 = vmatpush1.bf16.msra.mxu0 0
      %1765 = vmatprep.mubr.bf16.mxu0 0
      %1766 = vmatmul.mubr.bf16.gmra.mrb[0].mxu0 %v1149
      %v1767 = vpop.f32.mrb[0].mxu0
      %v1768 = vadd.f32 %v1683, %v1767
      %v1769 = vpop.f32.mrb[0].mxu0
      %v1770 = vpop.f32.mrb[0].mxu0
      %v1771 = vadd.f32 %v1683, %v1770
      %v1772 = vpop.f32.mrb[0].mxu0
      %1773 = vmatprep.mubr.bf16.mxu0 0
      %1774 = vmatmul.mubr.bf16.gmra.mrb[0].mxu0 %v1150
      %v1775 = vpop.f32.mrb[0].mxu0
      %v1776 = vadd.f32 %v1683, %v1775
      %v1777 = vpop.f32.mrb[0].mxu0
      %v1778 = vpop.f32.mrb[0].mxu0
      %v1779 = vadd.f32 %v1683, %v1778
      %v1780 = vpop.f32.mrb[0].mxu0
      %1781 = vmatprep.mubr.bf16.mxu0 0
      %1782 = vmatmul.mubr.bf16.gmra.mrb[0].mxu0 %v1151
      %v1783 = vpop.f32.mrb[0].mxu0
      %v1784 = vadd.f32 %v1683, %v1783
      %v1785 = vpop.f32.mrb[0].mxu0
      %v1786 = vpop.f32.mrb[0].mxu0
      %v1787 = vadd.f32 %v1683, %v1786
      %v1788 = vpop.f32.mrb[0].mxu0
      %1789 = vmatprep.mubr.bf16.mxu0 0
      %1790 = vmatmul.mubr.bf16.gmra.mrb[0].mxu0 %v1152
      %v1791 = vpop.f32.mrb[0].mxu0
      %v1792 = vadd.f32 %v1683, %v1791
      %v1793 = vpop.f32.mrb[0].mxu0
      %v1794 = vpop.f32.mrb[0].mxu0
      %v1795 = vadd.f32 %v1683, %v1794
      %v1796 = vpop.f32.mrb[0].mxu0
      %1797 = vmatprep.mubr.bf16.mxu0 0
      %1798 = vmatmul.mubr.bf16.gmra.mrb[0].mxu0 %v1153
      %v1799 = vpop.f32.mrb[0].mxu0
      %v1800 = vadd.f32 %v1683, %v1799
      %v1801 = vpop.f32.mrb[0].mxu0
      %v1802 = vpop.f32.mrb[0].mxu0
      %v1803 = vadd.f32 %v1683, %v1802
      %v1804 = vpop.f32.mrb[0].mxu0
      %1805 = vmatprep.mubr.bf16.mxu0 0
      %1806 = vmatmul.mubr.bf16.gmra.mrb[0].mxu0 %v1154
      %v1807 = vpop.f32.mrb[0].mxu0
      %v1808 = vadd.f32 %v1683, %v1807
      %v1809 = vpop.f32.mrb[0].mxu0
      %v1810 = vpop.f32.mrb[0].mxu0
      %v1811 = vadd.f32 %v1683, %v1810
      %v1812 = vpop.f32.mrb[0].mxu0
      %1813 = vmatprep.mubr.bf16.mxu0 0
      %1814 = vmatmul.mubr.bf16.gmra.mrb[0].mxu0 %v1155
      %v1815 = vpop.f32.mrb[0].mxu0
      %v1816 = vadd.f32 %v1683, %v1815
      %v1817 = vpop.f32.mrb[0].mxu0
      %v1818 = vpop.f32.mrb[0].mxu0
      %v1819 = vadd.f32 %v1683, %v1818
      %v1820 = vpop.f32.mrb[0].mxu0
      %1821 = vmatprep.mubr.bf16.mxu0 0
      %1822 = vmatmul.mubr.bf16.gmra.mrb[0].mxu0 %v1156
      %v1823 = vpop.f32.mrb[0].mxu0
      %v1824 = vadd.f32 %v1683, %v1823
      %v1825 = vpop.f32.mrb[0].mxu0
      %v1826 = vpop.f32.mrb[0].mxu0
      %v1827 = vadd.f32 %v1683, %v1826
      %v1828 = vpop.f32.mrb[0].mxu0
      %1829 = vmatprep.mubr.bf16.mxu0 0
      %1830 = vmatmul.mubr.bf16.gmra.mrb[0].mxu0 %v1157
      %v1831 = vpop.f32.mrb[0].mxu0
      %v1832 = vadd.f32 %v1683, %v1831
      %v1833 = vpop.f32.mrb[0].mxu0
      %v1834 = vpop.f32.mrb[0].mxu0
      %v1835 = vadd.f32 %v1683, %v1834
      %v1836 = vpop.f32.mrb[0].mxu0
      %1837 = vmatprep.mubr.bf16.mxu0 0
      %1838 = vmatmul.mubr.bf16.gmra.mrb[0].mxu0 %v1158
      %v1839 = vpop.f32.mrb[0].mxu0
      %v1840 = vadd.f32 %v1683, %v1839
      %v1841 = vpop.f32.mrb[0].mxu0
      %v1842 = vpop.f32.mrb[0].mxu0
      %v1843 = vadd.f32 %v1683, %v1842
      %v1844 = vpop.f32.mrb[0].mxu0
      %1845 = vmatprep.mubr.bf16.mxu0 0
      %1846 = vmatmul.mubr.bf16.gmra.mrb[0].mxu0 %v1159
      %v1847 = vpop.f32.mrb[0].mxu0
      %v1848 = vadd.f32 %v1683, %v1847
      %v1849 = vpop.f32.mrb[0].mxu0
      %v1850 = vpop.f32.mrb[0].mxu0
      %v1851 = vadd.f32 %v1683, %v1850
      %v1852 = vpop.f32.mrb[0].mxu0
      %1853 = vmatprep.mubr.bf16.mxu0 0
      %1854 = vmatmul.mubr.bf16.gmra.mrb[0].mxu0 %v1160
      %v1855 = vpop.f32.mrb[0].mxu0
      %v1856 = vadd.f32 %v1683, %v1855
      %v1857 = vpop.f32.mrb[0].mxu0
      %v1858 = vpop.f32.mrb[0].mxu0
      %v1859 = vadd.f32 %v1683, %v1858
      %v1860 = vpop.f32.mrb[0].mxu0
      %1861 = vmatprep.mubr.bf16.mxu0 0
      %1862 = vmatmul.mubr.bf16.gmra.mrb[0].mxu0 %v1161
      %v1863 = vpop.f32.mrb[0].mxu0
      %v1864 = vadd.f32 %v1683, %v1863
      %v1865 = vpop.f32.mrb[0].mxu0
      %v1866 = vpop.f32.mrb[0].mxu0
      %v1867 = vadd.f32 %v1683, %v1866
      %v1868 = vpop.f32.mrb[0].mxu0
      %1869 = vmatprep.mubr.bf16.mxu0 0
      %1870 = vmatmul.mubr.bf16.gmra.mrb[0].mxu0 %v1162
      %v1871 = vpop.f32.mrb[0].mxu0
      %v1872 = vadd.f32 %v1683, %v1871
      %v1873 = vpop.f32.mrb[0].mxu0
      %v1874 = vpop.f32.mrb[0].mxu0
      %v1875 = vadd.f32 %v1683, %v1874
      %v1876 = vpop.f32.mrb[0].mxu0
      %1877 = vmatprep.mubr.bf16.mxu0 0
      %1878 = vmatmul.mubr.bf16.gmra.mrb[0].mxu0 %v1163
      %v1879 = vpop.f32.mrb[0].mxu0
      %v1880 = vadd.f32 %v1683, %v1879
      %v1881 = vpop.f32.mrb[0].mxu0
      %v1882 = vpop.f32.mrb[0].mxu0
      %v1883 = vadd.f32 %v1683, %v1882
      %v1884 = vpop.f32.mrb[0].mxu0
      %1885 = vmatprep.mubr.bf16.mxu0 0
      %1886 = vmatmul.mubr.bf16.gmra.mrb[0].mxu0 %v1164
      %v1887 = vpop.f32.mrb[0].mxu0
      %v1888 = vadd.f32 %v1683, %v1887
      %v1889 = vpop.f32.mrb[0].mxu0
      %v1890 = vpop.f32.mrb[0].mxu0
      %v1891 = vadd.f32 %v1683, %v1890
      %v1892 = vpop.f32.mrb[0].mxu0
      %1893 = vdwg.mxu0
      %v1894 = vsub.f32 0.0, %v1768
      %v1895 = vsub.f32 0.0, %v1771
      %v1896 = vsub.f32 0.0, %v1776
      %v1897 = vsub.f32 0.0, %v1779
      %v1898 = vsub.f32 0.0, %v1784
      %v1899 = vsub.f32 0.0, %v1787
      %v1900 = vsub.f32 0.0, %v1792
      %v1901 = vsub.f32 0.0, %v1795
      %v1902 = vsub.f32 0.0, %v1800
      %v1903 = vsub.f32 0.0, %v1803
      %v1904 = vsub.f32 0.0, %v1808
      %v1905 = vsub.f32 0.0, %v1811
      %v1906 = vsub.f32 0.0, %v1816
      %v1907 = vsub.f32 0.0, %v1819
      %v1908 = vsub.f32 0.0, %v1824
      %v1909 = vsub.f32 0.0, %v1827
      %v1910 = vsub.f32 0.0, %v1832
      %v1911 = vsub.f32 0.0, %v1835
      %v1912 = vsub.f32 0.0, %v1840
      %v1913 = vsub.f32 0.0, %v1843
      %v1914 = vsub.f32 0.0, %v1848
      %v1915 = vsub.f32 0.0, %v1851
      %v1916 = vsub.f32 0.0, %v1856
      %v1917 = vsub.f32 0.0, %v1859
      %v1918 = vsub.f32 0.0, %v1864
      %v1919 = vsub.f32 0.0, %v1867
      %v1920 = vsub.f32 0.0, %v1872
      %v1921 = vsub.f32 0.0, %v1875
      %v1922 = vsub.f32 0.0, %v1880
      %v1923 = vsub.f32 0.0, %v1883
      %v1924 = vsub.f32 0.0, %v1888
      %v1925 = vsub.f32 0.0, %v1891
      %v1926 = vmul.f32 %v1894, 1.442695
      %v1927 = vpow.pop %v1926
      %v1928 = vmul.f32 %v1895, 1.442695
      %v1929 = vpow.pop %v1928
      %v1930 = vmul.f32 %v1896, 1.442695
      %v1931 = vpow.pop %v1930
      %v1932 = vmul.f32 %v1897, 1.442695
      %v1933 = vpow.pop %v1932
      %v1934 = vmul.f32 %v1898, 1.442695
      %v1935 = vpow.pop %v1934
      %v1936 = vmul.f32 %v1899, 1.442695
      %v1937 = vpow.pop %v1936
      %v1938 = vmul.f32 %v1900, 1.442695
      %v1939 = vpow.pop %v1938
      %v1940 = vmul.f32 %v1901, 1.442695
      %v1941 = vpow.pop %v1940
      %v1942 = vmul.f32 %v1902, 1.442695
      %v1943 = vpow.pop %v1942
      %v1944 = vmul.f32 %v1903, 1.442695
      %v1945 = vpow.pop %v1944
      %v1946 = vmul.f32 %v1904, 1.442695
      %v1947 = vpow.pop %v1946
      %v1948 = vmul.f32 %v1905, 1.442695
      %v1949 = vpow.pop %v1948
      %v1950 = vmul.f32 %v1906, 1.442695
      %v1951 = vpow.pop %v1950
      %v1952 = vmul.f32 %v1907, 1.442695
      %v1953 = vpow.pop %v1952
      %v1954 = vmul.f32 %v1908, 1.442695
      %v1955 = vpow.pop %v1954
      %v1956 = vmul.f32 %v1909, 1.442695
      %v1957 = vpow.pop %v1956
      %v1958 = vmul.f32 %v1910, 1.442695
      %v1959 = vpow.pop %v1958
      %v1960 = vmul.f32 %v1911, 1.442695
      %v1961 = vpow.pop %v1960
      %v1962 = vmul.f32 %v1912, 1.442695
      %v1963 = vpow.pop %v1962
      %v1964 = vmul.f32 %v1913, 1.442695
      %v1965 = vpow.pop %v1964
      %v1966 = vmul.f32 %v1914, 1.442695
      %v1967 = vpow.pop %v1966
      %v1968 = vmul.f32 %v1915, 1.442695
      %v1969 = vpow.pop %v1968
      %v1970 = vmul.f32 %v1916, 1.442695
      %v1971 = vpow.pop %v1970
      %v1972 = vmul.f32 %v1917, 1.442695
      %v1973 = vpow.pop %v1972
      %v1974 = vmul.f32 %v1918, 1.442695
      %v1975 = vpow.pop %v1974
      %v1976 = vmul.f32 %v1919, 1.442695
      %v1977 = vpow.pop %v1976
      %v1978 = vmul.f32 %v1920, 1.442695
      %v1979 = vpow.pop %v1978
      %v1980 = vmul.f32 %v1921, 1.442695
      %v1981 = vpow.pop %v1980
      %v1982 = vmul.f32 %v1922, 1.442695
      %v1983 = vpow.pop %v1982
      %v1984 = vmul.f32 %v1923, 1.442695
      %v1985 = vpow.pop %v1984
      %v1986 = vmul.f32 %v1924, 1.442695
      %v1987 = vpow.pop %v1986
      %v1988 = vmul.f32 %v1925, 1.442695
      %v1989 = vpow.pop %v1988
      %v1990 = vadd.f32 %v1927, 1.0
      %v1991 = vadd.f32 %v1929, 1.0
      %v1992 = vadd.f32 %v1931, 1.0
      %v1993 = vadd.f32 %v1933, 1.0
      %v1994 = vadd.f32 %v1935, 1.0
      %v1995 = vadd.f32 %v1937, 1.0
      %v1996 = vadd.f32 %v1939, 1.0
      %v1997 = vadd.f32 %v1941, 1.0
      %v1998 = vadd.f32 %v1943, 1.0
      %v1999 = vadd.f32 %v1945, 1.0
      %v2000 = vadd.f32 %v1947, 1.0
      %v2001 = vadd.f32 %v1949, 1.0
      %v2002 = vadd.f32 %v1951, 1.0
      %v2003 = vadd.f32 %v1953, 1.0
      %v2004 = vadd.f32 %v1955, 1.0
      %v2005 = vadd.f32 %v1957, 1.0
      %v2006 = vadd.f32 %v1959, 1.0
      %v2007 = vadd.f32 %v1961, 1.0
      %v2008 = vadd.f32 %v1963, 1.0
      %v2009 = vadd.f32 %v1965, 1.0
      %v2010 = vadd.f32 %v1967, 1.0
      %v2011 = vadd.f32 %v1969, 1.0
      %v2012 = vadd.f32 %v1971, 1.0
      %v2013 = vadd.f32 %v1973, 1.0
      %v2014 = vadd.f32 %v1975, 1.0
      %v2015 = vadd.f32 %v1977, 1.0
      %v2016 = vadd.f32 %v1979, 1.0
      %v2017 = vadd.f32 %v1981, 1.0
      %v2018 = vadd.f32 %v1983, 1.0
      %v2019 = vadd.f32 %v1985, 1.0
      %v2020 = vadd.f32 %v1987, 1.0
      %v2021 = vadd.f32 %v1989, 1.0
      %v2022 = vrcp.pop %v1990
      %v2023 = vrcp.pop %v1991
      %v2024 = vrcp.pop %v1992
      %v2025 = vrcp.pop %v1993
      %v2026 = vrcp.pop %v1994
      %v2027 = vrcp.pop %v1995
      %v2028 = vrcp.pop %v1996
      %v2029 = vrcp.pop %v1997
      %v2030 = vrcp.pop %v1998
      %v2031 = vrcp.pop %v1999
      %v2032 = vrcp.pop %v2000
      %v2033 = vrcp.pop %v2001
      %v2034 = vrcp.pop %v2002
      %v2035 = vrcp.pop %v2003
      %v2036 = vrcp.pop %v2004
      %v2037 = vrcp.pop %v2005
      %v2038 = vrcp.pop %v2006
      %v2039 = vrcp.pop %v2007
      %v2040 = vrcp.pop %v2008
      %v2041 = vrcp.pop %v2009
      %v2042 = vrcp.pop %v2010
      %v2043 = vrcp.pop %v2011
      %v2044 = vrcp.pop %v2012
      %v2045 = vrcp.pop %v2013
      %v2046 = vrcp.pop %v2014
      %v2047 = vrcp.pop %v2015
      %v2048 = vrcp.pop %v2016
      %v2049 = vrcp.pop %v2017
      %v2050 = vrcp.pop %v2018
      %v2051 = vrcp.pop %v2019
      %v2052 = vrcp.pop %v2020
      %v2053 = vrcp.pop %v2021
      %v2054 = vmul.f32 %v1768, %v2022
      %v2055 = vmul.f32 %v1771, %v2023
      %v2056 = vmul.f32 %v1776, %v2024
      %v2057 = vmul.f32 %v1779, %v2025
      %v2058 = vmul.f32 %v1784, %v2026
      %v2059 = vmul.f32 %v1787, %v2027
      %v2060 = vmul.f32 %v1792, %v2028
      %v2061 = vmul.f32 %v1795, %v2029
      %v2062 = vmul.f32 %v1800, %v2030
      %v2063 = vmul.f32 %v1803, %v2031
      %v2064 = vmul.f32 %v1808, %v2032
      %v2065 = vmul.f32 %v1811, %v2033
      %v2066 = vmul.f32 %v1816, %v2034
      %v2067 = vmul.f32 %v1819, %v2035
      %v2068 = vmul.f32 %v1824, %v2036
      %v2069 = vmul.f32 %v1827, %v2037
      %v2070 = vmul.f32 %v1832, %v2038
      %v2071 = vmul.f32 %v1835, %v2039
      %v2072 = vmul.f32 %v1840, %v2040
      %v2073 = vmul.f32 %v1843, %v2041
      %v2074 = vmul.f32 %v1848, %v2042
      %v2075 = vmul.f32 %v1851, %v2043
      %v2076 = vmul.f32 %v1856, %v2044
      %v2077 = vmul.f32 %v1859, %v2045
      %v2078 = vmul.f32 %v1864, %v2046
      %v2079 = vmul.f32 %v1867, %v2047
      %v2080 = vmul.f32 %v1872, %v2048
      %v2081 = vmul.f32 %v1875, %v2049
      %v2082 = vmul.f32 %v1880, %v2050
      %v2083 = vmul.f32 %v1883, %v2051
      %v2084 = vmul.f32 %v1888, %v2052
      %v2085 = vmul.f32 %v1891, %v2053
      %v2086 = vpack.c.bf16 %v2055, %v2054
      %v2087 = vpack.c.bf16 %v2057, %v2056
      %v2088 = vpack.c.bf16 %v2059, %v2058
      %v2089 = vpack.c.bf16 %v2061, %v2060
      %v2090 = vpack.c.bf16 %v2063, %v2062
      %v2091 = vpack.c.bf16 %v2065, %v2064
      %v2092 = vpack.c.bf16 %v2067, %v2066
      %v2093 = vpack.c.bf16 %v2069, %v2068
      %v2094 = vpack.c.bf16 %v2071, %v2070
      %v2095 = vpack.c.bf16 %v2073, %v2072
      %v2096 = vpack.c.bf16 %v2075, %v2074
      %v2097 = vpack.c.bf16 %v2077, %v2076
      %v2098 = vpack.c.bf16 %v2079, %v2078
      %v2099 = vpack.c.bf16 %v2081, %v2080
      %v2100 = vpack.c.bf16 %v2083, %v2082
      %v2101 = vpack.c.bf16 %v2085, %v2084
      %vm2102 = vsmask.f32 256
      %v2104 = vshrl.u32 %v2086, 16
      %v2106 = vrot.slane %v2104, 7
      %v2107 = vshll.u32 %v2086, 16
      %v2109 = vor.u32 %v2106, %v2107
      %v2111 = vshrl.u32 %v2087, 16
      %v2113 = vrot.slane %v2111, 7
      %v2114 = vshll.u32 %v2087, 16
      %v2116 = vor.u32 %v2113, %v2114
      %v2117 = vsel %vm2102, %v2106, %v2116
      %v2119 = vshrl.u32 %v2088, 16
      %v2121 = vrot.slane %v2119, 7
      %v2122 = vshll.u32 %v2088, 16
      %v2124 = vor.u32 %v2121, %v2122
      %v2125 = vsel %vm2102, %v2113, %v2124
      %v2127 = vshrl.u32 %v2089, 16
      %v2129 = vrot.slane %v2127, 7
      %v2130 = vshll.u32 %v2089, 16
      %v2132 = vor.u32 %v2129, %v2130
      %v2133 = vsel %vm2102, %v2121, %v2132
      %v2135 = vshrl.u32 %v2090, 16
      %v2137 = vrot.slane %v2135, 7
      %v2138 = vshll.u32 %v2090, 16
      %v2140 = vor.u32 %v2137, %v2138
      %v2141 = vsel %vm2102, %v2129, %v2140
      %v2143 = vshrl.u32 %v2091, 16
      %v2145 = vrot.slane %v2143, 7
      %v2146 = vshll.u32 %v2091, 16
      %v2148 = vor.u32 %v2145, %v2146
      %v2149 = vsel %vm2102, %v2137, %v2148
      %v2151 = vshrl.u32 %v2092, 16
      %v2153 = vrot.slane %v2151, 7
      %v2154 = vshll.u32 %v2092, 16
      %v2156 = vor.u32 %v2153, %v2154
      %v2157 = vsel %vm2102, %v2145, %v2156
      %v2159 = vshrl.u32 %v2093, 16
      %v2161 = vrot.slane %v2159, 7
      %v2162 = vshll.u32 %v2093, 16
      %v2164 = vor.u32 %v2161, %v2162
      %v2165 = vsel %vm2102, %v2153, %v2164
      %v2167 = vshrl.u32 %v2094, 16
      %v2169 = vrot.slane %v2167, 7
      %v2170 = vshll.u32 %v2094, 16
      %v2172 = vor.u32 %v2169, %v2170
      %v2173 = vsel %vm2102, %v2161, %v2172
      %v2175 = vshrl.u32 %v2095, 16
      %v2177 = vrot.slane %v2175, 7
      %v2178 = vshll.u32 %v2095, 16
      %v2180 = vor.u32 %v2177, %v2178
      %v2181 = vsel %vm2102, %v2169, %v2180
      %v2183 = vshrl.u32 %v2096, 16
      %v2185 = vrot.slane %v2183, 7
      %v2186 = vshll.u32 %v2096, 16
      %v2188 = vor.u32 %v2185, %v2186
      %v2189 = vsel %vm2102, %v2177, %v2188
      %v2191 = vshrl.u32 %v2097, 16
      %v2193 = vrot.slane %v2191, 7
      %v2194 = vshll.u32 %v2097, 16
      %v2196 = vor.u32 %v2193, %v2194
      %v2197 = vsel %vm2102, %v2185, %v2196
      %v2199 = vshrl.u32 %v2098, 16
      %v2201 = vrot.slane %v2199, 7
      %v2202 = vshll.u32 %v2098, 16
      %v2204 = vor.u32 %v2201, %v2202
      %v2205 = vsel %vm2102, %v2193, %v2204
      %v2207 = vshrl.u32 %v2099, 16
      %v2209 = vrot.slane %v2207, 7
      %v2210 = vshll.u32 %v2099, 16
      %v2212 = vor.u32 %v2209, %v2210
      %v2213 = vsel %vm2102, %v2201, %v2212
      %v2215 = vshrl.u32 %v2100, 16
      %v2217 = vrot.slane %v2215, 7
      %v2218 = vshll.u32 %v2100, 16
      %v2220 = vor.u32 %v2217, %v2218
      %v2221 = vsel %vm2102, %v2209, %v2220
      %v2223 = vshrl.u32 %v2101, 16
      %v2225 = vrot.slane %v2223, 7
      %v2226 = vshll.u32 %v2101, 16
      %v2228 = vor.u32 %v2225, %v2226
      %v2229 = vsel %vm2102, %v2217, %v2228
      %vm2247 = vcmask 1040384
      %vm2248 = vmand %vm2247, %vm2102
      %v2249 = vsel %vm2248, 0, %v2109
      %v2250 = vsel %vm2248, %v2225, 0
      %v2251 = vsel %vm1598, 1, 0
      %v2252 = vsel %vm1599, 1, 0
      %v2253 = vsel %vm1600, 1, 0
      %v2254 = vsel %vm1601, 1, 0
      %v2255 = vsel %vm1602, 1, 0
      %v2256 = vsel %vm1603, 1, 0
      %v2257 = vsel %vm1604, 1, 0
      %v2258 = vsel %vm1605, 1, 0
      %v2259 = vsel %vm1606, 1, 0
      %v2260 = vsel %vm1607, 1, 0
      %v2261 = vsel %vm1608, 1, 0
      %v2262 = vsel %vm1609, 1, 0
      %v2263 = vsel %vm1610, 1, 0
      %v2264 = vsel %vm1611, 1, 0
      %v2265 = vsel %vm1612, 1, 0
      %v2266 = vsel %vm1613, 1, 0
      %v2267 = vsel %vm1614, 1, 0
      %v2268 = vsel %vm1615, 1, 0
      %v2269 = vsel %vm1616, 1, 0
      %v2270 = vsel %vm1617, 1, 0
      %v2271 = vsel %vm1618, 1, 0
      %v2272 = vsel %vm1619, 1, 0
      %v2273 = vsel %vm1620, 1, 0
      %v2274 = vsel %vm1621, 1, 0
      %v2275 = vsel %vm1622, 1, 0
      %v2276 = vsel %vm1623, 1, 0
      %v2277 = vsel %vm1624, 1, 0
      %v2278 = vsel %vm1625, 1, 0
      %v2279 = vsel %vm1626, 1, 0
      %v2280 = vsel %vm1627, 1, 0
      %v2281 = vsel %vm1628, 1, 0
      %v2282 = vsel %vm1629, 1, 0
      %vm2283 = vcmp.eq.s32.totalorder %v2251, 1
      %vm2284 = vcmp.eq.s32.totalorder %v2252, 1
      %vm2285 = vcmp.eq.s32.totalorder %v2253, 1
      %vm2286 = vcmp.eq.s32.totalorder %v2254, 1
      %vm2287 = vcmp.eq.s32.totalorder %v2255, 1
      %vm2288 = vcmp.eq.s32.totalorder %v2256, 1
      %vm2289 = vcmp.eq.s32.totalorder %v2257, 1
      %vm2290 = vcmp.eq.s32.totalorder %v2258, 1
      %vm2291 = vcmp.eq.s32.totalorder %v2259, 1
      %vm2292 = vcmp.eq.s32.totalorder %v2260, 1
      %vm2293 = vcmp.eq.s32.totalorder %v2261, 1
      %vm2294 = vcmp.eq.s32.totalorder %v2262, 1
      %vm2295 = vcmp.eq.s32.totalorder %v2263, 1
      %vm2296 = vcmp.eq.s32.totalorder %v2264, 1
      %vm2297 = vcmp.eq.s32.totalorder %v2265, 1
      %vm2298 = vcmp.eq.s32.totalorder %v2266, 1
      %vm2299 = vcmp.eq.s32.totalorder %v2267, 1
      %vm2300 = vcmp.eq.s32.totalorder %v2268, 1
      %vm2301 = vcmp.eq.s32.totalorder %v2269, 1
      %vm2302 = vcmp.eq.s32.totalorder %v2270, 1
      %vm2303 = vcmp.eq.s32.totalorder %v2271, 1
      %vm2304 = vcmp.eq.s32.totalorder %v2272, 1
      %vm2305 = vcmp.eq.s32.totalorder %v2273, 1
      %vm2306 = vcmp.eq.s32.totalorder %v2274, 1
      %vm2307 = vcmp.eq.s32.totalorder %v2275, 1
      %vm2308 = vcmp.eq.s32.totalorder %v2276, 1
      %vm2309 = vcmp.eq.s32.totalorder %v2277, 1
      %vm2310 = vcmp.eq.s32.totalorder %v2278, 1
      %vm2311 = vcmp.eq.s32.totalorder %v2279, 1
      %vm2312 = vcmp.eq.s32.totalorder %v2280, 1
      %vm2313 = vcmp.eq.s32.totalorder %v2281, 1
      %vm2314 = vcmp.eq.s32.totalorder %v2282, 1
      %vm2315 = vmpackc.low %vm2285, %vm2285
      %vm2316 = vmpackc.low %vm2286, %vm2286
      %vm2317 = vmpackc.low %vm2287, %vm2287
      %vm2318 = vmpackc.low %vm2288, %vm2288
      %vm2319 = vmpackc.low %vm2289, %vm2289
      %vm2320 = vmpackc.low %vm2290, %vm2290
      %vm2321 = vmpackc.low %vm2291, %vm2291
      %vm2322 = vmpackc.low %vm2292, %vm2292
      %vm2323 = vmpackc.low %vm2293, %vm2293
      %vm2324 = vmpackc.low %vm2294, %vm2294
      %vm2325 = vmpackc.low %vm2295, %vm2295
      %vm2326 = vmpackc.low %vm2296, %vm2296
      %vm2327 = vmpackc.low %vm2297, %vm2297
      %vm2328 = vmpackc.low %vm2298, %vm2298
      %vm2329 = vmpackc.low %vm2299, %vm2299
      %vm2330 = vmpackc.low %vm2300, %vm2300
      %vm2331 = vmpackc.low %vm2301, %vm2301
      %vm2332 = vmpackc.low %vm2302, %vm2302
      %vm2333 = vmpackc.low %vm2303, %vm2303
      %vm2334 = vmpackc.low %vm2304, %vm2304
      %vm2335 = vmpackc.low %vm2305, %vm2305
      %vm2336 = vmpackc.low %vm2306, %vm2306
      %vm2337 = vmpackc.low %vm2307, %vm2307
      %vm2338 = vmpackc.low %vm2308, %vm2308
      %vm2339 = vmpackc.low %vm2309, %vm2309
      %vm2340 = vmpackc.low %vm2310, %vm2310
      %vm2341 = vmpackc.low %vm2311, %vm2311
      %vm2342 = vmpackc.low %vm2312, %vm2312
      %vm2343 = vmpackc.low %vm2313, %vm2313
      %vm2344 = vmpackc.low %vm2314, %vm2314
      %v2345 = vsel %vm2315, 65537, 0
      %v2346 = vsel %vm2316, 65537, 0
      %v2347 = vsel %vm2317, 65537, 0
      %v2348 = vsel %vm2318, 65537, 0
      %v2349 = vsel %vm2319, 65537, 0
      %v2350 = vsel %vm2320, 65537, 0
      %v2351 = vsel %vm2321, 65537, 0
      %v2352 = vsel %vm2322, 65537, 0
      %v2353 = vsel %vm2323, 65537, 0
      %v2354 = vsel %vm2324, 65537, 0
      %v2355 = vsel %vm2325, 65537, 0
      %v2356 = vsel %vm2326, 65537, 0
      %v2357 = vsel %vm2327, 65537, 0
      %v2358 = vsel %vm2328, 65537, 0
      %v2359 = vsel %vm2329, 65537, 0
      %v2360 = vsel %vm2330, 65537, 0
      %v2361 = vsel %vm2331, 65537, 0
      %v2362 = vsel %vm2332, 65537, 0
      %v2363 = vsel %vm2333, 65537, 0
      %v2364 = vsel %vm2334, 65537, 0
      %v2365 = vsel %vm2335, 65537, 0
      %v2366 = vsel %vm2336, 65537, 0
      %v2367 = vsel %vm2337, 65537, 0
      %v2368 = vsel %vm2338, 65537, 0
      %v2369 = vsel %vm2339, 65537, 0
      %v2370 = vsel %vm2340, 65537, 0
      %v2371 = vsel %vm2341, 65537, 0
      %v2372 = vsel %vm2342, 65537, 0
      %v2373 = vsel %vm2343, 65537, 0
      %v2374 = vsel %vm2344, 65537, 0
      %v2375 = vunpack.c.l.b16 %v2345
      %v2376 = vunpack.c.l.b16 %v2346
      %v2377 = vunpack.c.l.b16 %v2347
      %v2378 = vunpack.c.l.b16 %v2348
      %v2379 = vunpack.c.l.b16 %v2349
      %v2380 = vunpack.c.l.b16 %v2350
      %v2381 = vunpack.c.l.b16 %v2351
      %v2382 = vunpack.c.l.b16 %v2352
      %v2383 = vunpack.c.l.b16 %v2353
      %v2384 = vunpack.c.l.b16 %v2354
      %v2385 = vunpack.c.l.b16 %v2355
      %v2386 = vunpack.c.l.b16 %v2356
      %v2387 = vunpack.c.l.b16 %v2357
      %v2388 = vunpack.c.l.b16 %v2358
      %v2389 = vunpack.c.l.b16 %v2359
      %v2390 = vunpack.c.l.b16 %v2360
      %v2391 = vunpack.c.l.b16 %v2361
      %v2392 = vunpack.c.l.b16 %v2362
      %v2393 = vunpack.c.l.b16 %v2363
      %v2394 = vunpack.c.l.b16 %v2364
      %v2395 = vunpack.c.l.b16 %v2365
      %v2396 = vunpack.c.l.b16 %v2366
      %v2397 = vunpack.c.l.b16 %v2367
      %v2398 = vunpack.c.l.b16 %v2368
      %v2399 = vunpack.c.l.b16 %v2369
      %v2400 = vunpack.c.l.b16 %v2370
      %v2401 = vunpack.c.l.b16 %v2371
      %v2402 = vunpack.c.l.b16 %v2372
      %v2403 = vunpack.c.l.b16 %v2373
      %v2404 = vunpack.c.l.b16 %v2374
      %v2405 = vpack.c.b16 %v2376, %v2375
      %v2406 = vpack.c.b16 %v2378, %v2377
      %v2407 = vpack.c.b16 %v2380, %v2379
      %v2408 = vpack.c.b16 %v2382, %v2381
      %v2409 = vpack.c.b16 %v2384, %v2383
      %v2410 = vpack.c.b16 %v2386, %v2385
      %v2411 = vpack.c.b16 %v2388, %v2387
      %v2412 = vpack.c.b16 %v2390, %v2389
      %v2413 = vpack.c.b16 %v2392, %v2391
      %v2414 = vpack.c.b16 %v2394, %v2393
      %v2415 = vpack.c.b16 %v2396, %v2395
      %v2416 = vpack.c.b16 %v2398, %v2397
      %v2417 = vpack.c.b16 %v2400, %v2399
      %v2418 = vpack.c.b16 %v2402, %v2401
      %v2419 = vpack.c.b16 %v2404, %v2403
      %vm2420 = vcmp.ne.s16.totalorder %v2405, 0
      %vm2421 = vcmp.ne.s16.totalorder %v2406, 0
      %vm2422 = vcmp.ne.s16.totalorder %v2407, 0
      %vm2423 = vcmp.ne.s16.totalorder %v2408, 0
      %vm2424 = vcmp.ne.s16.totalorder %v2409, 0
      %vm2425 = vcmp.ne.s16.totalorder %v2410, 0
      %vm2426 = vcmp.ne.s16.totalorder %v2411, 0
      %vm2427 = vcmp.ne.s16.totalorder %v2412, 0
      %vm2428 = vcmp.ne.s16.totalorder %v2413, 0
      %vm2429 = vcmp.ne.s16.totalorder %v2414, 0
      %vm2430 = vcmp.ne.s16.totalorder %v2415, 0
      %vm2431 = vcmp.ne.s16.totalorder %v2416, 0
      %vm2432 = vcmp.ne.s16.totalorder %v2417, 0
      %vm2433 = vcmp.ne.s16.totalorder %v2418, 0
      %vm2434 = vcmp.ne.s16.totalorder %v2419, 0
      %v2435 = vsel %vm2420, %v2249, 0
      %v2436 = vsel %vm2421, %v2117, 0
      %v2437 = vsel %vm2422, %v2125, 0
      %v2438 = vsel %vm2423, %v2133, 0
      %v2439 = vsel %vm2424, %v2141, 0
      %v2440 = vsel %vm2425, %v2149, 0
      %v2441 = vsel %vm2426, %v2157, 0
      %v2442 = vsel %vm2427, %v2165, 0
      %v2443 = vsel %vm2428, %v2173, 0
      %v2444 = vsel %vm2429, %v2181, 0
      %v2445 = vsel %vm2430, %v2189, 0
      %v2446 = vsel %vm2431, %v2197, 0
      %v2447 = vsel %vm2432, %v2205, 0
      %v2448 = vsel %vm2433, %v2213, 0
      %v2449 = vsel %vm2434, %v2221, 0
      %v2450 = vld [vmem:[%s5] sm:$0xf]
      %v2451 = vld [vmem:[%s5 + $0x4] sm:$0xf]
      %v2452 = vld [vmem:[%s5 + $0x8] sm:$0xf]
      %v2453 = vld [vmem:[%s5 + $0xc] sm:$0xf]
      %v2454 = vld [vmem:[%s5 + $0x10] sm:$0xf]
      %v2455 = vld [vmem:[%s5 + $0x14] sm:$0xf]
      %v2456 = vld [vmem:[%s5 + $0x18] sm:$0xf]
      %v2457 = vld [vmem:[%s5 + $0x1c] sm:$0xf]
      %v2458 = vld [vmem:[%s5 + $0x20] sm:$0xf]
      %v2459 = vld [vmem:[%s5 + $0x24] sm:$0xf]
      %v2460 = vld [vmem:[%s5 + $0x28] sm:$0xf]
      %v2461 = vld [vmem:[%s5 + $0x2c] sm:$0xf]
      %v2462 = vld [vmem:[%s5 + $0x30] sm:$0xf]
      %v2463 = vld [vmem:[%s5 + $0x34] sm:$0xf]
      %v2464 = vld [vmem:[%s5 + $0x38] sm:$0xf]
      %v2465 = vld [vmem:[%s5 + $0x3c] sm:$0xf]
      %s2466 = scalar_lea.vmem %s5, 64
      %v2467 = vld [vmem:[%s2466] sm:$0xf]
      %v2468 = vld [vmem:[%s2466 + $0x4] sm:$0xf]
      %v2469 = vld [vmem:[%s2466 + $0x8] sm:$0xf]
      %v2470 = vld [vmem:[%s2466 + $0xc] sm:$0xf]
      %v2471 = vld [vmem:[%s2466 + $0x10] sm:$0xf]
      %v2472 = vld [vmem:[%s2466 + $0x14] sm:$0xf]
      %v2473 = vld [vmem:[%s2466 + $0x18] sm:$0xf]
      %v2474 = vld [vmem:[%s2466 + $0x1c] sm:$0xf]
      %v2475 = vld [vmem:[%s2466 + $0x20] sm:$0xf]
      %v2476 = vld [vmem:[%s2466 + $0x24] sm:$0xf]
      %v2477 = vld [vmem:[%s2466 + $0x28] sm:$0xf]
      %v2478 = vld [vmem:[%s2466 + $0x2c] sm:$0xf]
      %v2479 = vld [vmem:[%s2466 + $0x30] sm:$0xf]
      %v2480 = vld [vmem:[%s2466 + $0x34] sm:$0xf]
      %v2481 = vld [vmem:[%s2466 + $0x38] sm:$0xf]
      %v2482 = vld [vmem:[%s2466 + $0x3c] sm:$0xf]
      %vm2483 = vsmask.f32 7424
      %v2485 = vshrl.u32 0, 16
      %v2487 = vshll.u32 0, 16
      %v2489 = vrot.slane %v2487, 1
      %v2490 = vor.u32 %v2485, %v2489
      %v2492 = vshll.u32 %v2249, 16
      %v2494 = vrot.slane %v2492, 1
      %v2495 = vsel %vm2483, %v2490, %v2494
      %v2496 = vshrl.u32 %v2249, 16
      %v2498 = vor.u32 %v2496, %v2494
      %v2500 = vshll.u32 %v2117, 16
      %v2502 = vrot.slane %v2500, 1
      %v2503 = vsel %vm2483, %v2498, %v2502
      %v2504 = vshrl.u32 %v2117, 16
      %v2506 = vor.u32 %v2504, %v2502
      %v2508 = vshll.u32 %v2125, 16
      %v2510 = vrot.slane %v2508, 1
      %v2511 = vsel %vm2483, %v2506, %v2510
      %v2512 = vshrl.u32 %v2125, 16
      %v2514 = vor.u32 %v2512, %v2510
      %v2516 = vshll.u32 %v2133, 16
      %v2518 = vrot.slane %v2516, 1
      %v2519 = vsel %vm2483, %v2514, %v2518
      %v2520 = vshrl.u32 %v2133, 16
      %v2522 = vor.u32 %v2520, %v2518
      %v2524 = vshll.u32 %v2141, 16
      %v2526 = vrot.slane %v2524, 1
      %v2527 = vsel %vm2483, %v2522, %v2526
      %v2528 = vshrl.u32 %v2141, 16
      %v2530 = vor.u32 %v2528, %v2526
      %v2532 = vshll.u32 %v2149, 16
      %v2534 = vrot.slane %v2532, 1
      %v2535 = vsel %vm2483, %v2530, %v2534
      %v2536 = vshrl.u32 %v2149, 16
      %v2538 = vor.u32 %v2536, %v2534
      %v2540 = vshll.u32 %v2157, 16
      %v2542 = vrot.slane %v2540, 1
      %v2543 = vsel %vm2483, %v2538, %v2542
      %v2544 = vshrl.u32 %v2157, 16
      %v2546 = vor.u32 %v2544, %v2542
      %v2548 = vshll.u32 %v2165, 16
      %v2550 = vrot.slane %v2548, 1
      %v2551 = vsel %vm2483, %v2546, %v2550
      %v2552 = vshrl.u32 %v2165, 16
      %v2554 = vor.u32 %v2552, %v2550
      %v2556 = vshll.u32 %v2173, 16
      %v2558 = vrot.slane %v2556, 1
      %v2559 = vsel %vm2483, %v2554, %v2558
      %v2560 = vshrl.u32 %v2173, 16
      %v2562 = vor.u32 %v2560, %v2558
      %v2564 = vshll.u32 %v2181, 16
      %v2566 = vrot.slane %v2564, 1
      %v2567 = vsel %vm2483, %v2562, %v2566
      %v2568 = vshrl.u32 %v2181, 16
      %v2570 = vor.u32 %v2568, %v2566
      %v2572 = vshll.u32 %v2189, 16
      %v2574 = vrot.slane %v2572, 1
      %v2575 = vsel %vm2483, %v2570, %v2574
      %v2576 = vshrl.u32 %v2189, 16
      %v2578 = vor.u32 %v2576, %v2574
      %v2580 = vshll.u32 %v2197, 16
      %v2582 = vrot.slane %v2580, 1
      %v2583 = vsel %vm2483, %v2578, %v2582
      %v2584 = vshrl.u32 %v2197, 16
      %v2586 = vor.u32 %v2584, %v2582
      %v2588 = vshll.u32 %v2205, 16
      %v2590 = vrot.slane %v2588, 1
      %v2591 = vsel %vm2483, %v2586, %v2590
      %v2592 = vshrl.u32 %v2205, 16
      %v2594 = vor.u32 %v2592, %v2590
      %v2596 = vshll.u32 %v2213, 16
      %v2598 = vrot.slane %v2596, 1
      %v2599 = vsel %vm2483, %v2594, %v2598
      %v2600 = vshrl.u32 %v2213, 16
      %v2602 = vor.u32 %v2600, %v2598
      %v2604 = vshll.u32 %v2221, 16
      %v2606 = vrot.slane %v2604, 1
      %v2607 = vsel %vm2483, %v2602, %v2606
      %v2608 = vshrl.u32 %v2221, 16
      %v2610 = vor.u32 %v2608, %v2606
      %v2612 = vshll.u32 %v2229, 16
      %v2614 = vrot.slane %v2612, 1
      %v2615 = vsel %vm2483, %v2610, %v2614
      %v2648 = vunpack.c.l.b16 %v2467
      %v2649 = vunpack.c.l.b16 %v2468
      %v2650 = vunpack.c.l.b16 %v2469
      %v2651 = vunpack.c.l.b16 %v2470
      %v2652 = vunpack.c.l.b16 %v2471
      %v2653 = vunpack.c.l.b16 %v2472
      %v2654 = vunpack.c.l.b16 %v2473
      %v2655 = vunpack.c.l.b16 %v2474
      %v2656 = vunpack.c.l.b16 %v2475
      %v2657 = vunpack.c.l.b16 %v2476
      %v2658 = vunpack.c.l.b16 %v2477
      %v2659 = vunpack.c.l.b16 %v2478
      %v2660 = vunpack.c.l.b16 %v2479
      %v2661 = vunpack.c.l.b16 %v2480
      %v2662 = vunpack.c.l.b16 %v2481
      %v2663 = vunpack.c.l.b16 %v2482
      %v2664 = vpack.c.b16 %v2649, %v2648
      %v2665 = vpack.c.b16 %v2651, %v2650
      %v2666 = vpack.c.b16 %v2653, %v2652
      %v2667 = vpack.c.b16 %v2655, %v2654
      %v2668 = vpack.c.b16 %v2657, %v2656
      %v2669 = vpack.c.b16 %v2659, %v2658
      %v2670 = vpack.c.b16 %v2661, %v2660
      %v2671 = vpack.c.b16 %v2663, %v2662
      %2680 = vmatprep.subr.bf16.mxu0 0
      %2681 = vmatpush1.bf16.msra.mxu0 %v2664
      %2682 = vmatprep.subr.bf16.mxu0 0
      %2683 = vmatpush1.bf16.msra.mxu0 %v2665
      %2684 = vmatprep.subr.bf16.mxu0 0
      %2685 = vmatpush1.bf16.msra.mxu0 %v2666
      %2686 = vmatprep.subr.bf16.mxu0 0
      %2687 = vmatpush1.bf16.msra.mxu0 %v2667
      %2688 = vmatprep.subr.bf16.mxu0 0
      %2689 = vmatpush1.bf16.msra.mxu0 %v2668
      %2690 = vmatprep.subr.bf16.mxu0 0
      %2691 = vmatpush1.bf16.msra.mxu0 %v2669
      %2692 = vmatprep.subr.bf16.mxu0 0
      %2693 = vmatpush1.bf16.msra.mxu0 %v2670
      %2694 = vmatprep.subr.bf16.mxu0 0
      %2695 = vmatpush1.bf16.msra.mxu0 %v2671
      %2696 = vmatprep.subr.bf16.mxu0 0
      %2697 = vmatpush1.bf16.msra.mxu0 0
      %2698 = vmatprep.subr.bf16.mxu0 0
      %2699 = vmatpush1.bf16.msra.mxu0 0
      %2700 = vmatprep.subr.bf16.mxu0 0
      %2701 = vmatpush1.bf16.msra.mxu0 0
      %2702 = vmatprep.subr.bf16.mxu0 0
      %2703 = vmatpush1.bf16.msra.mxu0 0
      %2704 = vmatprep.subr.bf16.mxu0 0
      %2705 = vmatpush1.bf16.msra.mxu0 0
      %2706 = vmatprep.subr.bf16.mxu0 0
      %2707 = vmatpush1.bf16.msra.mxu0 0
      %2708 = vmatprep.subr.bf16.mxu0 0
      %2709 = vmatpush1.bf16.msra.mxu0 0
      %2710 = vmatprep.subr.bf16.mxu0 0
      %2711 = vmatpush1.bf16.msra.mxu0 0
      %2712 = vmatprep.mubr.bf16.mxu0 0
      %2713 = vmatmul.mubr.bf16.gmra.mrb[0].mxu0 %v2495
      %v2714 = vpop.f32.mrb[0].mxu0
      %v2715 = vadd.f32 0.0, %v2714
      %v2716 = vpop.f32.mrb[0].mxu0
      %v2717 = vpop.f32.mrb[0].mxu0
      %v2718 = vadd.f32 0.0, %v2717
      %v2719 = vpop.f32.mrb[0].mxu0
      %2720 = vmatprep.mubr.bf16.mxu0 0
      %2721 = vmatmul.mubr.bf16.gmra.mrb[0].mxu0 %v2503
      %v2722 = vpop.f32.mrb[0].mxu0
      %v2723 = vadd.f32 0.0, %v2722
      %v2724 = vpop.f32.mrb[0].mxu0
      %v2725 = vpop.f32.mrb[0].mxu0
      %v2726 = vadd.f32 0.0, %v2725
      %v2727 = vpop.f32.mrb[0].mxu0
      %2728 = vmatprep.mubr.bf16.mxu0 0
      %2729 = vmatmul.mubr.bf16.gmra.mrb[0].mxu0 %v2511
      %v2730 = vpop.f32.mrb[0].mxu0
      %v2731 = vadd.f32 0.0, %v2730
      %v2732 = vpop.f32.mrb[0].mxu0
      %v2733 = vpop.f32.mrb[0].mxu0
      %v2734 = vadd.f32 0.0, %v2733
      %v2735 = vpop.f32.mrb[0].mxu0
      %2736 = vmatprep.mubr.bf16.mxu0 0
      %2737 = vmatmul.mubr.bf16.gmra.mrb[0].mxu0 %v2519
      %v2738 = vpop.f32.mrb[0].mxu0
      %v2739 = vadd.f32 0.0, %v2738
      %v2740 = vpop.f32.mrb[0].mxu0
      %v2741 = vpop.f32.mrb[0].mxu0
      %v2742 = vadd.f32 0.0, %v2741
      %v2743 = vpop.f32.mrb[0].mxu0
      %2744 = vmatprep.mubr.bf16.mxu0 0
      %2745 = vmatmul.mubr.bf16.gmra.mrb[0].mxu0 %v2527
      %v2746 = vpop.f32.mrb[0].mxu0
      %v2747 = vadd.f32 0.0, %v2746
      %v2748 = vpop.f32.mrb[0].mxu0
      %v2749 = vpop.f32.mrb[0].mxu0
      %v2750 = vadd.f32 0.0, %v2749
      %v2751 = vpop.f32.mrb[0].mxu0
      %2752 = vmatprep.mubr.bf16.mxu0 0
      %2753 = vmatmul.mubr.bf16.gmra.mrb[0].mxu0 %v2535
      %v2754 = vpop.f32.mrb[0].mxu0
      %v2755 = vadd.f32 0.0, %v2754
      %v2756 = vpop.f32.mrb[0].mxu0
      %v2757 = vpop.f32.mrb[0].mxu0
      %v2758 = vadd.f32 0.0, %v2757
      %v2759 = vpop.f32.mrb[0].mxu0
      %2760 = vmatprep.mubr.bf16.mxu0 0
      %2761 = vmatmul.mubr.bf16.gmra.mrb[0].mxu0 %v2543
      %v2762 = vpop.f32.mrb[0].mxu0
      %v2763 = vadd.f32 0.0, %v2762
      %v2764 = vpop.f32.mrb[0].mxu0
      %v2765 = vpop.f32.mrb[0].mxu0
      %v2766 = vadd.f32 0.0, %v2765
      %v2767 = vpop.f32.mrb[0].mxu0
      %2768 = vmatprep.mubr.bf16.mxu0 0
      %2769 = vmatmul.mubr.bf16.gmra.mrb[0].mxu0 %v2551
      %v2770 = vpop.f32.mrb[0].mxu0
      %v2771 = vadd.f32 0.0, %v2770
      %v2772 = vpop.f32.mrb[0].mxu0
      %v2773 = vpop.f32.mrb[0].mxu0
      %v2774 = vadd.f32 0.0, %v2773
      %v2775 = vpop.f32.mrb[0].mxu0
      %2776 = vmatprep.mubr.bf16.mxu0 0
      %2777 = vmatmul.mubr.bf16.gmra.mrb[0].mxu0 %v2559
      %v2778 = vpop.f32.mrb[0].mxu0
      %v2779 = vadd.f32 0.0, %v2778
      %v2780 = vpop.f32.mrb[0].mxu0
      %v2781 = vpop.f32.mrb[0].mxu0
      %v2782 = vadd.f32 0.0, %v2781
      %v2783 = vpop.f32.mrb[0].mxu0
      %2784 = vmatprep.mubr.bf16.mxu0 0
      %2785 = vmatmul.mubr.bf16.gmra.mrb[0].mxu0 %v2567
      %v2786 = vpop.f32.mrb[0].mxu0
      %v2787 = vadd.f32 0.0, %v2786
      %v2788 = vpop.f32.mrb[0].mxu0
      %v2789 = vpop.f32.mrb[0].mxu0
      %v2790 = vadd.f32 0.0, %v2789
      %v2791 = vpop.f32.mrb[0].mxu0
      %2792 = vmatprep.mubr.bf16.mxu0 0
      %2793 = vmatmul.mubr.bf16.gmra.mrb[0].mxu0 %v2575
      %v2794 = vpop.f32.mrb[0].mxu0
      %v2795 = vadd.f32 0.0, %v2794
      %v2796 = vpop.f32.mrb[0].mxu0
      %v2797 = vpop.f32.mrb[0].mxu0
      %v2798 = vadd.f32 0.0, %v2797
      %v2799 = vpop.f32.mrb[0].mxu0
      %2800 = vmatprep.mubr.bf16.mxu0 0
      %2801 = vmatmul.mubr.bf16.gmra.mrb[0].mxu0 %v2583
      %v2802 = vpop.f32.mrb[0].mxu0
      %v2803 = vadd.f32 0.0, %v2802
      %v2804 = vpop.f32.mrb[0].mxu0
      %v2805 = vpop.f32.mrb[0].mxu0
      %v2806 = vadd.f32 0.0, %v2805
      %v2807 = vpop.f32.mrb[0].mxu0
      %2808 = vmatprep.mubr.bf16.mxu0 0
      %2809 = vmatmul.mubr.bf16.gmra.mrb[0].mxu0 %v2591
      %v2810 = vpop.f32.mrb[0].mxu0
      %v2811 = vadd.f32 0.0, %v2810
      %v2812 = vpop.f32.mrb[0].mxu0
      %v2813 = vpop.f32.mrb[0].mxu0
      %v2814 = vadd.f32 0.0, %v2813
      %v2815 = vpop.f32.mrb[0].mxu0
      %2816 = vmatprep.mubr.bf16.mxu0 0
      %2817 = vmatmul.mubr.bf16.gmra.mrb[0].mxu0 %v2599
      %v2818 = vpop.f32.mrb[0].mxu0
      %v2819 = vadd.f32 0.0, %v2818
      %v2820 = vpop.f32.mrb[0].mxu0
      %v2821 = vpop.f32.mrb[0].mxu0
      %v2822 = vadd.f32 0.0, %v2821
      %v2823 = vpop.f32.mrb[0].mxu0
      %2824 = vmatprep.mubr.bf16.mxu0 0
      %2825 = vmatmul.mubr.bf16.gmra.mrb[0].mxu0 %v2607
      %v2826 = vpop.f32.mrb[0].mxu0
      %v2827 = vadd.f32 0.0, %v2826
      %v2828 = vpop.f32.mrb[0].mxu0
      %v2829 = vpop.f32.mrb[0].mxu0
      %v2830 = vadd.f32 0.0, %v2829
      %v2831 = vpop.f32.mrb[0].mxu0
      %2832 = vmatprep.mubr.bf16.mxu0 0
      %2833 = vmatmul.mubr.bf16.gmra.mrb[0].mxu0 %v2615
      %v2834 = vpop.f32.mrb[0].mxu0
      %v2835 = vadd.f32 0.0, %v2834
      %v2836 = vpop.f32.mrb[0].mxu0
      %v2837 = vpop.f32.mrb[0].mxu0
      %v2838 = vadd.f32 0.0, %v2837
      %v2839 = vpop.f32.mrb[0].mxu0
      %2840 = vdwg.mxu0
      %v2857 = vunpack.c.l.b16 %v2450
      %v2858 = vunpack.c.l.b16 %v2451
      %v2859 = vunpack.c.l.b16 %v2452
      %v2860 = vunpack.c.l.b16 %v2453
      %v2861 = vunpack.c.l.b16 %v2454
      %v2862 = vunpack.c.l.b16 %v2455
      %v2863 = vunpack.c.l.b16 %v2456
      %v2864 = vunpack.c.l.b16 %v2457
      %v2865 = vunpack.c.l.b16 %v2458
      %v2866 = vunpack.c.l.b16 %v2459
      %v2867 = vunpack.c.l.b16 %v2460
      %v2868 = vunpack.c.l.b16 %v2461
      %v2869 = vunpack.c.l.b16 %v2462
      %v2870 = vunpack.c.l.b16 %v2463
      %v2871 = vunpack.c.l.b16 %v2464
      %v2872 = vunpack.c.l.b16 %v2465
      %v2873 = vpack.c.b16 %v2858, %v2857
      %v2874 = vpack.c.b16 %v2860, %v2859
      %v2875 = vpack.c.b16 %v2862, %v2861
      %v2876 = vpack.c.b16 %v2864, %v2863
      %v2877 = vpack.c.b16 %v2866, %v2865
      %v2878 = vpack.c.b16 %v2868, %v2867
      %v2879 = vpack.c.b16 %v2870, %v2869
      %v2880 = vpack.c.b16 %v2872, %v2871
      %2889 = vmatprep.subr.bf16.mxu0 0
      %2890 = vmatpush1.bf16.msra.mxu0 %v2873
      %2891 = vmatprep.subr.bf16.mxu0 0
      %2892 = vmatpush1.bf16.msra.mxu0 %v2874
      %2893 = vmatprep.subr.bf16.mxu0 0
      %2894 = vmatpush1.bf16.msra.mxu0 %v2875
      %2895 = vmatprep.subr.bf16.mxu0 0
      %2896 = vmatpush1.bf16.msra.mxu0 %v2876
      %2897 = vmatprep.subr.bf16.mxu0 0
      %2898 = vmatpush1.bf16.msra.mxu0 %v2877
      %2899 = vmatprep.subr.bf16.mxu0 0
      %2900 = vmatpush1.bf16.msra.mxu0 %v2878
      %2901 = vmatprep.subr.bf16.mxu0 0
      %2902 = vmatpush1.bf16.msra.mxu0 %v2879
      %2903 = vmatprep.subr.bf16.mxu0 0
      %2904 = vmatpush1.bf16.msra.mxu0 %v2880
      %2905 = vmatprep.subr.bf16.mxu0 0
      %2906 = vmatpush1.bf16.msra.mxu0 0
      %2907 = vmatprep.subr.bf16.mxu0 0
      %2908 = vmatpush1.bf16.msra.mxu0 0
      %2909 = vmatprep.subr.bf16.mxu0 0
      %2910 = vmatpush1.bf16.msra.mxu0 0
      %2911 = vmatprep.subr.bf16.mxu0 0
      %2912 = vmatpush1.bf16.msra.mxu0 0
      %2913 = vmatprep.subr.bf16.mxu0 0
      %2914 = vmatpush1.bf16.msra.mxu0 0
      %2915 = vmatprep.subr.bf16.mxu0 0
      %2916 = vmatpush1.bf16.msra.mxu0 0
      %2917 = vmatprep.subr.bf16.mxu0 0
      %2918 = vmatpush1.bf16.msra.mxu0 0
      %2919 = vmatprep.subr.bf16.mxu0 0
      %2920 = vmatpush1.bf16.msra.mxu0 0
      %2921 = vmatprep.mubr.bf16.mxu0 0
      %2922 = vmatmul.mubr.bf16.gmra.mrb[0].mxu0 0
      %v2923 = vpop.f32.mrb[0].mxu0
      %v2924 = vadd.f32 %v2715, %v2923
      %v2925 = vpop.f32.mrb[0].mxu0
      %v2926 = vpop.f32.mrb[0].mxu0
      %v2927 = vadd.f32 %v2718, %v2926
      %v2928 = vpop.f32.mrb[0].mxu0
      %2929 = vmatprep.mubr.bf16.mxu0 0
      %2930 = vmatmul.mubr.bf16.gmra.mrb[0].mxu0 %v2435
      %v2931 = vpop.f32.mrb[0].mxu0
      %v2932 = vadd.f32 %v2723, %v2931
      %v2933 = vpop.f32.mrb[0].mxu0
      %v2934 = vpop.f32.mrb[0].mxu0
      %v2935 = vadd.f32 %v2726, %v2934
      %v2936 = vpop.f32.mrb[0].mxu0
      %2937 = vmatprep.mubr.bf16.mxu0 0
      %2938 = vmatmul.mubr.bf16.gmra.mrb[0].mxu0 %v2436
      %v2939 = vpop.f32.mrb[0].mxu0
      %v2940 = vadd.f32 %v2731, %v2939
      %v2941 = vpop.f32.mrb[0].mxu0
      %v2942 = vpop.f32.mrb[0].mxu0
      %v2943 = vadd.f32 %v2734, %v2942
      %v2944 = vpop.f32.mrb[0].mxu0
      %2945 = vmatprep.mubr.bf16.mxu0 0
      %2946 = vmatmul.mubr.bf16.gmra.mrb[0].mxu0 %v2437
      %v2947 = vpop.f32.mrb[0].mxu0
      %v2948 = vadd.f32 %v2739, %v2947
      %v2949 = vpop.f32.mrb[0].mxu0
      %v2950 = vpop.f32.mrb[0].mxu0
      %v2951 = vadd.f32 %v2742, %v2950
      %v2952 = vpop.f32.mrb[0].mxu0
      %2953 = vmatprep.mubr.bf16.mxu0 0
      %2954 = vmatmul.mubr.bf16.gmra.mrb[0].mxu0 %v2438
      %v2955 = vpop.f32.mrb[0].mxu0
      %v2956 = vadd.f32 %v2747, %v2955
      %v2957 = vpop.f32.mrb[0].mxu0
      %v2958 = vpop.f32.mrb[0].mxu0
      %v2959 = vadd.f32 %v2750, %v2958
      %v2960 = vpop.f32.mrb[0].mxu0
      %2961 = vmatprep.mubr.bf16.mxu0 0
      %2962 = vmatmul.mubr.bf16.gmra.mrb[0].mxu0 %v2439
      %v2963 = vpop.f32.mrb[0].mxu0
      %v2964 = vadd.f32 %v2755, %v2963
      %v2965 = vpop.f32.mrb[0].mxu0
      %v2966 = vpop.f32.mrb[0].mxu0
      %v2967 = vadd.f32 %v2758, %v2966
      %v2968 = vpop.f32.mrb[0].mxu0
      %2969 = vmatprep.mubr.bf16.mxu0 0
      %2970 = vmatmul.mubr.bf16.gmra.mrb[0].mxu0 %v2440
      %v2971 = vpop.f32.mrb[0].mxu0
      %v2972 = vadd.f32 %v2763, %v2971
      %v2973 = vpop.f32.mrb[0].mxu0
      %v2974 = vpop.f32.mrb[0].mxu0
      %v2975 = vadd.f32 %v2766, %v2974
      %v2976 = vpop.f32.mrb[0].mxu0
      %2977 = vmatprep.mubr.bf16.mxu0 0
      %2978 = vmatmul.mubr.bf16.gmra.mrb[0].mxu0 %v2441
      %v2979 = vpop.f32.mrb[0].mxu0
      %v2980 = vadd.f32 %v2771, %v2979
      %v2981 = vpop.f32.mrb[0].mxu0
      %v2982 = vpop.f32.mrb[0].mxu0
      %v2983 = vadd.f32 %v2774, %v2982
      %v2984 = vpop.f32.mrb[0].mxu0
      %2985 = vmatprep.mubr.bf16.mxu0 0
      %2986 = vmatmul.mubr.bf16.gmra.mrb[0].mxu0 %v2442
      %v2987 = vpop.f32.mrb[0].mxu0
      %v2988 = vadd.f32 %v2779, %v2987
      %v2989 = vpop.f32.mrb[0].mxu0
      %v2990 = vpop.f32.mrb[0].mxu0
      %v2991 = vadd.f32 %v2782, %v2990
      %v2992 = vpop.f32.mrb[0].mxu0
      %2993 = vmatprep.mubr.bf16.mxu0 0
      %2994 = vmatmul.mubr.bf16.gmra.mrb[0].mxu0 %v2443
      %v2995 = vpop.f32.mrb[0].mxu0
      %v2996 = vadd.f32 %v2787, %v2995
      %v2997 = vpop.f32.mrb[0].mxu0
      %v2998 = vpop.f32.mrb[0].mxu0
      %v2999 = vadd.f32 %v2790, %v2998
      %v3000 = vpop.f32.mrb[0].mxu0
      %3001 = vmatprep.mubr.bf16.mxu0 0
      %3002 = vmatmul.mubr.bf16.gmra.mrb[0].mxu0 %v2444
      %v3003 = vpop.f32.mrb[0].mxu0
      %v3004 = vadd.f32 %v2795, %v3003
      %v3005 = vpop.f32.mrb[0].mxu0
      %v3006 = vpop.f32.mrb[0].mxu0
      %v3007 = vadd.f32 %v2798, %v3006
      %v3008 = vpop.f32.mrb[0].mxu0
      %3009 = vmatprep.mubr.bf16.mxu0 0
      %3010 = vmatmul.mubr.bf16.gmra.mrb[0].mxu0 %v2445
      %v3011 = vpop.f32.mrb[0].mxu0
      %v3012 = vadd.f32 %v2803, %v3011
      %v3013 = vpop.f32.mrb[0].mxu0
      %v3014 = vpop.f32.mrb[0].mxu0
      %v3015 = vadd.f32 %v2806, %v3014
      %v3016 = vpop.f32.mrb[0].mxu0
      %3017 = vmatprep.mubr.bf16.mxu0 0
      %3018 = vmatmul.mubr.bf16.gmra.mrb[0].mxu0 %v2446
      %v3019 = vpop.f32.mrb[0].mxu0
      %v3020 = vadd.f32 %v2811, %v3019
      %v3021 = vpop.f32.mrb[0].mxu0
      %v3022 = vpop.f32.mrb[0].mxu0
      %v3023 = vadd.f32 %v2814, %v3022
      %v3024 = vpop.f32.mrb[0].mxu0
      %3025 = vmatprep.mubr.bf16.mxu0 0
      %3026 = vmatmul.mubr.bf16.gmra.mrb[0].mxu0 %v2447
      %v3027 = vpop.f32.mrb[0].mxu0
      %v3028 = vadd.f32 %v2819, %v3027
      %v3029 = vpop.f32.mrb[0].mxu0
      %v3030 = vpop.f32.mrb[0].mxu0
      %v3031 = vadd.f32 %v2822, %v3030
      %v3032 = vpop.f32.mrb[0].mxu0
      %3033 = vmatprep.mubr.bf16.mxu0 0
      %3034 = vmatmul.mubr.bf16.gmra.mrb[0].mxu0 %v2448
      %v3035 = vpop.f32.mrb[0].mxu0
      %v3036 = vadd.f32 %v2827, %v3035
      %v3037 = vpop.f32.mrb[0].mxu0
      %v3038 = vpop.f32.mrb[0].mxu0
      %v3039 = vadd.f32 %v2830, %v3038
      %v3040 = vpop.f32.mrb[0].mxu0
      %3041 = vmatprep.mubr.bf16.mxu0 0
      %3042 = vmatmul.mubr.bf16.gmra.mrb[0].mxu0 %v2449
      %v3043 = vpop.f32.mrb[0].mxu0
      %v3044 = vadd.f32 %v2835, %v3043
      %v3045 = vpop.f32.mrb[0].mxu0
      %v3046 = vpop.f32.mrb[0].mxu0
      %v3047 = vadd.f32 %v2838, %v3046
      %v3048 = vpop.f32.mrb[0].mxu0
      %3049 = vdwg.mxu0
      %v3050 = vsel %vm1630, 1, 0
      %v3051 = vsel %vm1631, 1, 0
      %v3052 = vsel %vm1632, 1, 0
      %v3053 = vsel %vm1633, 1, 0
      %v3054 = vsel %vm1634, 1, 0
      %v3055 = vsel %vm1635, 1, 0
      %v3056 = vsel %vm1636, 1, 0
      %v3057 = vsel %vm1637, 1, 0
      %v3058 = vsel %vm1638, 1, 0
      %v3059 = vsel %vm1639, 1, 0
      %v3060 = vsel %vm1640, 1, 0
      %v3061 = vsel %vm1641, 1, 0
      %v3062 = vsel %vm1642, 1, 0
      %v3063 = vsel %vm1643, 1, 0
      %v3064 = vsel %vm1644, 1, 0
      %v3065 = vsel %vm1645, 1, 0
      %v3066 = vsel %vm1646, 1, 0
      %v3067 = vsel %vm1647, 1, 0
      %v3068 = vsel %vm1648, 1, 0
      %v3069 = vsel %vm1649, 1, 0
      %v3070 = vsel %vm1650, 1, 0
      %v3071 = vsel %vm1651, 1, 0
      %v3072 = vsel %vm1652, 1, 0
      %v3073 = vsel %vm1653, 1, 0
      %v3074 = vsel %vm1654, 1, 0
      %v3075 = vsel %vm1655, 1, 0
      %v3076 = vsel %vm1656, 1, 0
      %v3077 = vsel %vm1657, 1, 0
      %v3078 = vsel %vm1658, 1, 0
      %v3079 = vsel %vm1659, 1, 0
      %v3080 = vsel %vm1660, 1, 0
      %v3081 = vsel %vm1661, 1, 0
      %vm3082 = vcmp.eq.s32.totalorder %v3050, 1
      %vm3083 = vcmp.eq.s32.totalorder %v3051, 1
      %vm3084 = vcmp.eq.s32.totalorder %v3052, 1
      %vm3085 = vcmp.eq.s32.totalorder %v3053, 1
      %vm3086 = vcmp.eq.s32.totalorder %v3054, 1
      %vm3087 = vcmp.eq.s32.totalorder %v3055, 1
      %vm3088 = vcmp.eq.s32.totalorder %v3056, 1
      %vm3089 = vcmp.eq.s32.totalorder %v3057, 1
      %vm3090 = vcmp.eq.s32.totalorder %v3058, 1
      %vm3091 = vcmp.eq.s32.totalorder %v3059, 1
      %vm3092 = vcmp.eq.s32.totalorder %v3060, 1
      %vm3093 = vcmp.eq.s32.totalorder %v3061, 1
      %vm3094 = vcmp.eq.s32.totalorder %v3062, 1
      %vm3095 = vcmp.eq.s32.totalorder %v3063, 1
      %vm3096 = vcmp.eq.s32.totalorder %v3064, 1
      %vm3097 = vcmp.eq.s32.totalorder %v3065, 1
      %vm3098 = vcmp.eq.s32.totalorder %v3066, 1
      %vm3099 = vcmp.eq.s32.totalorder %v3067, 1
      %vm3100 = vcmp.eq.s32.totalorder %v3068, 1
      %vm3101 = vcmp.eq.s32.totalorder %v3069, 1
      %vm3102 = vcmp.eq.s32.totalorder %v3070, 1
      %vm3103 = vcmp.eq.s32.totalorder %v3071, 1
      %vm3104 = vcmp.eq.s32.totalorder %v3072, 1
      %vm3105 = vcmp.eq.s32.totalorder %v3073, 1
      %vm3106 = vcmp.eq.s32.totalorder %v3074, 1
      %vm3107 = vcmp.eq.s32.totalorder %v3075, 1
      %vm3108 = vcmp.eq.s32.totalorder %v3076, 1
      %vm3109 = vcmp.eq.s32.totalorder %v3077, 1
      %vm3110 = vcmp.eq.s32.totalorder %v3078, 1
      %vm3111 = vcmp.eq.s32.totalorder %v3079, 1
      %vm3112 = vcmp.eq.s32.totalorder %v3080, 1
      %vm3113 = vcmp.eq.s32.totalorder %v3081, 1
      %vm3114 = vmpackc.low %vm3082, %vm3082
      %vm3115 = vmpackc.low %vm3083, %vm3083
      %vm3116 = vmpackc.low %vm3084, %vm3084
      %vm3117 = vmpackc.low %vm3085, %vm3085
      %vm3118 = vmpackc.low %vm3086, %vm3086
      %vm3119 = vmpackc.low %vm3087, %vm3087
      %vm3120 = vmpackc.low %vm3088, %vm3088
      %vm3121 = vmpackc.low %vm3089, %vm3089
      %vm3122 = vmpackc.low %vm3090, %vm3090
      %vm3123 = vmpackc.low %vm3091, %vm3091
      %vm3124 = vmpackc.low %vm3092, %vm3092
      %vm3125 = vmpackc.low %vm3093, %vm3093
      %vm3126 = vmpackc.low %vm3094, %vm3094
      %vm3127 = vmpackc.low %vm3095, %vm3095
      %vm3128 = vmpackc.low %vm3096, %vm3096
      %vm3129 = vmpackc.low %vm3097, %vm3097
      %vm3130 = vmpackc.low %vm3098, %vm3098
      %vm3131 = vmpackc.low %vm3099, %vm3099
      %vm3132 = vmpackc.low %vm3100, %vm3100
      %vm3133 = vmpackc.low %vm3101, %vm3101
      %vm3134 = vmpackc.low %vm3102, %vm3102
      %vm3135 = vmpackc.low %vm3103, %vm3103
      %vm3136 = vmpackc.low %vm3104, %vm3104
      %vm3137 = vmpackc.low %vm3105, %vm3105
      %vm3138 = vmpackc.low %vm3106, %vm3106
      %vm3139 = vmpackc.low %vm3107, %vm3107
      %vm3140 = vmpackc.low %vm3108, %vm3108
      %vm3141 = vmpackc.low %vm3109, %vm3109
      %vm3142 = vmpackc.low %vm3110, %vm3110
      %vm3143 = vmpackc.low %vm3111, %vm3111
      %vm3144 = vmpackc.low %vm3112, %vm3112
      %vm3145 = vmpackc.low %vm3113, %vm3113
      %v3146 = vsel %vm3114, 65537, 0
      %v3147 = vsel %vm3115, 65537, 0
      %v3148 = vsel %vm3116, 65537, 0
      %v3149 = vsel %vm3117, 65537, 0
      %v3150 = vsel %vm3118, 65537, 0
      %v3151 = vsel %vm3119, 65537, 0
      %v3152 = vsel %vm3120, 65537, 0
      %v3153 = vsel %vm3121, 65537, 0
      %v3154 = vsel %vm3122, 65537, 0
      %v3155 = vsel %vm3123, 65537, 0
      %v3156 = vsel %vm3124, 65537, 0
      %v3157 = vsel %vm3125, 65537, 0
      %v3158 = vsel %vm3126, 65537, 0
      %v3159 = vsel %vm3127, 65537, 0
      %v3160 = vsel %vm3128, 65537, 0
      %v3161 = vsel %vm3129, 65537, 0
      %v3162 = vsel %vm3130, 65537, 0
      %v3163 = vsel %vm3131, 65537, 0
      %v3164 = vsel %vm3132, 65537, 0
      %v3165 = vsel %vm3133, 65537, 0
      %v3166 = vsel %vm3134, 65537, 0
      %v3167 = vsel %vm3135, 65537, 0
      %v3168 = vsel %vm3136, 65537, 0
      %v3169 = vsel %vm3137, 65537, 0
      %v3170 = vsel %vm3138, 65537, 0
      %v3171 = vsel %vm3139, 65537, 0
      %v3172 = vsel %vm3140, 65537, 0
      %v3173 = vsel %vm3141, 65537, 0
      %v3174 = vsel %vm3142, 65537, 0
      %v3175 = vsel %vm3143, 65537, 0
      %v3176 = vsel %vm3144, 65537, 0
      %v3177 = vsel %vm3145, 65537, 0
      %v3178 = vunpack.c.l.b16 %v3146
      %v3179 = vunpack.c.l.b16 %v3147
      %v3180 = vunpack.c.l.b16 %v3148
      %v3181 = vunpack.c.l.b16 %v3149
      %v3182 = vunpack.c.l.b16 %v3150
      %v3183 = vunpack.c.l.b16 %v3151
      %v3184 = vunpack.c.l.b16 %v3152
      %v3185 = vunpack.c.l.b16 %v3153
      %v3186 = vunpack.c.l.b16 %v3154
      %v3187 = vunpack.c.l.b16 %v3155
      %v3188 = vunpack.c.l.b16 %v3156
      %v3189 = vunpack.c.l.b16 %v3157
      %v3190 = vunpack.c.l.b16 %v3158
      %v3191 = vunpack.c.l.b16 %v3159
      %v3192 = vunpack.c.l.b16 %v3160
      %v3193 = vunpack.c.l.b16 %v3161
      %v3194 = vunpack.c.l.b16 %v3162
      %v3195 = vunpack.c.l.b16 %v3163
      %v3196 = vunpack.c.l.b16 %v3164
      %v3197 = vunpack.c.l.b16 %v3165
      %v3198 = vunpack.c.l.b16 %v3166
      %v3199 = vunpack.c.l.b16 %v3167
      %v3200 = vunpack.c.l.b16 %v3168
      %v3201 = vunpack.c.l.b16 %v3169
      %v3202 = vunpack.c.l.b16 %v3170
      %v3203 = vunpack.c.l.b16 %v3171
      %v3204 = vunpack.c.l.b16 %v3172
      %v3205 = vunpack.c.l.b16 %v3173
      %v3206 = vunpack.c.l.b16 %v3174
      %v3207 = vunpack.c.l.b16 %v3175
      %v3208 = vunpack.c.l.b16 %v3176
      %v3209 = vunpack.c.l.b16 %v3177
      %v3210 = vpack.c.b16 %v3179, %v3178
      %v3211 = vpack.c.b16 %v3181, %v3180
      %v3212 = vpack.c.b16 %v3183, %v3182
      %v3213 = vpack.c.b16 %v3185, %v3184
      %v3214 = vpack.c.b16 %v3187, %v3186
      %v3215 = vpack.c.b16 %v3189, %v3188
      %v3216 = vpack.c.b16 %v3191, %v3190
      %v3217 = vpack.c.b16 %v3193, %v3192
      %v3218 = vpack.c.b16 %v3195, %v3194
      %v3219 = vpack.c.b16 %v3197, %v3196
      %v3220 = vpack.c.b16 %v3199, %v3198
      %v3221 = vpack.c.b16 %v3201, %v3200
      %v3222 = vpack.c.b16 %v3203, %v3202
      %v3223 = vpack.c.b16 %v3205, %v3204
      %v3224 = vpack.c.b16 %v3207, %v3206
      %v3225 = vpack.c.b16 %v3209, %v3208
      %v3226 = vrot.slane %v3210, 7
      %v3227 = vrot.slane %v3211, 7
      %v3228 = vsel %vm2247, %v3226, %v3227
      %v3229 = vrot.slane %v3212, 7
      %v3230 = vsel %vm2247, %v3227, %v3229
      %v3231 = vrot.slane %v3213, 7
      %v3232 = vsel %vm2247, %v3229, %v3231
      %v3233 = vrot.slane %v3214, 7
      %v3234 = vsel %vm2247, %v3231, %v3233
      %v3235 = vrot.slane %v3215, 7
      %v3236 = vsel %vm2247, %v3233, %v3235
      %v3237 = vrot.slane %v3216, 7
      %v3238 = vsel %vm2247, %v3235, %v3237
      %v3239 = vrot.slane %v3217, 7
      %v3240 = vsel %vm2247, %v3237, %v3239
      %v3241 = vrot.slane %v3218, 7
      %v3242 = vsel %vm2247, %v3239, %v3241
      %v3243 = vrot.slane %v3219, 7
      %v3244 = vsel %vm2247, %v3241, %v3243
      %v3245 = vrot.slane %v3220, 7
      %v3246 = vsel %vm2247, %v3243, %v3245
      %v3247 = vrot.slane %v3221, 7
      %v3248 = vsel %vm2247, %v3245, %v3247
      %v3249 = vrot.slane %v3222, 7
      %v3250 = vsel %vm2247, %v3247, %v3249
      %v3251 = vrot.slane %v3223, 7
      %v3252 = vsel %vm2247, %v3249, %v3251
      %v3253 = vrot.slane %v3224, 7
      %v3254 = vsel %vm2247, %v3251, %v3253
      %v3255 = vrot.slane %v3225, 7
      %v3256 = vsel %vm2247, %v3253, %v3255
      %vm3257 = vcmp.ne.s16.totalorder %v3228, 0
      %vm3258 = vcmp.ne.s16.totalorder %v3230, 0
      %vm3259 = vcmp.ne.s16.totalorder %v3232, 0
      %vm3260 = vcmp.ne.s16.totalorder %v3234, 0
      %vm3261 = vcmp.ne.s16.totalorder %v3236, 0
      %vm3262 = vcmp.ne.s16.totalorder %v3238, 0
      %vm3263 = vcmp.ne.s16.totalorder %v3240, 0
      %vm3264 = vcmp.ne.s16.totalorder %v3242, 0
      %vm3265 = vcmp.ne.s16.totalorder %v3244, 0
      %vm3266 = vcmp.ne.s16.totalorder %v3246, 0
      %vm3267 = vcmp.ne.s16.totalorder %v3248, 0
      %vm3268 = vcmp.ne.s16.totalorder %v3250, 0
      %vm3269 = vcmp.ne.s16.totalorder %v3252, 0
      %vm3270 = vcmp.ne.s16.totalorder %v3254, 0
      %vm3271 = vcmp.ne.s16.totalorder %v3256, 0
      %vm3272 = vcmp.ne.s16.totalorder %v3255, 0
      %v3273 = vsel %vm3257, %v2249, 0
      %v3274 = vsel %vm3258, %v2117, 0
      %v3275 = vsel %vm3259, %v2125, 0
      %v3276 = vsel %vm3260, %v2133, 0
      %v3277 = vsel %vm3261, %v2141, 0
      %v3278 = vsel %vm3262, %v2149, 0
      %v3279 = vsel %vm3263, %v2157, 0
      %v3280 = vsel %vm3264, %v2165, 0
      %v3281 = vsel %vm3265, %v2173, 0
      %v3282 = vsel %vm3266, %v2181, 0
      %v3283 = vsel %vm3267, %v2189, 0
      %v3284 = vsel %vm3268, %v2197, 0
      %v3285 = vsel %vm3269, %v2205, 0
      %v3286 = vsel %vm3270, %v2213, 0
      %v3287 = vsel %vm3271, %v2221, 0
      %v3288 = vsel %vm3272, %v2229, 0
      %s3289 = scalar_lea.vmem %s5, 128
      %v3290 = vld [vmem:[%s3289] sm:$0xf]
      %v3291 = vld [vmem:[%s3289 + $0x4] sm:$0xf]
      %v3292 = vld [vmem:[%s3289 + $0x8] sm:$0xf]
      %v3293 = vld [vmem:[%s3289 + $0xc] sm:$0xf]
      %v3294 = vld [vmem:[%s3289 + $0x10] sm:$0xf]
      %v3295 = vld [vmem:[%s3289 + $0x14] sm:$0xf]
      %v3296 = vld [vmem:[%s3289 + $0x18] sm:$0xf]
      %v3297 = vld [vmem:[%s3289 + $0x1c] sm:$0xf]
      %v3298 = vld [vmem:[%s3289 + $0x20] sm:$0xf]
      %v3299 = vld [vmem:[%s3289 + $0x24] sm:$0xf]
      %v3300 = vld [vmem:[%s3289 + $0x28] sm:$0xf]
      %v3301 = vld [vmem:[%s3289 + $0x2c] sm:$0xf]
      %v3302 = vld [vmem:[%s3289 + $0x30] sm:$0xf]
      %v3303 = vld [vmem:[%s3289 + $0x34] sm:$0xf]
      %v3304 = vld [vmem:[%s3289 + $0x38] sm:$0xf]
      %v3305 = vld [vmem:[%s3289 + $0x3c] sm:$0xf]
      %vm3323 = vcmask 1046528
      %v3324 = vrot.slane 0, 1
      %v3325 = vrot.slane %v3273, 1
      %v3326 = vsel %vm3323, %v3324, %v3325
      %v3327 = vrot.slane %v3274, 1
      %v3328 = vsel %vm3323, %v3325, %v3327
      %v3329 = vrot.slane %v3275, 1
      %v3330 = vsel %vm3323, %v3327, %v3329
      %v3331 = vrot.slane %v3276, 1
      %v3332 = vsel %vm3323, %v3329, %v3331
      %v3333 = vrot.slane %v3277, 1
      %v3334 = vsel %vm3323, %v3331, %v3333
      %v3335 = vrot.slane %v3278, 1
      %v3336 = vsel %vm3323, %v3333, %v3335
      %v3337 = vrot.slane %v3279, 1
      %v3338 = vsel %vm3323, %v3335, %v3337
      %v3339 = vrot.slane %v3280, 1
      %v3340 = vsel %vm3323, %v3337, %v3339
      %v3341 = vrot.slane %v3281, 1
      %v3342 = vsel %vm3323, %v3339, %v3341
      %v3343 = vrot.slane %v3282, 1
      %v3344 = vsel %vm3323, %v3341, %v3343
      %v3345 = vrot.slane %v3283, 1
      %v3346 = vsel %vm3323, %v3343, %v3345
      %v3347 = vrot.slane %v3284, 1
      %v3348 = vsel %vm3323, %v3345, %v3347
      %v3349 = vrot.slane %v3285, 1
      %v3350 = vsel %vm3323, %v3347, %v3349
      %v3351 = vrot.slane %v3286, 1
      %v3352 = vsel %vm3323, %v3349, %v3351
      %v3353 = vrot.slane %v3287, 1
      %v3354 = vsel %vm3323, %v3351, %v3353
      %v3355 = vrot.slane %v3288, 1
      %v3356 = vsel %vm3323, %v3353, %v3355
      %v3389 = vunpack.c.l.b16 %v3290
      %v3390 = vunpack.c.l.b16 %v3291
      %v3391 = vunpack.c.l.b16 %v3292
      %v3392 = vunpack.c.l.b16 %v3293
      %v3393 = vunpack.c.l.b16 %v3294
      %v3394 = vunpack.c.l.b16 %v3295
      %v3395 = vunpack.c.l.b16 %v3296
      %v3396 = vunpack.c.l.b16 %v3297
      %v3397 = vunpack.c.l.b16 %v3298
      %v3398 = vunpack.c.l.b16 %v3299
      %v3399 = vunpack.c.l.b16 %v3300
      %v3400 = vunpack.c.l.b16 %v3301
      %v3401 = vunpack.c.l.b16 %v3302
      %v3402 = vunpack.c.l.b16 %v3303
      %v3403 = vunpack.c.l.b16 %v3304
      %v3404 = vunpack.c.l.b16 %v3305
      %v3405 = vpack.c.b16 %v3390, %v3389
      %v3406 = vpack.c.b16 %v3392, %v3391
      %v3407 = vpack.c.b16 %v3394, %v3393
      %v3408 = vpack.c.b16 %v3396, %v3395
      %v3409 = vpack.c.b16 %v3398, %v3397
      %v3410 = vpack.c.b16 %v3400, %v3399
      %v3411 = vpack.c.b16 %v3402, %v3401
      %v3412 = vpack.c.b16 %v3404, %v3403
      %3421 = vmatprep.subr.bf16.mxu0 0
      %3422 = vmatpush1.bf16.msra.mxu0 %v3405
      %3423 = vmatprep.subr.bf16.mxu0 0
      %3424 = vmatpush1.bf16.msra.mxu0 %v3406
      %3425 = vmatprep.subr.bf16.mxu0 0
      %3426 = vmatpush1.bf16.msra.mxu0 %v3407
      %3427 = vmatprep.subr.bf16.mxu0 0
      %3428 = vmatpush1.bf16.msra.mxu0 %v3408
      %3429 = vmatprep.subr.bf16.mxu0 0
      %3430 = vmatpush1.bf16.msra.mxu0 %v3409
      %3431 = vmatprep.subr.bf16.mxu0 0
      %3432 = vmatpush1.bf16.msra.mxu0 %v3410
      %3433 = vmatprep.subr.bf16.mxu0 0
      %3434 = vmatpush1.bf16.msra.mxu0 %v3411
      %3435 = vmatprep.subr.bf16.mxu0 0
      %3436 = vmatpush1.bf16.msra.mxu0 %v3412
      %3437 = vmatprep.subr.bf16.mxu0 0
      %3438 = vmatpush1.bf16.msra.mxu0 0
      %3439 = vmatprep.subr.bf16.mxu0 0
      %3440 = vmatpush1.bf16.msra.mxu0 0
      %3441 = vmatprep.subr.bf16.mxu0 0
      %3442 = vmatpush1.bf16.msra.mxu0 0
      %3443 = vmatprep.subr.bf16.mxu0 0
      %3444 = vmatpush1.bf16.msra.mxu0 0
      %3445 = vmatprep.subr.bf16.mxu0 0
      %3446 = vmatpush1.bf16.msra.mxu0 0
      %3447 = vmatprep.subr.bf16.mxu0 0
      %3448 = vmatpush1.bf16.msra.mxu0 0
      %3449 = vmatprep.subr.bf16.mxu0 0
      %3450 = vmatpush1.bf16.msra.mxu0 0
      %3451 = vmatprep.subr.bf16.mxu0 0
      %3452 = vmatpush1.bf16.msra.mxu0 0
      %3453 = vmatprep.mubr.bf16.mxu0 0
      %3454 = vmatmul.mubr.bf16.gmra.mrb[0].mxu0 %v3326
      %v3455 = vpop.f32.mrb[0].mxu0
      %v3456 = vadd.f32 0.0, %v3455
      %v3457 = vpop.f32.mrb[0].mxu0
      %v3458 = vpop.f32.mrb[0].mxu0
      %v3459 = vadd.f32 0.0, %v3458
      %v3460 = vpop.f32.mrb[0].mxu0
      %3461 = vmatprep.mubr.bf16.mxu0 0
      %3462 = vmatmul.mubr.bf16.gmra.mrb[0].mxu0 %v3328
      %v3463 = vpop.f32.mrb[0].mxu0
      %v3464 = vadd.f32 0.0, %v3463
      %v3465 = vpop.f32.mrb[0].mxu0
      %v3466 = vpop.f32.mrb[0].mxu0
      %v3467 = vadd.f32 0.0, %v3466
      %v3468 = vpop.f32.mrb[0].mxu0
      %3469 = vmatprep.mubr.bf16.mxu0 0
      %3470 = vmatmul.mubr.bf16.gmra.mrb[0].mxu0 %v3330
      %v3471 = vpop.f32.mrb[0].mxu0
      %v3472 = vadd.f32 0.0, %v3471
      %v3473 = vpop.f32.mrb[0].mxu0
      %v3474 = vpop.f32.mrb[0].mxu0
      %v3475 = vadd.f32 0.0, %v3474
      %v3476 = vpop.f32.mrb[0].mxu0
      %3477 = vmatprep.mubr.bf16.mxu0 0
      %3478 = vmatmul.mubr.bf16.gmra.mrb[0].mxu0 %v3332
      %v3479 = vpop.f32.mrb[0].mxu0
      %v3480 = vadd.f32 0.0, %v3479
      %v3481 = vpop.f32.mrb[0].mxu0
      %v3482 = vpop.f32.mrb[0].mxu0
      %v3483 = vadd.f32 0.0, %v3482
      %v3484 = vpop.f32.mrb[0].mxu0
      %3485 = vmatprep.mubr.bf16.mxu0 0
      %3486 = vmatmul.mubr.bf16.gmra.mrb[0].mxu0 %v3334
      %v3487 = vpop.f32.mrb[0].mxu0
      %v3488 = vadd.f32 0.0, %v3487
      %v3489 = vpop.f32.mrb[0].mxu0
      %v3490 = vpop.f32.mrb[0].mxu0
      %v3491 = vadd.f32 0.0, %v3490
      %v3492 = vpop.f32.mrb[0].mxu0
      %3493 = vmatprep.mubr.bf16.mxu0 0
      %3494 = vmatmul.mubr.bf16.gmra.mrb[0].mxu0 %v3336
      %v3495 = vpop.f32.mrb[0].mxu0
      %v3496 = vadd.f32 0.0, %v3495
      %v3497 = vpop.f32.mrb[0].mxu0
      %v3498 = vpop.f32.mrb[0].mxu0
      %v3499 = vadd.f32 0.0, %v3498
      %v3500 = vpop.f32.mrb[0].mxu0
      %3501 = vmatprep.mubr.bf16.mxu0 0
      %3502 = vmatmul.mubr.bf16.gmra.mrb[0].mxu0 %v3338
      %v3503 = vpop.f32.mrb[0].mxu0
      %v3504 = vadd.f32 0.0, %v3503
      %v3505 = vpop.f32.mrb[0].mxu0
      %v3506 = vpop.f32.mrb[0].mxu0
      %v3507 = vadd.f32 0.0, %v3506
      %v3508 = vpop.f32.mrb[0].mxu0
      %3509 = vmatprep.mubr.bf16.mxu0 0
      %3510 = vmatmul.mubr.bf16.gmra.mrb[0].mxu0 %v3340
      %v3511 = vpop.f32.mrb[0].mxu0
      %v3512 = vadd.f32 0.0, %v3511
      %v3513 = vpop.f32.mrb[0].mxu0
      %v3514 = vpop.f32.mrb[0].mxu0
      %v3515 = vadd.f32 0.0, %v3514
      %v3516 = vpop.f32.mrb[0].mxu0
      %3517 = vmatprep.mubr.bf16.mxu0 0
      %3518 = vmatmul.mubr.bf16.gmra.mrb[0].mxu0 %v3342
      %v3519 = vpop.f32.mrb[0].mxu0
      %v3520 = vadd.f32 0.0, %v3519
      %v3521 = vpop.f32.mrb[0].mxu0
      %v3522 = vpop.f32.mrb[0].mxu0
      %v3523 = vadd.f32 0.0, %v3522
      %v3524 = vpop.f32.mrb[0].mxu0
      %3525 = vmatprep.mubr.bf16.mxu0 0
      %3526 = vmatmul.mubr.bf16.gmra.mrb[0].mxu0 %v3344
      %v3527 = vpop.f32.mrb[0].mxu0
      %v3528 = vadd.f32 0.0, %v3527
      %v3529 = vpop.f32.mrb[0].mxu0
      %v3530 = vpop.f32.mrb[0].mxu0
      %v3531 = vadd.f32 0.0, %v3530
      %v3532 = vpop.f32.mrb[0].mxu0
      %3533 = vmatprep.mubr.bf16.mxu0 0
      %3534 = vmatmul.mubr.bf16.gmra.mrb[0].mxu0 %v3346
      %v3535 = vpop.f32.mrb[0].mxu0
      %v3536 = vadd.f32 0.0, %v3535
      %v3537 = vpop.f32.mrb[0].mxu0
      %v3538 = vpop.f32.mrb[0].mxu0
      %v3539 = vadd.f32 0.0, %v3538
      %v3540 = vpop.f32.mrb[0].mxu0
      %3541 = vmatprep.mubr.bf16.mxu0 0
      %3542 = vmatmul.mubr.bf16.gmra.mrb[0].mxu0 %v3348
      %v3543 = vpop.f32.mrb[0].mxu0
      %v3544 = vadd.f32 0.0, %v3543
      %v3545 = vpop.f32.mrb[0].mxu0
      %v3546 = vpop.f32.mrb[0].mxu0
      %v3547 = vadd.f32 0.0, %v3546
      %v3548 = vpop.f32.mrb[0].mxu0
      %3549 = vmatprep.mubr.bf16.mxu0 0
      %3550 = vmatmul.mubr.bf16.gmra.mrb[0].mxu0 %v3350
      %v3551 = vpop.f32.mrb[0].mxu0
      %v3552 = vadd.f32 0.0, %v3551
      %v3553 = vpop.f32.mrb[0].mxu0
      %v3554 = vpop.f32.mrb[0].mxu0
      %v3555 = vadd.f32 0.0, %v3554
      %v3556 = vpop.f32.mrb[0].mxu0
      %3557 = vmatprep.mubr.bf16.mxu0 0
      %3558 = vmatmul.mubr.bf16.gmra.mrb[0].mxu0 %v3352
      %v3559 = vpop.f32.mrb[0].mxu0
      %v3560 = vadd.f32 0.0, %v3559
      %v3561 = vpop.f32.mrb[0].mxu0
      %v3562 = vpop.f32.mrb[0].mxu0
      %v3563 = vadd.f32 0.0, %v3562
      %v3564 = vpop.f32.mrb[0].mxu0
      %3565 = vmatprep.mubr.bf16.mxu0 0
      %3566 = vmatmul.mubr.bf16.gmra.mrb[0].mxu0 %v3354
      %v3567 = vpop.f32.mrb[0].mxu0
      %v3568 = vadd.f32 0.0, %v3567
      %v3569 = vpop.f32.mrb[0].mxu0
      %v3570 = vpop.f32.mrb[0].mxu0
      %v3571 = vadd.f32 0.0, %v3570
      %v3572 = vpop.f32.mrb[0].mxu0
      %3573 = vmatprep.mubr.bf16.mxu0 0
      %3574 = vmatmul.mubr.bf16.gmra.mrb[0].mxu0 %v3356
      %v3575 = vpop.f32.mrb[0].mxu0
      %v3576 = vadd.f32 0.0, %v3575
      %v3577 = vpop.f32.mrb[0].mxu0
      %v3578 = vpop.f32.mrb[0].mxu0
      %v3579 = vadd.f32 0.0, %v3578
      %v3580 = vpop.f32.mrb[0].mxu0
      %3581 = vdwg.mxu0
      %v3582 = vadd.f32 %v2924, %v3456
      %v3583 = vadd.f32 %v2927, %v3459
      %v3584 = vadd.f32 %v2932, %v3464
      %v3585 = vadd.f32 %v2935, %v3467
      %v3586 = vadd.f32 %v2940, %v3472
      %v3587 = vadd.f32 %v2943, %v3475
      %v3588 = vadd.f32 %v2948, %v3480
      %v3589 = vadd.f32 %v2951, %v3483
      %v3590 = vadd.f32 %v2956, %v3488
      %v3591 = vadd.f32 %v2959, %v3491
      %v3592 = vadd.f32 %v2964, %v3496
      %v3593 = vadd.f32 %v2967, %v3499
      %v3594 = vadd.f32 %v2972, %v3504
      %v3595 = vadd.f32 %v2975, %v3507
      %v3596 = vadd.f32 %v2980, %v3512
      %v3597 = vadd.f32 %v2983, %v3515
      %v3598 = vadd.f32 %v2988, %v3520
      %v3599 = vadd.f32 %v2991, %v3523
      %v3600 = vadd.f32 %v2996, %v3528
      %v3601 = vadd.f32 %v2999, %v3531
      %v3602 = vadd.f32 %v3004, %v3536
      %v3603 = vadd.f32 %v3007, %v3539
      %v3604 = vadd.f32 %v3012, %v3544
      %v3605 = vadd.f32 %v3015, %v3547
      %v3606 = vadd.f32 %v3020, %v3552
      %v3607 = vadd.f32 %v3023, %v3555
      %v3608 = vadd.f32 %v3028, %v3560
      %v3609 = vadd.f32 %v3031, %v3563
      %v3610 = vadd.f32 %v3036, %v3568
      %v3611 = vadd.f32 %v3039, %v3571
      %v3612 = vadd.f32 %v3044, %v3576
      %v3613 = vadd.f32 %v3047, %v3579
      %vm3614 = vmpackc.low %vm2283, %vm2283
      %vm3615 = vmpackc.low %vm2284, %vm2284
      %v3616 = vsel %vm3614, 65537, 0
      %v3617 = vsel %vm3615, 65537, 0
      %v3618 = vunpack.c.l.b16 %v3616
      %v3619 = vunpack.c.l.b16 %v3617
      %v3620 = vpack.c.b16 %v3619, %v3618
      %vm3621 = vcmp.ne.s16.totalorder %v3620, 0
      %v3622 = vsel %vm3621, %v2249, 0
      %v3623 = vsel %vm2420, %v2117, 0
      %v3624 = vsel %vm2421, %v2125, 0
      %v3625 = vsel %vm2422, %v2133, 0
      %v3626 = vsel %vm2423, %v2141, 0
      %v3627 = vsel %vm2424, %v2149, 0
      %v3628 = vsel %vm2425, %v2157, 0
      %v3629 = vsel %vm2426, %v2165, 0
      %v3630 = vsel %vm2427, %v2173, 0
      %v3631 = vsel %vm2428, %v2181, 0
      %v3632 = vsel %vm2429, %v2189, 0
      %v3633 = vsel %vm2430, %v2197, 0
      %v3634 = vsel %vm2431, %v2205, 0
      %v3635 = vsel %vm2432, %v2213, 0
      %v3636 = vsel %vm2433, %v2221, 0
      %v3637 = vsel %vm2434, %v2229, 0
      %s3638 = scalar_lea.vmem %s5, 192
      %v3639 = vld [vmem:[%s3638] sm:$0xf]
      %v3640 = vld [vmem:[%s3638 + $0x4] sm:$0xf]
      %v3641 = vld [vmem:[%s3638 + $0x8] sm:$0xf]
      %v3642 = vld [vmem:[%s3638 + $0xc] sm:$0xf]
      %v3643 = vld [vmem:[%s3638 + $0x10] sm:$0xf]
      %v3644 = vld [vmem:[%s3638 + $0x14] sm:$0xf]
      %v3645 = vld [vmem:[%s3638 + $0x18] sm:$0xf]
      %v3646 = vld [vmem:[%s3638 + $0x1c] sm:$0xf]
      %v3647 = vld [vmem:[%s3638 + $0x20] sm:$0xf]
      %v3648 = vld [vmem:[%s3638 + $0x24] sm:$0xf]
      %v3649 = vld [vmem:[%s3638 + $0x28] sm:$0xf]
      %v3650 = vld [vmem:[%s3638 + $0x2c] sm:$0xf]
      %v3651 = vld [vmem:[%s3638 + $0x30] sm:$0xf]
      %v3652 = vld [vmem:[%s3638 + $0x34] sm:$0xf]
      %v3653 = vld [vmem:[%s3638 + $0x38] sm:$0xf]
      %v3654 = vld [vmem:[%s3638 + $0x3c] sm:$0xf]
      %v3671 = vunpack.c.l.b16 %v3639
      %v3672 = vunpack.c.l.b16 %v3640
      %v3673 = vunpack.c.l.b16 %v3641
      %v3674 = vunpack.c.l.b16 %v3642
      %v3675 = vunpack.c.l.b16 %v3643
      %v3676 = vunpack.c.l.b16 %v3644
      %v3677 = vunpack.c.l.b16 %v3645
      %v3678 = vunpack.c.l.b16 %v3646
      %v3679 = vunpack.c.l.b16 %v3647
      %v3680 = vunpack.c.l.b16 %v3648
      %v3681 = vunpack.c.l.b16 %v3649
      %v3682 = vunpack.c.l.b16 %v3650
      %v3683 = vunpack.c.l.b16 %v3651
      %v3684 = vunpack.c.l.b16 %v3652
      %v3685 = vunpack.c.l.b16 %v3653
      %v3686 = vunpack.c.l.b16 %v3654
      %v3687 = vpack.c.b16 %v3672, %v3671
      %v3688 = vpack.c.b16 %v3674, %v3673
      %v3689 = vpack.c.b16 %v3676, %v3675
      %v3690 = vpack.c.b16 %v3678, %v3677
      %v3691 = vpack.c.b16 %v3680, %v3679
      %v3692 = vpack.c.b16 %v3682, %v3681
      %v3693 = vpack.c.b16 %v3684, %v3683
      %v3694 = vpack.c.b16 %v3686, %v3685
      %3703 = vmatprep.subr.bf16.mxu0 0
      %3704 = vmatpush1.bf16.msra.mxu0 %v3687
      %3705 = vmatprep.subr.bf16.mxu0 0
      %3706 = vmatpush1.bf16.msra.mxu0 %v3688
      %3707 = vmatprep.subr.bf16.mxu0 0
      %3708 = vmatpush1.bf16.msra.mxu0 %v3689
      %3709 = vmatprep.subr.bf16.mxu0 0
      %3710 = vmatpush1.bf16.msra.mxu0 %v3690
      %3711 = vmatprep.subr.bf16.mxu0 0
      %3712 = vmatpush1.bf16.msra.mxu0 %v3691
      %3713 = vmatprep.subr.bf16.mxu0 0
      %3714 = vmatpush1.bf16.msra.mxu0 %v3692
      %3715 = vmatprep.subr.bf16.mxu0 0
      %3716 = vmatpush1.bf16.msra.mxu0 %v3693
      %3717 = vmatprep.subr.bf16.mxu0 0
      %3718 = vmatpush1.bf16.msra.mxu0 %v3694
      %3719 = vmatprep.subr.bf16.mxu0 0
      %3720 = vmatpush1.bf16.msra.mxu0 0
      %3721 = vmatprep.subr.bf16.mxu0 0
      %3722 = vmatpush1.bf16.msra.mxu0 0
      %3723 = vmatprep.subr.bf16.mxu0 0
      %3724 = vmatpush1.bf16.msra.mxu0 0
      %3725 = vmatprep.subr.bf16.mxu0 0
      %3726 = vmatpush1.bf16.msra.mxu0 0
      %3727 = vmatprep.subr.bf16.mxu0 0
      %3728 = vmatpush1.bf16.msra.mxu0 0
      %3729 = vmatprep.subr.bf16.mxu0 0
      %3730 = vmatpush1.bf16.msra.mxu0 0
      %3731 = vmatprep.subr.bf16.mxu0 0
      %3732 = vmatpush1.bf16.msra.mxu0 0
      %3733 = vmatprep.subr.bf16.mxu0 0
      %3734 = vmatpush1.bf16.msra.mxu0 0
      %3735 = vmatprep.mubr.bf16.mxu0 0
      %3736 = vmatmul.mubr.bf16.gmra.mrb[0].mxu0 %v3622
      %v3737 = vpop.f32.mrb[0].mxu0
      %v3738 = vadd.f32 0.0, %v3737
      %v3739 = vpop.f32.mrb[0].mxu0
      %v3740 = vpop.f32.mrb[0].mxu0
      %v3741 = vadd.f32 0.0, %v3740
      %v3742 = vpop.f32.mrb[0].mxu0
      %3743 = vmatprep.mubr.bf16.mxu0 0
      %3744 = vmatmul.mubr.bf16.gmra.mrb[0].mxu0 %v3623
      %v3745 = vpop.f32.mrb[0].mxu0
      %v3746 = vadd.f32 0.0, %v3745
      %v3747 = vpop.f32.mrb[0].mxu0
      %v3748 = vpop.f32.mrb[0].mxu0
      %v3749 = vadd.f32 0.0, %v3748
      %v3750 = vpop.f32.mrb[0].mxu0
      %3751 = vmatprep.mubr.bf16.mxu0 0
      %3752 = vmatmul.mubr.bf16.gmra.mrb[0].mxu0 %v3624
      %v3753 = vpop.f32.mrb[0].mxu0
      %v3754 = vadd.f32 0.0, %v3753
      %v3755 = vpop.f32.mrb[0].mxu0
      %v3756 = vpop.f32.mrb[0].mxu0
      %v3757 = vadd.f32 0.0, %v3756
      %v3758 = vpop.f32.mrb[0].mxu0
      %3759 = vmatprep.mubr.bf16.mxu0 0
      %3760 = vmatmul.mubr.bf16.gmra.mrb[0].mxu0 %v3625
      %v3761 = vpop.f32.mrb[0].mxu0
      %v3762 = vadd.f32 0.0, %v3761
      %v3763 = vpop.f32.mrb[0].mxu0
      %v3764 = vpop.f32.mrb[0].mxu0
      %v3765 = vadd.f32 0.0, %v3764
      %v3766 = vpop.f32.mrb[0].mxu0
      %3767 = vmatprep.mubr.bf16.mxu0 0
      %3768 = vmatmul.mubr.bf16.gmra.mrb[0].mxu0 %v3626
      %v3769 = vpop.f32.mrb[0].mxu0
      %v3770 = vadd.f32 0.0, %v3769
      %v3771 = vpop.f32.mrb[0].mxu0
      %v3772 = vpop.f32.mrb[0].mxu0
      %v3773 = vadd.f32 0.0, %v3772
      %v3774 = vpop.f32.mrb[0].mxu0
      %3775 = vmatprep.mubr.bf16.mxu0 0
      %3776 = vmatmul.mubr.bf16.gmra.mrb[0].mxu0 %v3627
      %v3777 = vpop.f32.mrb[0].mxu0
      %v3778 = vadd.f32 0.0, %v3777
      %v3779 = vpop.f32.mrb[0].mxu0
      %v3780 = vpop.f32.mrb[0].mxu0
      %v3781 = vadd.f32 0.0, %v3780
      %v3782 = vpop.f32.mrb[0].mxu0
      %3783 = vmatprep.mubr.bf16.mxu0 0
      %3784 = vmatmul.mubr.bf16.gmra.mrb[0].mxu0 %v3628
      %v3785 = vpop.f32.mrb[0].mxu0
      %v3786 = vadd.f32 0.0, %v3785
      %v3787 = vpop.f32.mrb[0].mxu0
      %v3788 = vpop.f32.mrb[0].mxu0
      %v3789 = vadd.f32 0.0, %v3788
      %v3790 = vpop.f32.mrb[0].mxu0
      %3791 = vmatprep.mubr.bf16.mxu0 0
      %3792 = vmatmul.mubr.bf16.gmra.mrb[0].mxu0 %v3629
      %v3793 = vpop.f32.mrb[0].mxu0
      %v3794 = vadd.f32 0.0, %v3793
      %v3795 = vpop.f32.mrb[0].mxu0
      %v3796 = vpop.f32.mrb[0].mxu0
      %v3797 = vadd.f32 0.0, %v3796
      %v3798 = vpop.f32.mrb[0].mxu0
      %3799 = vmatprep.mubr.bf16.mxu0 0
      %3800 = vmatmul.mubr.bf16.gmra.mrb[0].mxu0 %v3630
      %v3801 = vpop.f32.mrb[0].mxu0
      %v3802 = vadd.f32 0.0, %v3801
      %v3803 = vpop.f32.mrb[0].mxu0
      %v3804 = vpop.f32.mrb[0].mxu0
      %v3805 = vadd.f32 0.0, %v3804
      %v3806 = vpop.f32.mrb[0].mxu0
      %3807 = vmatprep.mubr.bf16.mxu0 0
      %3808 = vmatmul.mubr.bf16.gmra.mrb[0].mxu0 %v3631
      %v3809 = vpop.f32.mrb[0].mxu0
      %v3810 = vadd.f32 0.0, %v3809
      %v3811 = vpop.f32.mrb[0].mxu0
      %v3812 = vpop.f32.mrb[0].mxu0
      %v3813 = vadd.f32 0.0, %v3812
      %v3814 = vpop.f32.mrb[0].mxu0
      %3815 = vmatprep.mubr.bf16.mxu0 0
      %3816 = vmatmul.mubr.bf16.gmra.mrb[0].mxu0 %v3632
      %v3817 = vpop.f32.mrb[0].mxu0
      %v3818 = vadd.f32 0.0, %v3817
      %v3819 = vpop.f32.mrb[0].mxu0
      %v3820 = vpop.f32.mrb[0].mxu0
      %v3821 = vadd.f32 0.0, %v3820
      %v3822 = vpop.f32.mrb[0].mxu0
      %3823 = vmatprep.mubr.bf16.mxu0 0
      %3824 = vmatmul.mubr.bf16.gmra.mrb[0].mxu0 %v3633
      %v3825 = vpop.f32.mrb[0].mxu0
      %v3826 = vadd.f32 0.0, %v3825
      %v3827 = vpop.f32.mrb[0].mxu0
      %v3828 = vpop.f32.mrb[0].mxu0
      %v3829 = vadd.f32 0.0, %v3828
      %v3830 = vpop.f32.mrb[0].mxu0
      %3831 = vmatprep.mubr.bf16.mxu0 0
      %3832 = vmatmul.mubr.bf16.gmra.mrb[0].mxu0 %v3634
      %v3833 = vpop.f32.mrb[0].mxu0
      %v3834 = vadd.f32 0.0, %v3833
      %v3835 = vpop.f32.mrb[0].mxu0
      %v3836 = vpop.f32.mrb[0].mxu0
      %v3837 = vadd.f32 0.0, %v3836
      %v3838 = vpop.f32.mrb[0].mxu0
      %3839 = vmatprep.mubr.bf16.mxu0 0
      %3840 = vmatmul.mubr.bf16.gmra.mrb[0].mxu0 %v3635
      %v3841 = vpop.f32.mrb[0].mxu0
      %v3842 = vadd.f32 0.0, %v3841
      %v3843 = vpop.f32.mrb[0].mxu0
      %v3844 = vpop.f32.mrb[0].mxu0
      %v3845 = vadd.f32 0.0, %v3844
      %v3846 = vpop.f32.mrb[0].mxu0
      %3847 = vmatprep.mubr.bf16.mxu0 0
      %3848 = vmatmul.mubr.bf16.gmra.mrb[0].mxu0 %v3636
      %v3849 = vpop.f32.mrb[0].mxu0
      %v3850 = vadd.f32 0.0, %v3849
      %v3851 = vpop.f32.mrb[0].mxu0
      %v3852 = vpop.f32.mrb[0].mxu0
      %v3853 = vadd.f32 0.0, %v3852
      %v3854 = vpop.f32.mrb[0].mxu0
      %3855 = vmatprep.mubr.bf16.mxu0 0
      %3856 = vmatmul.mubr.bf16.gmra.mrb[0].mxu0 %v3637
      %v3857 = vpop.f32.mrb[0].mxu0
      %v3858 = vadd.f32 0.0, %v3857
      %v3859 = vpop.f32.mrb[0].mxu0
      %v3860 = vpop.f32.mrb[0].mxu0
      %v3861 = vadd.f32 0.0, %v3860
      %v3862 = vpop.f32.mrb[0].mxu0
      %3863 = vdwg.mxu0
      %v3864 = vadd.f32 %v3582, %v3738
      %v3865 = vadd.f32 %v3583, %v3741
      %v3866 = vadd.f32 %v3584, %v3746
      %v3867 = vadd.f32 %v3585, %v3749
      %v3868 = vadd.f32 %v3586, %v3754
      %v3869 = vadd.f32 %v3587, %v3757
      %v3870 = vadd.f32 %v3588, %v3762
      %v3871 = vadd.f32 %v3589, %v3765
      %v3872 = vadd.f32 %v3590, %v3770
      %v3873 = vadd.f32 %v3591, %v3773
      %v3874 = vadd.f32 %v3592, %v3778
      %v3875 = vadd.f32 %v3593, %v3781
      %v3876 = vadd.f32 %v3594, %v3786
      %v3877 = vadd.f32 %v3595, %v3789
      %v3878 = vadd.f32 %v3596, %v3794
      %v3879 = vadd.f32 %v3597, %v3797
      %v3880 = vadd.f32 %v3598, %v3802
      %v3881 = vadd.f32 %v3599, %v3805
      %v3882 = vadd.f32 %v3600, %v3810
      %v3883 = vadd.f32 %v3601, %v3813
      %v3884 = vadd.f32 %v3602, %v3818
      %v3885 = vadd.f32 %v3603, %v3821
      %v3886 = vadd.f32 %v3604, %v3826
      %v3887 = vadd.f32 %v3605, %v3829
      %v3888 = vadd.f32 %v3606, %v3834
      %v3889 = vadd.f32 %v3607, %v3837
      %v3890 = vadd.f32 %v3608, %v3842
      %v3891 = vadd.f32 %v3609, %v3845
      %v3892 = vadd.f32 %v3610, %v3850
      %v3893 = vadd.f32 %v3611, %v3853
      %v3894 = vadd.f32 %v3612, %v3858
      %v3895 = vadd.f32 %v3613, %v3861
      %s3896 = scalar_lea.vmem %s5, 256
      %v3897 = vld [vmem:[%s3896] sm:$0xf]
      %v3898 = vld [vmem:[%s3896 + $0x4] sm:$0xf]
      %v3899 = vld [vmem:[%s3896 + $0x8] sm:$0xf]
      %v3900 = vld [vmem:[%s3896 + $0xc] sm:$0xf]
      %v3901 = vld [vmem:[%s3896 + $0x10] sm:$0xf]
      %v3902 = vld [vmem:[%s3896 + $0x14] sm:$0xf]
      %v3903 = vld [vmem:[%s3896 + $0x18] sm:$0xf]
      %v3904 = vld [vmem:[%s3896 + $0x1c] sm:$0xf]
      %v3905 = vld [vmem:[%s3896 + $0x20] sm:$0xf]
      %v3906 = vld [vmem:[%s3896 + $0x24] sm:$0xf]
      %v3907 = vld [vmem:[%s3896 + $0x28] sm:$0xf]
      %v3908 = vld [vmem:[%s3896 + $0x2c] sm:$0xf]
      %v3909 = vld [vmem:[%s3896 + $0x30] sm:$0xf]
      %v3910 = vld [vmem:[%s3896 + $0x34] sm:$0xf]
      %v3911 = vld [vmem:[%s3896 + $0x38] sm:$0xf]
      %v3912 = vld [vmem:[%s3896 + $0x3c] sm:$0xf]
      %v3913 = vshrl.u32 %v2229, 16
      %v3915 = vor.u32 %v3913, %v2614
      %v3917 = vshll.u32 %v2250, 16
      %v3919 = vrot.slane %v3917, 1
      %v3920 = vsel %vm2483, %v3915, %v3919
      %v3938 = vunpack.c.l.b16 %v3897
      %v3939 = vunpack.c.l.b16 %v3898
      %v3940 = vunpack.c.l.b16 %v3899
      %v3941 = vunpack.c.l.b16 %v3900
      %v3942 = vunpack.c.l.b16 %v3901
      %v3943 = vunpack.c.l.b16 %v3902
      %v3944 = vunpack.c.l.b16 %v3903
      %v3945 = vunpack.c.l.b16 %v3904
      %v3946 = vunpack.c.l.b16 %v3905
      %v3947 = vunpack.c.l.b16 %v3906
      %v3948 = vunpack.c.l.b16 %v3907
      %v3949 = vunpack.c.l.b16 %v3908
      %v3950 = vunpack.c.l.b16 %v3909
      %v3951 = vunpack.c.l.b16 %v3910
      %v3952 = vunpack.c.l.b16 %v3911
      %v3953 = vunpack.c.l.b16 %v3912
      %v3954 = vpack.c.b16 %v3939, %v3938
      %v3955 = vpack.c.b16 %v3941, %v3940
      %v3956 = vpack.c.b16 %v3943, %v3942
      %v3957 = vpack.c.b16 %v3945, %v3944
      %v3958 = vpack.c.b16 %v3947, %v3946
      %v3959 = vpack.c.b16 %v3949, %v3948
      %v3960 = vpack.c.b16 %v3951, %v3950
      %v3961 = vpack.c.b16 %v3953, %v3952
      %3970 = vmatprep.subr.bf16.mxu0 0
      %3971 = vmatpush1.bf16.msra.mxu0 %v3954
      %3972 = vmatprep.subr.bf16.mxu0 0
      %3973 = vmatpush1.bf16.msra.mxu0 %v3955
      %3974 = vmatprep.subr.bf16.mxu0 0
      %3975 = vmatpush1.bf16.msra.mxu0 %v3956
      %3976 = vmatprep.subr.bf16.mxu0 0
      %3977 = vmatpush1.bf16.msra.mxu0 %v3957
      %3978 = vmatprep.subr.bf16.mxu0 0
      %3979 = vmatpush1.bf16.msra.mxu0 %v3958
      %3980 = vmatprep.subr.bf16.mxu0 0
      %3981 = vmatpush1.bf16.msra.mxu0 %v3959
      %3982 = vmatprep.subr.bf16.mxu0 0
      %3983 = vmatpush1.bf16.msra.mxu0 %v3960
      %3984 = vmatprep.subr.bf16.mxu0 0
      %3985 = vmatpush1.bf16.msra.mxu0 %v3961
      %3986 = vmatprep.subr.bf16.mxu0 0
      %3987 = vmatpush1.bf16.msra.mxu0 0
      %3988 = vmatprep.subr.bf16.mxu0 0
      %3989 = vmatpush1.bf16.msra.mxu0 0
      %3990 = vmatprep.subr.bf16.mxu0 0
      %3991 = vmatpush1.bf16.msra.mxu0 0
      %3992 = vmatprep.subr.bf16.mxu0 0
      %3993 = vmatpush1.bf16.msra.mxu0 0
      %3994 = vmatprep.subr.bf16.mxu0 0
      %3995 = vmatpush1.bf16.msra.mxu0 0
      %3996 = vmatprep.subr.bf16.mxu0 0
      %3997 = vmatpush1.bf16.msra.mxu0 0
      %3998 = vmatprep.subr.bf16.mxu0 0
      %3999 = vmatpush1.bf16.msra.mxu0 0
      %4000 = vmatprep.subr.bf16.mxu0 0
      %4001 = vmatpush1.bf16.msra.mxu0 0
      %4002 = vmatprep.mubr.bf16.mxu0 0
      %4003 = vmatmul.mubr.bf16.gmra.mrb[0].mxu0 %v2503
      %v4004 = vpop.f32.mrb[0].mxu0
      %v4005 = vadd.f32 0.0, %v4004
      %v4006 = vpop.f32.mrb[0].mxu0
      %v4007 = vpop.f32.mrb[0].mxu0
      %v4008 = vadd.f32 0.0, %v4007
      %v4009 = vpop.f32.mrb[0].mxu0
      %4010 = vmatprep.mubr.bf16.mxu0 0
      %4011 = vmatmul.mubr.bf16.gmra.mrb[0].mxu0 %v2511
      %v4012 = vpop.f32.mrb[0].mxu0
      %v4013 = vadd.f32 0.0, %v4012
      %v4014 = vpop.f32.mrb[0].mxu0
      %v4015 = vpop.f32.mrb[0].mxu0
      %v4016 = vadd.f32 0.0, %v4015
      %v4017 = vpop.f32.mrb[0].mxu0
      %4018 = vmatprep.mubr.bf16.mxu0 0
      %4019 = vmatmul.mubr.bf16.gmra.mrb[0].mxu0 %v2519
      %v4020 = vpop.f32.mrb[0].mxu0
      %v4021 = vadd.f32 0.0, %v4020
      %v4022 = vpop.f32.mrb[0].mxu0
      %v4023 = vpop.f32.mrb[0].mxu0
      %v4024 = vadd.f32 0.0, %v4023
      %v4025 = vpop.f32.mrb[0].mxu0
      %4026 = vmatprep.mubr.bf16.mxu0 0
      %4027 = vmatmul.mubr.bf16.gmra.mrb[0].mxu0 %v2527
      %v4028 = vpop.f32.mrb[0].mxu0
      %v4029 = vadd.f32 0.0, %v4028
      %v4030 = vpop.f32.mrb[0].mxu0
      %v4031 = vpop.f32.mrb[0].mxu0
      %v4032 = vadd.f32 0.0, %v4031
      %v4033 = vpop.f32.mrb[0].mxu0
      %4034 = vmatprep.mubr.bf16.mxu0 0
      %4035 = vmatmul.mubr.bf16.gmra.mrb[0].mxu0 %v2535
      %v4036 = vpop.f32.mrb[0].mxu0
      %v4037 = vadd.f32 0.0, %v4036
      %v4038 = vpop.f32.mrb[0].mxu0
      %v4039 = vpop.f32.mrb[0].mxu0
      %v4040 = vadd.f32 0.0, %v4039
      %v4041 = vpop.f32.mrb[0].mxu0
      %4042 = vmatprep.mubr.bf16.mxu0 0
      %4043 = vmatmul.mubr.bf16.gmra.mrb[0].mxu0 %v2543
      %v4044 = vpop.f32.mrb[0].mxu0
      %v4045 = vadd.f32 0.0, %v4044
      %v4046 = vpop.f32.mrb[0].mxu0
      %v4047 = vpop.f32.mrb[0].mxu0
      %v4048 = vadd.f32 0.0, %v4047
      %v4049 = vpop.f32.mrb[0].mxu0
      %4050 = vmatprep.mubr.bf16.mxu0 0
      %4051 = vmatmul.mubr.bf16.gmra.mrb[0].mxu0 %v2551
      %v4052 = vpop.f32.mrb[0].mxu0
      %v4053 = vadd.f32 0.0, %v4052
      %v4054 = vpop.f32.mrb[0].mxu0
      %v4055 = vpop.f32.mrb[0].mxu0
      %v4056 = vadd.f32 0.0, %v4055
      %v4057 = vpop.f32.mrb[0].mxu0
      %4058 = vmatprep.mubr.bf16.mxu0 0
      %4059 = vmatmul.mubr.bf16.gmra.mrb[0].mxu0 %v2559
      %v4060 = vpop.f32.mrb[0].mxu0
      %v4061 = vadd.f32 0.0, %v4060
      %v4062 = vpop.f32.mrb[0].mxu0
      %v4063 = vpop.f32.mrb[0].mxu0
      %v4064 = vadd.f32 0.0, %v4063
      %v4065 = vpop.f32.mrb[0].mxu0
      %4066 = vmatprep.mubr.bf16.mxu0 0
      %4067 = vmatmul.mubr.bf16.gmra.mrb[0].mxu0 %v2567
      %v4068 = vpop.f32.mrb[0].mxu0
      %v4069 = vadd.f32 0.0, %v4068
      %v4070 = vpop.f32.mrb[0].mxu0
      %v4071 = vpop.f32.mrb[0].mxu0
      %v4072 = vadd.f32 0.0, %v4071
      %v4073 = vpop.f32.mrb[0].mxu0
      %4074 = vmatprep.mubr.bf16.mxu0 0
      %4075 = vmatmul.mubr.bf16.gmra.mrb[0].mxu0 %v2575
      %v4076 = vpop.f32.mrb[0].mxu0
      %v4077 = vadd.f32 0.0, %v4076
      %v4078 = vpop.f32.mrb[0].mxu0
      %v4079 = vpop.f32.mrb[0].mxu0
      %v4080 = vadd.f32 0.0, %v4079
      %v4081 = vpop.f32.mrb[0].mxu0
      %4082 = vmatprep.mubr.bf16.mxu0 0
      %4083 = vmatmul.mubr.bf16.gmra.mrb[0].mxu0 %v2583
      %v4084 = vpop.f32.mrb[0].mxu0
      %v4085 = vadd.f32 0.0, %v4084
      %v4086 = vpop.f32.mrb[0].mxu0
      %v4087 = vpop.f32.mrb[0].mxu0
      %v4088 = vadd.f32 0.0, %v4087
      %v4089 = vpop.f32.mrb[0].mxu0
      %4090 = vmatprep.mubr.bf16.mxu0 0
      %4091 = vmatmul.mubr.bf16.gmra.mrb[0].mxu0 %v2591
      %v4092 = vpop.f32.mrb[0].mxu0
      %v4093 = vadd.f32 0.0, %v4092
      %v4094 = vpop.f32.mrb[0].mxu0
      %v4095 = vpop.f32.mrb[0].mxu0
      %v4096 = vadd.f32 0.0, %v4095
      %v4097 = vpop.f32.mrb[0].mxu0
      %4098 = vmatprep.mubr.bf16.mxu0 0
      %4099 = vmatmul.mubr.bf16.gmra.mrb[0].mxu0 %v2599
      %v4100 = vpop.f32.mrb[0].mxu0
      %v4101 = vadd.f32 0.0, %v4100
      %v4102 = vpop.f32.mrb[0].mxu0
      %v4103 = vpop.f32.mrb[0].mxu0
      %v4104 = vadd.f32 0.0, %v4103
      %v4105 = vpop.f32.mrb[0].mxu0
      %4106 = vmatprep.mubr.bf16.mxu0 0
      %4107 = vmatmul.mubr.bf16.gmra.mrb[0].mxu0 %v2607
      %v4108 = vpop.f32.mrb[0].mxu0
      %v4109 = vadd.f32 0.0, %v4108
      %v4110 = vpop.f32.mrb[0].mxu0
      %v4111 = vpop.f32.mrb[0].mxu0
      %v4112 = vadd.f32 0.0, %v4111
      %v4113 = vpop.f32.mrb[0].mxu0
      %4114 = vmatprep.mubr.bf16.mxu0 0
      %4115 = vmatmul.mubr.bf16.gmra.mrb[0].mxu0 %v2615
      %v4116 = vpop.f32.mrb[0].mxu0
      %v4117 = vadd.f32 0.0, %v4116
      %v4118 = vpop.f32.mrb[0].mxu0
      %v4119 = vpop.f32.mrb[0].mxu0
      %v4120 = vadd.f32 0.0, %v4119
      %v4121 = vpop.f32.mrb[0].mxu0
      %4122 = vmatprep.mubr.bf16.mxu0 0
      %4123 = vmatmul.mubr.bf16.gmra.mrb[0].mxu0 %v3920
      %v4124 = vpop.f32.mrb[0].mxu0
      %v4125 = vadd.f32 0.0, %v4124
      %v4126 = vpop.f32.mrb[0].mxu0
      %v4127 = vpop.f32.mrb[0].mxu0
      %v4128 = vadd.f32 0.0, %v4127
      %v4129 = vpop.f32.mrb[0].mxu0
      %4130 = vdwg.mxu0
      %v4131 = vadd.f32 %v3864, %v4005
      %v4132 = vadd.f32 %v3865, %v4008
      %v4133 = vadd.f32 %v3866, %v4013
      %v4134 = vadd.f32 %v3867, %v4016
      %v4135 = vadd.f32 %v3868, %v4021
      %v4136 = vadd.f32 %v3869, %v4024
      %v4137 = vadd.f32 %v3870, %v4029
      %v4138 = vadd.f32 %v3871, %v4032
      %v4139 = vadd.f32 %v3872, %v4037
      %v4140 = vadd.f32 %v3873, %v4040
      %v4141 = vadd.f32 %v3874, %v4045
      %v4142 = vadd.f32 %v3875, %v4048
      %v4143 = vadd.f32 %v3876, %v4053
      %v4144 = vadd.f32 %v3877, %v4056
      %v4145 = vadd.f32 %v3878, %v4061
      %v4146 = vadd.f32 %v3879, %v4064
      %v4147 = vadd.f32 %v3880, %v4069
      %v4148 = vadd.f32 %v3881, %v4072
      %v4149 = vadd.f32 %v3882, %v4077
      %v4150 = vadd.f32 %v3883, %v4080
      %v4151 = vadd.f32 %v3884, %v4085
      %v4152 = vadd.f32 %v3885, %v4088
      %v4153 = vadd.f32 %v3886, %v4093
      %v4154 = vadd.f32 %v3887, %v4096
      %v4155 = vadd.f32 %v3888, %v4101
      %v4156 = vadd.f32 %v3889, %v4104
      %v4157 = vadd.f32 %v3890, %v4109
      %v4158 = vadd.f32 %v3891, %v4112
      %v4159 = vadd.f32 %v3892, %v4117
      %v4160 = vadd.f32 %v3893, %v4120
      %v4161 = vadd.f32 %v3894, %v4125
      %v4162 = vadd.f32 %v3895, %v4128
      %vm4163 = vcmp.ne.s16.totalorder %v3226, 0
      %v4164 = vsel %vm4163, %v2249, 0
      %v4165 = vsel %vm3257, %v2117, 0
      %v4166 = vsel %vm3258, %v2125, 0
      %v4167 = vsel %vm3259, %v2133, 0
      %v4168 = vsel %vm3260, %v2141, 0
      %v4169 = vsel %vm3261, %v2149, 0
      %v4170 = vsel %vm3262, %v2157, 0
      %v4171 = vsel %vm3263, %v2165, 0
      %v4172 = vsel %vm3264, %v2173, 0
      %v4173 = vsel %vm3265, %v2181, 0
      %v4174 = vsel %vm3266, %v2189, 0
      %v4175 = vsel %vm3267, %v2197, 0
      %v4176 = vsel %vm3268, %v2205, 0
      %v4177 = vsel %vm3269, %v2213, 0
      %v4178 = vsel %vm3270, %v2221, 0
      %v4179 = vsel %vm3271, %v2229, 0
      %v4180 = vsel %vm3272, %v2250, 0
      %s4181 = scalar_lea.vmem %s5, 320
      %v4182 = vld [vmem:[%s4181] sm:$0xf]
      %v4183 = vld [vmem:[%s4181 + $0x4] sm:$0xf]
      %v4184 = vld [vmem:[%s4181 + $0x8] sm:$0xf]
      %v4185 = vld [vmem:[%s4181 + $0xc] sm:$0xf]
      %v4186 = vld [vmem:[%s4181 + $0x10] sm:$0xf]
      %v4187 = vld [vmem:[%s4181 + $0x14] sm:$0xf]
      %v4188 = vld [vmem:[%s4181 + $0x18] sm:$0xf]
      %v4189 = vld [vmem:[%s4181 + $0x1c] sm:$0xf]
      %v4190 = vld [vmem:[%s4181 + $0x20] sm:$0xf]
      %v4191 = vld [vmem:[%s4181 + $0x24] sm:$0xf]
      %v4192 = vld [vmem:[%s4181 + $0x28] sm:$0xf]
      %v4193 = vld [vmem:[%s4181 + $0x2c] sm:$0xf]
      %v4194 = vld [vmem:[%s4181 + $0x30] sm:$0xf]
      %v4195 = vld [vmem:[%s4181 + $0x34] sm:$0xf]
      %v4196 = vld [vmem:[%s4181 + $0x38] sm:$0xf]
      %v4197 = vld [vmem:[%s4181 + $0x3c] sm:$0xf]
      %v4215 = vrot.slane %v4164, 1
      %v4216 = vrot.slane %v4165, 1
      %v4217 = vsel %vm3323, %v4215, %v4216
      %v4218 = vrot.slane %v4166, 1
      %v4219 = vsel %vm3323, %v4216, %v4218
      %v4220 = vrot.slane %v4167, 1
      %v4221 = vsel %vm3323, %v4218, %v4220
      %v4222 = vrot.slane %v4168, 1
      %v4223 = vsel %vm3323, %v4220, %v4222
      %v4224 = vrot.slane %v4169, 1
      %v4225 = vsel %vm3323, %v4222, %v4224
      %v4226 = vrot.slane %v4170, 1
      %v4227 = vsel %vm3323, %v4224, %v4226
      %v4228 = vrot.slane %v4171, 1
      %v4229 = vsel %vm3323, %v4226, %v4228
      %v4230 = vrot.slane %v4172, 1
      %v4231 = vsel %vm3323, %v4228, %v4230
      %v4232 = vrot.slane %v4173, 1
      %v4233 = vsel %vm3323, %v4230, %v4232
      %v4234 = vrot.slane %v4174, 1
      %v4235 = vsel %vm3323, %v4232, %v4234
      %v4236 = vrot.slane %v4175, 1
      %v4237 = vsel %vm3323, %v4234, %v4236
      %v4238 = vrot.slane %v4176, 1
      %v4239 = vsel %vm3323, %v4236, %v4238
      %v4240 = vrot.slane %v4177, 1
      %v4241 = vsel %vm3323, %v4238, %v4240
      %v4242 = vrot.slane %v4178, 1
      %v4243 = vsel %vm3323, %v4240, %v4242
      %v4244 = vrot.slane %v4179, 1
      %v4245 = vsel %vm3323, %v4242, %v4244
      %v4246 = vrot.slane %v4180, 1
      %v4247 = vsel %vm3323, %v4244, %v4246
      %v4280 = vunpack.c.l.b16 %v4182
      %v4281 = vunpack.c.l.b16 %v4183
      %v4282 = vunpack.c.l.b16 %v4184
      %v4283 = vunpack.c.l.b16 %v4185
      %v4284 = vunpack.c.l.b16 %v4186
      %v4285 = vunpack.c.l.b16 %v4187
      %v4286 = vunpack.c.l.b16 %v4188
      %v4287 = vunpack.c.l.b16 %v4189
      %v4288 = vunpack.c.l.b16 %v4190
      %v4289 = vunpack.c.l.b16 %v4191
      %v4290 = vunpack.c.l.b16 %v4192
      %v4291 = vunpack.c.l.b16 %v4193
      %v4292 = vunpack.c.l.b16 %v4194
      %v4293 = vunpack.c.l.b16 %v4195
      %v4294 = vunpack.c.l.b16 %v4196
      %v4295 = vunpack.c.l.b16 %v4197
      %v4296 = vpack.c.b16 %v4281, %v4280
      %v4297 = vpack.c.b16 %v4283, %v4282
      %v4298 = vpack.c.b16 %v4285, %v4284
      %v4299 = vpack.c.b16 %v4287, %v4286
      %v4300 = vpack.c.b16 %v4289, %v4288
      %v4301 = vpack.c.b16 %v4291, %v4290
      %v4302 = vpack.c.b16 %v4293, %v4292
      %v4303 = vpack.c.b16 %v4295, %v4294
      %4312 = vmatprep.subr.bf16.mxu0 0
      %4313 = vmatpush1.bf16.msra.mxu0 %v4296
      %4314 = vmatprep.subr.bf16.mxu0 0
      %4315 = vmatpush1.bf16.msra.mxu0 %v4297
      %4316 = vmatprep.subr.bf16.mxu0 0
      %4317 = vmatpush1.bf16.msra.mxu0 %v4298
      %4318 = vmatprep.subr.bf16.mxu0 0
      %4319 = vmatpush1.bf16.msra.mxu0 %v4299
      %4320 = vmatprep.subr.bf16.mxu0 0
      %4321 = vmatpush1.bf16.msra.mxu0 %v4300
      %4322 = vmatprep.subr.bf16.mxu0 0
      %4323 = vmatpush1.bf16.msra.mxu0 %v4301
      %4324 = vmatprep.subr.bf16.mxu0 0
      %4325 = vmatpush1.bf16.msra.mxu0 %v4302
      %4326 = vmatprep.subr.bf16.mxu0 0
      %4327 = vmatpush1.bf16.msra.mxu0 %v4303
      %4328 = vmatprep.subr.bf16.mxu0 0
      %4329 = vmatpush1.bf16.msra.mxu0 0
      %4330 = vmatprep.subr.bf16.mxu0 0
      %4331 = vmatpush1.bf16.msra.mxu0 0
      %4332 = vmatprep.subr.bf16.mxu0 0
      %4333 = vmatpush1.bf16.msra.mxu0 0
      %4334 = vmatprep.subr.bf16.mxu0 0
      %4335 = vmatpush1.bf16.msra.mxu0 0
      %4336 = vmatprep.subr.bf16.mxu0 0
      %4337 = vmatpush1.bf16.msra.mxu0 0
      %4338 = vmatprep.subr.bf16.mxu0 0
      %4339 = vmatpush1.bf16.msra.mxu0 0
      %4340 = vmatprep.subr.bf16.mxu0 0
      %4341 = vmatpush1.bf16.msra.mxu0 0
      %4342 = vmatprep.subr.bf16.mxu0 0
      %4343 = vmatpush1.bf16.msra.mxu0 0
      %4344 = vmatprep.mubr.bf16.mxu0 0
      %4345 = vmatmul.mubr.bf16.gmra.mrb[0].mxu0 %v4217
      %v4346 = vpop.f32.mrb[0].mxu0
      %v4347 = vadd.f32 0.0, %v4346
      %v4348 = vpop.f32.mrb[0].mxu0
      %v4349 = vpop.f32.mrb[0].mxu0
      %v4350 = vadd.f32 0.0, %v4349
      %v4351 = vpop.f32.mrb[0].mxu0
      %4352 = vmatprep.mubr.bf16.mxu0 0
      %4353 = vmatmul.mubr.bf16.gmra.mrb[0].mxu0 %v4219
      %v4354 = vpop.f32.mrb[0].mxu0
      %v4355 = vadd.f32 0.0, %v4354
      %v4356 = vpop.f32.mrb[0].mxu0
      %v4357 = vpop.f32.mrb[0].mxu0
      %v4358 = vadd.f32 0.0, %v4357
      %v4359 = vpop.f32.mrb[0].mxu0
      %4360 = vmatprep.mubr.bf16.mxu0 0
      %4361 = vmatmul.mubr.bf16.gmra.mrb[0].mxu0 %v4221
      %v4362 = vpop.f32.mrb[0].mxu0
      %v4363 = vadd.f32 0.0, %v4362
      %v4364 = vpop.f32.mrb[0].mxu0
      %v4365 = vpop.f32.mrb[0].mxu0
      %v4366 = vadd.f32 0.0, %v4365
      %v4367 = vpop.f32.mrb[0].mxu0
      %4368 = vmatprep.mubr.bf16.mxu0 0
      %4369 = vmatmul.mubr.bf16.gmra.mrb[0].mxu0 %v4223
      %v4370 = vpop.f32.mrb[0].mxu0
      %v4371 = vadd.f32 0.0, %v4370
      %v4372 = vpop.f32.mrb[0].mxu0
      %v4373 = vpop.f32.mrb[0].mxu0
      %v4374 = vadd.f32 0.0, %v4373
      %v4375 = vpop.f32.mrb[0].mxu0
      %4376 = vmatprep.mubr.bf16.mxu0 0
      %4377 = vmatmul.mubr.bf16.gmra.mrb[0].mxu0 %v4225
      %v4378 = vpop.f32.mrb[0].mxu0
      %v4379 = vadd.f32 0.0, %v4378
      %v4380 = vpop.f32.mrb[0].mxu0
      %v4381 = vpop.f32.mrb[0].mxu0
      %v4382 = vadd.f32 0.0, %v4381
      %v4383 = vpop.f32.mrb[0].mxu0
      %4384 = vmatprep.mubr.bf16.mxu0 0
      %4385 = vmatmul.mubr.bf16.gmra.mrb[0].mxu0 %v4227
      %v4386 = vpop.f32.mrb[0].mxu0
      %v4387 = vadd.f32 0.0, %v4386
      %v4388 = vpop.f32.mrb[0].mxu0
      %v4389 = vpop.f32.mrb[0].mxu0
      %v4390 = vadd.f32 0.0, %v4389
      %v4391 = vpop.f32.mrb[0].mxu0
      %4392 = vmatprep.mubr.bf16.mxu0 0
      %4393 = vmatmul.mubr.bf16.gmra.mrb[0].mxu0 %v4229
      %v4394 = vpop.f32.mrb[0].mxu0
      %v4395 = vadd.f32 0.0, %v4394
      %v4396 = vpop.f32.mrb[0].mxu0
      %v4397 = vpop.f32.mrb[0].mxu0
      %v4398 = vadd.f32 0.0, %v4397
      %v4399 = vpop.f32.mrb[0].mxu0
      %4400 = vmatprep.mubr.bf16.mxu0 0
      %4401 = vmatmul.mubr.bf16.gmra.mrb[0].mxu0 %v4231
      %v4402 = vpop.f32.mrb[0].mxu0
      %v4403 = vadd.f32 0.0, %v4402
      %v4404 = vpop.f32.mrb[0].mxu0
      %v4405 = vpop.f32.mrb[0].mxu0
      %v4406 = vadd.f32 0.0, %v4405
      %v4407 = vpop.f32.mrb[0].mxu0
      %4408 = vmatprep.mubr.bf16.mxu0 0
      %4409 = vmatmul.mubr.bf16.gmra.mrb[0].mxu0 %v4233
      %v4410 = vpop.f32.mrb[0].mxu0
      %v4411 = vadd.f32 0.0, %v4410
      %v4412 = vpop.f32.mrb[0].mxu0
      %v4413 = vpop.f32.mrb[0].mxu0
      %v4414 = vadd.f32 0.0, %v4413
      %v4415 = vpop.f32.mrb[0].mxu0
      %4416 = vmatprep.mubr.bf16.mxu0 0
      %4417 = vmatmul.mubr.bf16.gmra.mrb[0].mxu0 %v4235
      %v4418 = vpop.f32.mrb[0].mxu0
      %v4419 = vadd.f32 0.0, %v4418
      %v4420 = vpop.f32.mrb[0].mxu0
      %v4421 = vpop.f32.mrb[0].mxu0
      %v4422 = vadd.f32 0.0, %v4421
      %v4423 = vpop.f32.mrb[0].mxu0
      %4424 = vmatprep.mubr.bf16.mxu0 0
      %4425 = vmatmul.mubr.bf16.gmra.mrb[0].mxu0 %v4237
      %v4426 = vpop.f32.mrb[0].mxu0
      %v4427 = vadd.f32 0.0, %v4426
      %v4428 = vpop.f32.mrb[0].mxu0
      %v4429 = vpop.f32.mrb[0].mxu0
      %v4430 = vadd.f32 0.0, %v4429
      %v4431 = vpop.f32.mrb[0].mxu0
      %4432 = vmatprep.mubr.bf16.mxu0 0
      %4433 = vmatmul.mubr.bf16.gmra.mrb[0].mxu0 %v4239
      %v4434 = vpop.f32.mrb[0].mxu0
      %v4435 = vadd.f32 0.0, %v4434
      %v4436 = vpop.f32.mrb[0].mxu0
      %v4437 = vpop.f32.mrb[0].mxu0
      %v4438 = vadd.f32 0.0, %v4437
      %v4439 = vpop.f32.mrb[0].mxu0
      %4440 = vmatprep.mubr.bf16.mxu0 0
      %4441 = vmatmul.mubr.bf16.gmra.mrb[0].mxu0 %v4241
      %v4442 = vpop.f32.mrb[0].mxu0
      %v4443 = vadd.f32 0.0, %v4442
      %v4444 = vpop.f32.mrb[0].mxu0
      %v4445 = vpop.f32.mrb[0].mxu0
      %v4446 = vadd.f32 0.0, %v4445
      %v4447 = vpop.f32.mrb[0].mxu0
      %4448 = vmatprep.mubr.bf16.mxu0 0
      %4449 = vmatmul.mubr.bf16.gmra.mrb[0].mxu0 %v4243
      %v4450 = vpop.f32.mrb[0].mxu0
      %v4451 = vadd.f32 0.0, %v4450
      %v4452 = vpop.f32.mrb[0].mxu0
      %v4453 = vpop.f32.mrb[0].mxu0
      %v4454 = vadd.f32 0.0, %v4453
      %v4455 = vpop.f32.mrb[0].mxu0
      %4456 = vmatprep.mubr.bf16.mxu0 0
      %4457 = vmatmul.mubr.bf16.gmra.mrb[0].mxu0 %v4245
      %v4458 = vpop.f32.mrb[0].mxu0
      %v4459 = vadd.f32 0.0, %v4458
      %v4460 = vpop.f32.mrb[0].mxu0
      %v4461 = vpop.f32.mrb[0].mxu0
      %v4462 = vadd.f32 0.0, %v4461
      %v4463 = vpop.f32.mrb[0].mxu0
      %4464 = vmatprep.mubr.bf16.mxu0 0
      %4465 = vmatmul.mubr.bf16.gmra.mrb[0].mxu0 %v4247
      %v4466 = vpop.f32.mrb[0].mxu0
      %v4467 = vadd.f32 0.0, %v4466
      %v4468 = vpop.f32.mrb[0].mxu0
      %v4469 = vpop.f32.mrb[0].mxu0
      %v4470 = vadd.f32 0.0, %v4469
      %v4471 = vpop.f32.mrb[0].mxu0
      %4472 = vdwg.mxu0
      %v4473 = vadd.f32 %v4131, %v4347
      %v4474 = vadd.f32 %v4132, %v4350
      %v4475 = vadd.f32 %v4133, %v4355
      %v4476 = vadd.f32 %v4134, %v4358
      %v4477 = vadd.f32 %v4135, %v4363
      %v4478 = vadd.f32 %v4136, %v4366
      %v4479 = vadd.f32 %v4137, %v4371
      %v4480 = vadd.f32 %v4138, %v4374
      %v4481 = vadd.f32 %v4139, %v4379
      %v4482 = vadd.f32 %v4140, %v4382
      %v4483 = vadd.f32 %v4141, %v4387
      %v4484 = vadd.f32 %v4142, %v4390
      %v4485 = vadd.f32 %v4143, %v4395
      %v4486 = vadd.f32 %v4144, %v4398
      %v4487 = vadd.f32 %v4145, %v4403
      %v4488 = vadd.f32 %v4146, %v4406
      %v4489 = vadd.f32 %v4147, %v4411
      %v4490 = vadd.f32 %v4148, %v4414
      %v4491 = vadd.f32 %v4149, %v4419
      %v4492 = vadd.f32 %v4150, %v4422
      %v4493 = vadd.f32 %v4151, %v4427
      %v4494 = vadd.f32 %v4152, %v4430
      %v4495 = vadd.f32 %v4153, %v4435
      %v4496 = vadd.f32 %v4154, %v4438
      %v4497 = vadd.f32 %v4155, %v4443
      %v4498 = vadd.f32 %v4156, %v4446
      %v4499 = vadd.f32 %v4157, %v4451
      %v4500 = vadd.f32 %v4158, %v4454
      %v4501 = vadd.f32 %v4159, %v4459
      %v4502 = vadd.f32 %v4160, %v4462
      %v4503 = vadd.f32 %v4161, %v4467
      %v4504 = vadd.f32 %v4162, %v4470
      %v4505 = vsel %vm3621, %v2117, 0
      %v4506 = vsel %vm2420, %v2125, 0
      %v4507 = vsel %vm2421, %v2133, 0
      %v4508 = vsel %vm2422, %v2141, 0
      %v4509 = vsel %vm2423, %v2149, 0
      %v4510 = vsel %vm2424, %v2157, 0
      %v4511 = vsel %vm2425, %v2165, 0
      %v4512 = vsel %vm2426, %v2173, 0
      %v4513 = vsel %vm2427, %v2181, 0
      %v4514 = vsel %vm2428, %v2189, 0
      %v4515 = vsel %vm2429, %v2197, 0
      %v4516 = vsel %vm2430, %v2205, 0
      %v4517 = vsel %vm2431, %v2213, 0
      %v4518 = vsel %vm2432, %v2221, 0
      %v4519 = vsel %vm2433, %v2229, 0
      %v4520 = vsel %vm2434, %v2250, 0
      %s4521 = scalar_lea.vmem %s5, 384
      %v4522 = vld [vmem:[%s4521] sm:$0xf]
      %v4523 = vld [vmem:[%s4521 + $0x4] sm:$0xf]
      %v4524 = vld [vmem:[%s4521 + $0x8] sm:$0xf]
      %v4525 = vld [vmem:[%s4521 + $0xc] sm:$0xf]
      %v4526 = vld [vmem:[%s4521 + $0x10] sm:$0xf]
      %v4527 = vld [vmem:[%s4521 + $0x14] sm:$0xf]
      %v4528 = vld [vmem:[%s4521 + $0x18] sm:$0xf]
      %v4529 = vld [vmem:[%s4521 + $0x1c] sm:$0xf]
      %v4530 = vld [vmem:[%s4521 + $0x20] sm:$0xf]
      %v4531 = vld [vmem:[%s4521 + $0x24] sm:$0xf]
      %v4532 = vld [vmem:[%s4521 + $0x28] sm:$0xf]
      %v4533 = vld [vmem:[%s4521 + $0x2c] sm:$0xf]
      %v4534 = vld [vmem:[%s4521 + $0x30] sm:$0xf]
      %v4535 = vld [vmem:[%s4521 + $0x34] sm:$0xf]
      %v4536 = vld [vmem:[%s4521 + $0x38] sm:$0xf]
      %v4537 = vld [vmem:[%s4521 + $0x3c] sm:$0xf]
      %v4554 = vunpack.c.l.b16 %v4522
      %v4555 = vunpack.c.l.b16 %v4523
      %v4556 = vunpack.c.l.b16 %v4524
      %v4557 = vunpack.c.l.b16 %v4525
      %v4558 = vunpack.c.l.b16 %v4526
      %v4559 = vunpack.c.l.b16 %v4527
      %v4560 = vunpack.c.l.b16 %v4528
      %v4561 = vunpack.c.l.b16 %v4529
      %v4562 = vunpack.c.l.b16 %v4530
      %v4563 = vunpack.c.l.b16 %v4531
      %v4564 = vunpack.c.l.b16 %v4532
      %v4565 = vunpack.c.l.b16 %v4533
      %v4566 = vunpack.c.l.b16 %v4534
      %v4567 = vunpack.c.l.b16 %v4535
      %v4568 = vunpack.c.l.b16 %v4536
      %v4569 = vunpack.c.l.b16 %v4537
      %v4570 = vpack.c.b16 %v4555, %v4554
      %v4571 = vpack.c.b16 %v4557, %v4556
      %v4572 = vpack.c.b16 %v4559, %v4558
      %v4573 = vpack.c.b16 %v4561, %v4560
      %v4574 = vpack.c.b16 %v4563, %v4562
      %v4575 = vpack.c.b16 %v4565, %v4564
      %v4576 = vpack.c.b16 %v4567, %v4566
      %v4577 = vpack.c.b16 %v4569, %v4568
      %4586 = vmatprep.subr.bf16.mxu0 0
      %4587 = vmatpush1.bf16.msra.mxu0 %v4570
      %4588 = vmatprep.subr.bf16.mxu0 0
      %4589 = vmatpush1.bf16.msra.mxu0 %v4571
      %4590 = vmatprep.subr.bf16.mxu0 0
      %4591 = vmatpush1.bf16.msra.mxu0 %v4572
      %4592 = vmatprep.subr.bf16.mxu0 0
      %4593 = vmatpush1.bf16.msra.mxu0 %v4573
      %4594 = vmatprep.subr.bf16.mxu0 0
      %4595 = vmatpush1.bf16.msra.mxu0 %v4574
      %4596 = vmatprep.subr.bf16.mxu0 0
      %4597 = vmatpush1.bf16.msra.mxu0 %v4575
      %4598 = vmatprep.subr.bf16.mxu0 0
      %4599 = vmatpush1.bf16.msra.mxu0 %v4576
      %4600 = vmatprep.subr.bf16.mxu0 0
      %4601 = vmatpush1.bf16.msra.mxu0 %v4577
      %4602 = vmatprep.subr.bf16.mxu0 0
      %4603 = vmatpush1.bf16.msra.mxu0 0
      %4604 = vmatprep.subr.bf16.mxu0 0
      %4605 = vmatpush1.bf16.msra.mxu0 0
      %4606 = vmatprep.subr.bf16.mxu0 0
      %4607 = vmatpush1.bf16.msra.mxu0 0
      %4608 = vmatprep.subr.bf16.mxu0 0
      %4609 = vmatpush1.bf16.msra.mxu0 0
      %4610 = vmatprep.subr.bf16.mxu0 0
      %4611 = vmatpush1.bf16.msra.mxu0 0
      %4612 = vmatprep.subr.bf16.mxu0 0
      %4613 = vmatpush1.bf16.msra.mxu0 0
      %4614 = vmatprep.subr.bf16.mxu0 0
      %4615 = vmatpush1.bf16.msra.mxu0 0
      %4616 = vmatprep.subr.bf16.mxu0 0
      %4617 = vmatpush1.bf16.msra.mxu0 0
      %4618 = vmatprep.mubr.bf16.mxu0 0
      %4619 = vmatmul.mubr.bf16.gmra.mrb[0].mxu0 %v4505
      %v4620 = vpop.f32.mrb[0].mxu0
      %v4621 = vadd.f32 0.0, %v4620
      %v4622 = vpop.f32.mrb[0].mxu0
      %v4623 = vpop.f32.mrb[0].mxu0
      %v4624 = vadd.f32 0.0, %v4623
      %v4625 = vpop.f32.mrb[0].mxu0
      %4626 = vmatprep.mubr.bf16.mxu0 0
      %4627 = vmatmul.mubr.bf16.gmra.mrb[0].mxu0 %v4506
      %v4628 = vpop.f32.mrb[0].mxu0
      %v4629 = vadd.f32 0.0, %v4628
      %v4630 = vpop.f32.mrb[0].mxu0
      %v4631 = vpop.f32.mrb[0].mxu0
      %v4632 = vadd.f32 0.0, %v4631
      %v4633 = vpop.f32.mrb[0].mxu0
      %4634 = vmatprep.mubr.bf16.mxu0 0
      %4635 = vmatmul.mubr.bf16.gmra.mrb[0].mxu0 %v4507
      %v4636 = vpop.f32.mrb[0].mxu0
      %v4637 = vadd.f32 0.0, %v4636
      %v4638 = vpop.f32.mrb[0].mxu0
      %v4639 = vpop.f32.mrb[0].mxu0
      %v4640 = vadd.f32 0.0, %v4639
      %v4641 = vpop.f32.mrb[0].mxu0
      %4642 = vmatprep.mubr.bf16.mxu0 0
      %4643 = vmatmul.mubr.bf16.gmra.mrb[0].mxu0 %v4508
      %v4644 = vpop.f32.mrb[0].mxu0
      %v4645 = vadd.f32 0.0, %v4644
      %v4646 = vpop.f32.mrb[0].mxu0
      %v4647 = vpop.f32.mrb[0].mxu0
      %v4648 = vadd.f32 0.0, %v4647
      %v4649 = vpop.f32.mrb[0].mxu0
      %4650 = vmatprep.mubr.bf16.mxu0 0
      %4651 = vmatmul.mubr.bf16.gmra.mrb[0].mxu0 %v4509
      %v4652 = vpop.f32.mrb[0].mxu0
      %v4653 = vadd.f32 0.0, %v4652
      %v4654 = vpop.f32.mrb[0].mxu0
      %v4655 = vpop.f32.mrb[0].mxu0
      %v4656 = vadd.f32 0.0, %v4655
      %v4657 = vpop.f32.mrb[0].mxu0
      %4658 = vmatprep.mubr.bf16.mxu0 0
      %4659 = vmatmul.mubr.bf16.gmra.mrb[0].mxu0 %v4510
      %v4660 = vpop.f32.mrb[0].mxu0
      %v4661 = vadd.f32 0.0, %v4660
      %v4662 = vpop.f32.mrb[0].mxu0
      %v4663 = vpop.f32.mrb[0].mxu0
      %v4664 = vadd.f32 0.0, %v4663
      %v4665 = vpop.f32.mrb[0].mxu0
      %4666 = vmatprep.mubr.bf16.mxu0 0
      %4667 = vmatmul.mubr.bf16.gmra.mrb[0].mxu0 %v4511
      %v4668 = vpop.f32.mrb[0].mxu0
      %v4669 = vadd.f32 0.0, %v4668
      %v4670 = vpop.f32.mrb[0].mxu0
      %v4671 = vpop.f32.mrb[0].mxu0
      %v4672 = vadd.f32 0.0, %v4671
      %v4673 = vpop.f32.mrb[0].mxu0
      %4674 = vmatprep.mubr.bf16.mxu0 0
      %4675 = vmatmul.mubr.bf16.gmra.mrb[0].mxu0 %v4512
      %v4676 = vpop.f32.mrb[0].mxu0
      %v4677 = vadd.f32 0.0, %v4676
      %v4678 = vpop.f32.mrb[0].mxu0
      %v4679 = vpop.f32.mrb[0].mxu0
      %v4680 = vadd.f32 0.0, %v4679
      %v4681 = vpop.f32.mrb[0].mxu0
      %4682 = vmatprep.mubr.bf16.mxu0 0
      %4683 = vmatmul.mubr.bf16.gmra.mrb[0].mxu0 %v4513
      %v4684 = vpop.f32.mrb[0].mxu0
      %v4685 = vadd.f32 0.0, %v4684
      %v4686 = vpop.f32.mrb[0].mxu0
      %v4687 = vpop.f32.mrb[0].mxu0
      %v4688 = vadd.f32 0.0, %v4687
      %v4689 = vpop.f32.mrb[0].mxu0
      %4690 = vmatprep.mubr.bf16.mxu0 0
      %4691 = vmatmul.mubr.bf16.gmra.mrb[0].mxu0 %v4514
      %v4692 = vpop.f32.mrb[0].mxu0
      %v4693 = vadd.f32 0.0, %v4692
      %v4694 = vpop.f32.mrb[0].mxu0
      %v4695 = vpop.f32.mrb[0].mxu0
      %v4696 = vadd.f32 0.0, %v4695
      %v4697 = vpop.f32.mrb[0].mxu0
      %4698 = vmatprep.mubr.bf16.mxu0 0
      %4699 = vmatmul.mubr.bf16.gmra.mrb[0].mxu0 %v4515
      %v4700 = vpop.f32.mrb[0].mxu0
      %v4701 = vadd.f32 0.0, %v4700
      %v4702 = vpop.f32.mrb[0].mxu0
      %v4703 = vpop.f32.mrb[0].mxu0
      %v4704 = vadd.f32 0.0, %v4703
      %v4705 = vpop.f32.mrb[0].mxu0
      %4706 = vmatprep.mubr.bf16.mxu0 0
      %4707 = vmatmul.mubr.bf16.gmra.mrb[0].mxu0 %v4516
      %v4708 = vpop.f32.mrb[0].mxu0
      %v4709 = vadd.f32 0.0, %v4708
      %v4710 = vpop.f32.mrb[0].mxu0
      %v4711 = vpop.f32.mrb[0].mxu0
      %v4712 = vadd.f32 0.0, %v4711
      %v4713 = vpop.f32.mrb[0].mxu0
      %4714 = vmatprep.mubr.bf16.mxu0 0
      %4715 = vmatmul.mubr.bf16.gmra.mrb[0].mxu0 %v4517
      %v4716 = vpop.f32.mrb[0].mxu0
      %v4717 = vadd.f32 0.0, %v4716
      %v4718 = vpop.f32.mrb[0].mxu0
      %v4719 = vpop.f32.mrb[0].mxu0
      %v4720 = vadd.f32 0.0, %v4719
      %v4721 = vpop.f32.mrb[0].mxu0
      %4722 = vmatprep.mubr.bf16.mxu0 0
      %4723 = vmatmul.mubr.bf16.gmra.mrb[0].mxu0 %v4518
      %v4724 = vpop.f32.mrb[0].mxu0
      %v4725 = vadd.f32 0.0, %v4724
      %v4726 = vpop.f32.mrb[0].mxu0
      %v4727 = vpop.f32.mrb[0].mxu0
      %v4728 = vadd.f32 0.0, %v4727
      %v4729 = vpop.f32.mrb[0].mxu0
      %4730 = vmatprep.mubr.bf16.mxu0 0
      %4731 = vmatmul.mubr.bf16.gmra.mrb[0].mxu0 %v4519
      %v4732 = vpop.f32.mrb[0].mxu0
      %v4733 = vadd.f32 0.0, %v4732
      %v4734 = vpop.f32.mrb[0].mxu0
      %v4735 = vpop.f32.mrb[0].mxu0
      %v4736 = vadd.f32 0.0, %v4735
      %v4737 = vpop.f32.mrb[0].mxu0
      %4738 = vmatprep.mubr.bf16.mxu0 0
      %4739 = vmatmul.mubr.bf16.gmra.mrb[0].mxu0 %v4520
      %v4740 = vpop.f32.mrb[0].mxu0
      %v4741 = vadd.f32 0.0, %v4740
      %v4742 = vpop.f32.mrb[0].mxu0
      %v4743 = vpop.f32.mrb[0].mxu0
      %v4744 = vadd.f32 0.0, %v4743
      %v4745 = vpop.f32.mrb[0].mxu0
      %4746 = vdwg.mxu0
      %v4747 = vadd.f32 %v4473, %v4621
      %v4748 = vadd.f32 %v4474, %v4624
      %v4749 = vadd.f32 %v4475, %v4629
      %v4750 = vadd.f32 %v4476, %v4632
      %v4751 = vadd.f32 %v4477, %v4637
      %v4752 = vadd.f32 %v4478, %v4640
      %v4753 = vadd.f32 %v4479, %v4645
      %v4754 = vadd.f32 %v4480, %v4648
      %v4755 = vadd.f32 %v4481, %v4653
      %v4756 = vadd.f32 %v4482, %v4656
      %v4757 = vadd.f32 %v4483, %v4661
      %v4758 = vadd.f32 %v4484, %v4664
      %v4759 = vadd.f32 %v4485, %v4669
      %v4760 = vadd.f32 %v4486, %v4672
      %v4761 = vadd.f32 %v4487, %v4677
      %v4762 = vadd.f32 %v4488, %v4680
      %v4763 = vadd.f32 %v4489, %v4685
      %v4764 = vadd.f32 %v4490, %v4688
      %v4765 = vadd.f32 %v4491, %v4693
      %v4766 = vadd.f32 %v4492, %v4696
      %v4767 = vadd.f32 %v4493, %v4701
      %v4768 = vadd.f32 %v4494, %v4704
      %v4769 = vadd.f32 %v4495, %v4709
      %v4770 = vadd.f32 %v4496, %v4712
      %v4771 = vadd.f32 %v4497, %v4717
      %v4772 = vadd.f32 %v4498, %v4720
      %v4773 = vadd.f32 %v4499, %v4725
      %v4774 = vadd.f32 %v4500, %v4728
      %v4775 = vadd.f32 %v4501, %v4733
      %v4776 = vadd.f32 %v4502, %v4736
      %v4777 = vadd.f32 %v4503, %v4741
      %v4778 = vadd.f32 %v4504, %v4744
      %s4779 = scalar_lea.vmem %s5, 448
      %v4780 = vld [vmem:[%s4779] sm:$0xf]
      %v4781 = vld [vmem:[%s4779 + $0x4] sm:$0xf]
      %v4782 = vld [vmem:[%s4779 + $0x8] sm:$0xf]
      %v4783 = vld [vmem:[%s4779 + $0xc] sm:$0xf]
      %v4784 = vld [vmem:[%s4779 + $0x10] sm:$0xf]
      %v4785 = vld [vmem:[%s4779 + $0x14] sm:$0xf]
      %v4786 = vld [vmem:[%s4779 + $0x18] sm:$0xf]
      %v4787 = vld [vmem:[%s4779 + $0x1c] sm:$0xf]
      %v4788 = vld [vmem:[%s4779 + $0x20] sm:$0xf]
      %v4789 = vld [vmem:[%s4779 + $0x24] sm:$0xf]
      %v4790 = vld [vmem:[%s4779 + $0x28] sm:$0xf]
      %v4791 = vld [vmem:[%s4779 + $0x2c] sm:$0xf]
      %v4792 = vld [vmem:[%s4779 + $0x30] sm:$0xf]
      %v4793 = vld [vmem:[%s4779 + $0x34] sm:$0xf]
      %v4794 = vld [vmem:[%s4779 + $0x38] sm:$0xf]
      %v4795 = vld [vmem:[%s4779 + $0x3c] sm:$0xf]
      %v4796 = vshrl.u32 %v2250, 16
      %v4798 = vor.u32 %v4796, %v3919
      %v4799 = vsel %vm2483, %v4798, %v2489
      %v4817 = vunpack.c.l.b16 %v4780
      %v4818 = vunpack.c.l.b16 %v4781
      %v4819 = vunpack.c.l.b16 %v4782
      %v4820 = vunpack.c.l.b16 %v4783
      %v4821 = vunpack.c.l.b16 %v4784
      %v4822 = vunpack.c.l.b16 %v4785
      %v4823 = vunpack.c.l.b16 %v4786
      %v4824 = vunpack.c.l.b16 %v4787
      %v4825 = vunpack.c.l.b16 %v4788
      %v4826 = vunpack.c.l.b16 %v4789
      %v4827 = vunpack.c.l.b16 %v4790
      %v4828 = vunpack.c.l.b16 %v4791
      %v4829 = vunpack.c.l.b16 %v4792
      %v4830 = vunpack.c.l.b16 %v4793
      %v4831 = vunpack.c.l.b16 %v4794
      %v4832 = vunpack.c.l.b16 %v4795
      %v4833 = vpack.c.b16 %v4818, %v4817
      %v4834 = vpack.c.b16 %v4820, %v4819
      %v4835 = vpack.c.b16 %v4822, %v4821
      %v4836 = vpack.c.b16 %v4824, %v4823
      %v4837 = vpack.c.b16 %v4826, %v4825
      %v4838 = vpack.c.b16 %v4828, %v4827
      %v4839 = vpack.c.b16 %v4830, %v4829
      %v4840 = vpack.c.b16 %v4832, %v4831
      %4849 = vmatprep.subr.bf16.mxu0 0
      %4850 = vmatpush1.bf16.msra.mxu0 %v4833
      %4851 = vmatprep.subr.bf16.mxu0 0
      %4852 = vmatpush1.bf16.msra.mxu0 %v4834
      %4853 = vmatprep.subr.bf16.mxu0 0
      %4854 = vmatpush1.bf16.msra.mxu0 %v4835
      %4855 = vmatprep.subr.bf16.mxu0 0
      %4856 = vmatpush1.bf16.msra.mxu0 %v4836
      %4857 = vmatprep.subr.bf16.mxu0 0
      %4858 = vmatpush1.bf16.msra.mxu0 %v4837
      %4859 = vmatprep.subr.bf16.mxu0 0
      %4860 = vmatpush1.bf16.msra.mxu0 %v4838
      %4861 = vmatprep.subr.bf16.mxu0 0
      %4862 = vmatpush1.bf16.msra.mxu0 %v4839
      %4863 = vmatprep.subr.bf16.mxu0 0
      %4864 = vmatpush1.bf16.msra.mxu0 %v4840
      %4865 = vmatprep.subr.bf16.mxu0 0
      %4866 = vmatpush1.bf16.msra.mxu0 0
      %4867 = vmatprep.subr.bf16.mxu0 0
      %4868 = vmatpush1.bf16.msra.mxu0 0
      %4869 = vmatprep.subr.bf16.mxu0 0
      %4870 = vmatpush1.bf16.msra.mxu0 0
      %4871 = vmatprep.subr.bf16.mxu0 0
      %4872 = vmatpush1.bf16.msra.mxu0 0
      %4873 = vmatprep.subr.bf16.mxu0 0
      %4874 = vmatpush1.bf16.msra.mxu0 0
      %4875 = vmatprep.subr.bf16.mxu0 0
      %4876 = vmatpush1.bf16.msra.mxu0 0
      %4877 = vmatprep.subr.bf16.mxu0 0
      %4878 = vmatpush1.bf16.msra.mxu0 0
      %4879 = vmatprep.subr.bf16.mxu0 0
      %4880 = vmatpush1.bf16.msra.mxu0 0
      %4881 = vmatprep.mubr.bf16.mxu0 0
      %4882 = vmatmul.mubr.bf16.gmra.mrb[0].mxu0 %v2511
      %v4883 = vpop.f32.mrb[0].mxu0
      %v4884 = vadd.f32 0.0, %v4883
      %v4885 = vpop.f32.mrb[0].mxu0
      %v4886 = vpop.f32.mrb[0].mxu0
      %v4887 = vadd.f32 0.0, %v4886
      %v4888 = vpop.f32.mrb[0].mxu0
      %4889 = vmatprep.mubr.bf16.mxu0 0
      %4890 = vmatmul.mubr.bf16.gmra.mrb[0].mxu0 %v2519
      %v4891 = vpop.f32.mrb[0].mxu0
      %v4892 = vadd.f32 0.0, %v4891
      %v4893 = vpop.f32.mrb[0].mxu0
      %v4894 = vpop.f32.mrb[0].mxu0
      %v4895 = vadd.f32 0.0, %v4894
      %v4896 = vpop.f32.mrb[0].mxu0
      %4897 = vmatprep.mubr.bf16.mxu0 0
      %4898 = vmatmul.mubr.bf16.gmra.mrb[0].mxu0 %v2527
      %v4899 = vpop.f32.mrb[0].mxu0
      %v4900 = vadd.f32 0.0, %v4899
      %v4901 = vpop.f32.mrb[0].mxu0
      %v4902 = vpop.f32.mrb[0].mxu0
      %v4903 = vadd.f32 0.0, %v4902
      %v4904 = vpop.f32.mrb[0].mxu0
      %4905 = vmatprep.mubr.bf16.mxu0 0
      %4906 = vmatmul.mubr.bf16.gmra.mrb[0].mxu0 %v2535
      %v4907 = vpop.f32.mrb[0].mxu0
      %v4908 = vadd.f32 0.0, %v4907
      %v4909 = vpop.f32.mrb[0].mxu0
      %v4910 = vpop.f32.mrb[0].mxu0
      %v4911 = vadd.f32 0.0, %v4910
      %v4912 = vpop.f32.mrb[0].mxu0
      %4913 = vmatprep.mubr.bf16.mxu0 0
      %4914 = vmatmul.mubr.bf16.gmra.mrb[0].mxu0 %v2543
      %v4915 = vpop.f32.mrb[0].mxu0
      %v4916 = vadd.f32 0.0, %v4915
      %v4917 = vpop.f32.mrb[0].mxu0
      %v4918 = vpop.f32.mrb[0].mxu0
      %v4919 = vadd.f32 0.0, %v4918
      %v4920 = vpop.f32.mrb[0].mxu0
      %4921 = vmatprep.mubr.bf16.mxu0 0
      %4922 = vmatmul.mubr.bf16.gmra.mrb[0].mxu0 %v2551
      %v4923 = vpop.f32.mrb[0].mxu0
      %v4924 = vadd.f32 0.0, %v4923
      %v4925 = vpop.f32.mrb[0].mxu0
      %v4926 = vpop.f32.mrb[0].mxu0
      %v4927 = vadd.f32 0.0, %v4926
      %v4928 = vpop.f32.mrb[0].mxu0
      %4929 = vmatprep.mubr.bf16.mxu0 0
      %4930 = vmatmul.mubr.bf16.gmra.mrb[0].mxu0 %v2559
      %v4931 = vpop.f32.mrb[0].mxu0
      %v4932 = vadd.f32 0.0, %v4931
      %v4933 = vpop.f32.mrb[0].mxu0
      %v4934 = vpop.f32.mrb[0].mxu0
      %v4935 = vadd.f32 0.0, %v4934
      %v4936 = vpop.f32.mrb[0].mxu0
      %4937 = vmatprep.mubr.bf16.mxu0 0
      %4938 = vmatmul.mubr.bf16.gmra.mrb[0].mxu0 %v2567
      %v4939 = vpop.f32.mrb[0].mxu0
      %v4940 = vadd.f32 0.0, %v4939
      %v4941 = vpop.f32.mrb[0].mxu0
      %v4942 = vpop.f32.mrb[0].mxu0
      %v4943 = vadd.f32 0.0, %v4942
      %v4944 = vpop.f32.mrb[0].mxu0
      %4945 = vmatprep.mubr.bf16.mxu0 0
      %4946 = vmatmul.mubr.bf16.gmra.mrb[0].mxu0 %v2575
      %v4947 = vpop.f32.mrb[0].mxu0
      %v4948 = vadd.f32 0.0, %v4947
      %v4949 = vpop.f32.mrb[0].mxu0
      %v4950 = vpop.f32.mrb[0].mxu0
      %v4951 = vadd.f32 0.0, %v4950
      %v4952 = vpop.f32.mrb[0].mxu0
      %4953 = vmatprep.mubr.bf16.mxu0 0
      %4954 = vmatmul.mubr.bf16.gmra.mrb[0].mxu0 %v2583
      %v4955 = vpop.f32.mrb[0].mxu0
      %v4956 = vadd.f32 0.0, %v4955
      %v4957 = vpop.f32.mrb[0].mxu0
      %v4958 = vpop.f32.mrb[0].mxu0
      %v4959 = vadd.f32 0.0, %v4958
      %v4960 = vpop.f32.mrb[0].mxu0
      %4961 = vmatprep.mubr.bf16.mxu0 0
      %4962 = vmatmul.mubr.bf16.gmra.mrb[0].mxu0 %v2591
      %v4963 = vpop.f32.mrb[0].mxu0
      %v4964 = vadd.f32 0.0, %v4963
      %v4965 = vpop.f32.mrb[0].mxu0
      %v4966 = vpop.f32.mrb[0].mxu0
      %v4967 = vadd.f32 0.0, %v4966
      %v4968 = vpop.f32.mrb[0].mxu0
      %4969 = vmatprep.mubr.bf16.mxu0 0
      %4970 = vmatmul.mubr.bf16.gmra.mrb[0].mxu0 %v2599
      %v4971 = vpop.f32.mrb[0].mxu0
      %v4972 = vadd.f32 0.0, %v4971
      %v4973 = vpop.f32.mrb[0].mxu0
      %v4974 = vpop.f32.mrb[0].mxu0
      %v4975 = vadd.f32 0.0, %v4974
      %v4976 = vpop.f32.mrb[0].mxu0
      %4977 = vmatprep.mubr.bf16.mxu0 0
      %4978 = vmatmul.mubr.bf16.gmra.mrb[0].mxu0 %v2607
      %v4979 = vpop.f32.mrb[0].mxu0
      %v4980 = vadd.f32 0.0, %v4979
      %v4981 = vpop.f32.mrb[0].mxu0
      %v4982 = vpop.f32.mrb[0].mxu0
      %v4983 = vadd.f32 0.0, %v4982
      %v4984 = vpop.f32.mrb[0].mxu0
      %4985 = vmatprep.mubr.bf16.mxu0 0
      %4986 = vmatmul.mubr.bf16.gmra.mrb[0].mxu0 %v2615
      %v4987 = vpop.f32.mrb[0].mxu0
      %v4988 = vadd.f32 0.0, %v4987
      %v4989 = vpop.f32.mrb[0].mxu0
      %v4990 = vpop.f32.mrb[0].mxu0
      %v4991 = vadd.f32 0.0, %v4990
      %v4992 = vpop.f32.mrb[0].mxu0
      %4993 = vmatprep.mubr.bf16.mxu0 0
      %4994 = vmatmul.mubr.bf16.gmra.mrb[0].mxu0 %v3920
      %v4995 = vpop.f32.mrb[0].mxu0
      %v4996 = vadd.f32 0.0, %v4995
      %v4997 = vpop.f32.mrb[0].mxu0
      %v4998 = vpop.f32.mrb[0].mxu0
      %v4999 = vadd.f32 0.0, %v4998
      %v5000 = vpop.f32.mrb[0].mxu0
      %5001 = vmatprep.mubr.bf16.mxu0 0
      %5002 = vmatmul.mubr.bf16.gmra.mrb[0].mxu0 %v4799
      %v5003 = vpop.f32.mrb[0].mxu0
      %v5004 = vadd.f32 0.0, %v5003
      %v5005 = vpop.f32.mrb[0].mxu0
      %v5006 = vpop.f32.mrb[0].mxu0
      %v5007 = vadd.f32 0.0, %v5006
      %v5008 = vpop.f32.mrb[0].mxu0
      %5009 = vdwg.mxu0
      %v5010 = vadd.f32 %v4747, %v4884
      %v5011 = vadd.f32 %v4748, %v4887
      %v5012 = vadd.f32 %v4749, %v4892
      %v5013 = vadd.f32 %v4750, %v4895
      %v5014 = vadd.f32 %v4751, %v4900
      %v5015 = vadd.f32 %v4752, %v4903
      %v5016 = vadd.f32 %v4753, %v4908
      %v5017 = vadd.f32 %v4754, %v4911
      %v5018 = vadd.f32 %v4755, %v4916
      %v5019 = vadd.f32 %v4756, %v4919
      %v5020 = vadd.f32 %v4757, %v4924
      %v5021 = vadd.f32 %v4758, %v4927
      %v5022 = vadd.f32 %v4759, %v4932
      %v5023 = vadd.f32 %v4760, %v4935
      %v5024 = vadd.f32 %v4761, %v4940
      %v5025 = vadd.f32 %v4762, %v4943
      %v5026 = vadd.f32 %v4763, %v4948
      %v5027 = vadd.f32 %v4764, %v4951
      %v5028 = vadd.f32 %v4765, %v4956
      %v5029 = vadd.f32 %v4766, %v4959
      %v5030 = vadd.f32 %v4767, %v4964
      %v5031 = vadd.f32 %v4768, %v4967
      %v5032 = vadd.f32 %v4769, %v4972
      %v5033 = vadd.f32 %v4770, %v4975
      %v5034 = vadd.f32 %v4771, %v4980
      %v5035 = vadd.f32 %v4772, %v4983
      %v5036 = vadd.f32 %v4773, %v4988
      %v5037 = vadd.f32 %v4774, %v4991
      %v5038 = vadd.f32 %v4775, %v4996
      %v5039 = vadd.f32 %v4776, %v4999
      %v5040 = vadd.f32 %v4777, %v5004
      %v5041 = vadd.f32 %v4778, %v5007
      %v5042 = vsel %vm4163, %v2117, 0
      %v5043 = vsel %vm3257, %v2125, 0
      %v5044 = vsel %vm3258, %v2133, 0
      %v5045 = vsel %vm3259, %v2141, 0
      %v5046 = vsel %vm3260, %v2149, 0
      %v5047 = vsel %vm3261, %v2157, 0
      %v5048 = vsel %vm3262, %v2165, 0
      %v5049 = vsel %vm3263, %v2173, 0
      %v5050 = vsel %vm3264, %v2181, 0
      %v5051 = vsel %vm3265, %v2189, 0
      %v5052 = vsel %vm3266, %v2197, 0
      %v5053 = vsel %vm3267, %v2205, 0
      %v5054 = vsel %vm3268, %v2213, 0
      %v5055 = vsel %vm3269, %v2221, 0
      %v5056 = vsel %vm3270, %v2229, 0
      %v5057 = vsel %vm3271, %v2250, 0
      %s5058 = scalar_lea.vmem %s5, 512
      %v5059 = vld [vmem:[%s5058] sm:$0xf]
      %v5060 = vld [vmem:[%s5058 + $0x4] sm:$0xf]
      %v5061 = vld [vmem:[%s5058 + $0x8] sm:$0xf]
      %v5062 = vld [vmem:[%s5058 + $0xc] sm:$0xf]
      %v5063 = vld [vmem:[%s5058 + $0x10] sm:$0xf]
      %v5064 = vld [vmem:[%s5058 + $0x14] sm:$0xf]
      %v5065 = vld [vmem:[%s5058 + $0x18] sm:$0xf]
      %v5066 = vld [vmem:[%s5058 + $0x1c] sm:$0xf]
      %v5067 = vld [vmem:[%s5058 + $0x20] sm:$0xf]
      %v5068 = vld [vmem:[%s5058 + $0x24] sm:$0xf]
      %v5069 = vld [vmem:[%s5058 + $0x28] sm:$0xf]
      %v5070 = vld [vmem:[%s5058 + $0x2c] sm:$0xf]
      %v5071 = vld [vmem:[%s5058 + $0x30] sm:$0xf]
      %v5072 = vld [vmem:[%s5058 + $0x34] sm:$0xf]
      %v5073 = vld [vmem:[%s5058 + $0x38] sm:$0xf]
      %v5074 = vld [vmem:[%s5058 + $0x3c] sm:$0xf]
      %v5091 = vrot.slane %v5042, 1
      %v5092 = vrot.slane %v5043, 1
      %v5093 = vsel %vm3323, %v5091, %v5092
      %v5094 = vrot.slane %v5044, 1
      %v5095 = vsel %vm3323, %v5092, %v5094
      %v5096 = vrot.slane %v5045, 1
      %v5097 = vsel %vm3323, %v5094, %v5096
      %v5098 = vrot.slane %v5046, 1
      %v5099 = vsel %vm3323, %v5096, %v5098
      %v5100 = vrot.slane %v5047, 1
      %v5101 = vsel %vm3323, %v5098, %v5100
      %v5102 = vrot.slane %v5048, 1
      %v5103 = vsel %vm3323, %v5100, %v5102
      %v5104 = vrot.slane %v5049, 1
      %v5105 = vsel %vm3323, %v5102, %v5104
      %v5106 = vrot.slane %v5050, 1
      %v5107 = vsel %vm3323, %v5104, %v5106
      %v5108 = vrot.slane %v5051, 1
      %v5109 = vsel %vm3323, %v5106, %v5108
      %v5110 = vrot.slane %v5052, 1
      %v5111 = vsel %vm3323, %v5108, %v5110
      %v5112 = vrot.slane %v5053, 1
      %v5113 = vsel %vm3323, %v5110, %v5112
      %v5114 = vrot.slane %v5054, 1
      %v5115 = vsel %vm3323, %v5112, %v5114
      %v5116 = vrot.slane %v5055, 1
      %v5117 = vsel %vm3323, %v5114, %v5116
      %v5118 = vrot.slane %v5056, 1
      %v5119 = vsel %vm3323, %v5116, %v5118
      %v5120 = vrot.slane %v5057, 1
      %v5121 = vsel %vm3323, %v5118, %v5120
      %v5122 = vsel %vm3323, %v5120, %v3324
      %v5155 = vunpack.c.l.b16 %v5059
      %v5156 = vunpack.c.l.b16 %v5060
      %v5157 = vunpack.c.l.b16 %v5061
      %v5158 = vunpack.c.l.b16 %v5062
      %v5159 = vunpack.c.l.b16 %v5063
      %v5160 = vunpack.c.l.b16 %v5064
      %v5161 = vunpack.c.l.b16 %v5065
      %v5162 = vunpack.c.l.b16 %v5066
      %v5163 = vunpack.c.l.b16 %v5067
      %v5164 = vunpack.c.l.b16 %v5068
      %v5165 = vunpack.c.l.b16 %v5069
      %v5166 = vunpack.c.l.b16 %v5070
      %v5167 = vunpack.c.l.b16 %v5071
      %v5168 = vunpack.c.l.b16 %v5072
      %v5169 = vunpack.c.l.b16 %v5073
      %v5170 = vunpack.c.l.b16 %v5074
      %v5171 = vpack.c.b16 %v5156, %v5155
      %v5172 = vpack.c.b16 %v5158, %v5157
      %v5173 = vpack.c.b16 %v5160, %v5159
      %v5174 = vpack.c.b16 %v5162, %v5161
      %v5175 = vpack.c.b16 %v5164, %v5163
      %v5176 = vpack.c.b16 %v5166, %v5165
      %v5177 = vpack.c.b16 %v5168, %v5167
      %v5178 = vpack.c.b16 %v5170, %v5169
      %5187 = vmatprep.subr.bf16.mxu0 0
      %5188 = vmatpush1.bf16.msra.mxu0 %v5171
      %5189 = vmatprep.subr.bf16.mxu0 0
      %5190 = vmatpush1.bf16.msra.mxu0 %v5172
      %5191 = vmatprep.subr.bf16.mxu0 0
      %5192 = vmatpush1.bf16.msra.mxu0 %v5173
      %5193 = vmatprep.subr.bf16.mxu0 0
      %5194 = vmatpush1.bf16.msra.mxu0 %v5174
      %5195 = vmatprep.subr.bf16.mxu0 0
      %5196 = vmatpush1.bf16.msra.mxu0 %v5175
      %5197 = vmatprep.subr.bf16.mxu0 0
      %5198 = vmatpush1.bf16.msra.mxu0 %v5176
      %5199 = vmatprep.subr.bf16.mxu0 0
      %5200 = vmatpush1.bf16.msra.mxu0 %v5177
      %5201 = vmatprep.subr.bf16.mxu0 0
      %5202 = vmatpush1.bf16.msra.mxu0 %v5178
      %5203 = vmatprep.subr.bf16.mxu0 0
      %5204 = vmatpush1.bf16.msra.mxu0 0
      %5205 = vmatprep.subr.bf16.mxu0 0
      %5206 = vmatpush1.bf16.msra.mxu0 0
      %5207 = vmatprep.subr.bf16.mxu0 0
      %5208 = vmatpush1.bf16.msra.mxu0 0
      %5209 = vmatprep.subr.bf16.mxu0 0
      %5210 = vmatpush1.bf16.msra.mxu0 0
      %5211 = vmatprep.subr.bf16.mxu0 0
      %5212 = vmatpush1.bf16.msra.mxu0 0
      %5213 = vmatprep.subr.bf16.mxu0 0
      %5214 = vmatpush1.bf16.msra.mxu0 0
      %5215 = vmatprep.subr.bf16.mxu0 0
      %5216 = vmatpush1.bf16.msra.mxu0 0
      %5217 = vmatprep.subr.bf16.mxu0 0
      %5218 = vmatpush1.bf16.msra.mxu0 0
      %5219 = vmatprep.mubr.bf16.mxu0 0
      %5220 = vmatmul.mubr.bf16.gmra.mrb[0].mxu0 %v5093
      %v5221 = vpop.f32.mrb[0].mxu0
      %v5222 = vadd.f32 0.0, %v5221
      %v5223 = vpop.f32.mrb[0].mxu0
      %v5224 = vpop.f32.mrb[0].mxu0
      %v5225 = vadd.f32 0.0, %v5224
      %v5226 = vpop.f32.mrb[0].mxu0
      %5227 = vmatprep.mubr.bf16.mxu0 0
      %5228 = vmatmul.mubr.bf16.gmra.mrb[0].mxu0 %v5095
      %v5229 = vpop.f32.mrb[0].mxu0
      %v5230 = vadd.f32 0.0, %v5229
      %v5231 = vpop.f32.mrb[0].mxu0
      %v5232 = vpop.f32.mrb[0].mxu0
      %v5233 = vadd.f32 0.0, %v5232
      %v5234 = vpop.f32.mrb[0].mxu0
      %5235 = vmatprep.mubr.bf16.mxu0 0
      %5236 = vmatmul.mubr.bf16.gmra.mrb[0].mxu0 %v5097
      %v5237 = vpop.f32.mrb[0].mxu0
      %v5238 = vadd.f32 0.0, %v5237
      %v5239 = vpop.f32.mrb[0].mxu0
      %v5240 = vpop.f32.mrb[0].mxu0
      %v5241 = vadd.f32 0.0, %v5240
      %v5242 = vpop.f32.mrb[0].mxu0
      %5243 = vmatprep.mubr.bf16.mxu0 0
      %5244 = vmatmul.mubr.bf16.gmra.mrb[0].mxu0 %v5099
      %v5245 = vpop.f32.mrb[0].mxu0
      %v5246 = vadd.f32 0.0, %v5245
      %v5247 = vpop.f32.mrb[0].mxu0
      %v5248 = vpop.f32.mrb[0].mxu0
      %v5249 = vadd.f32 0.0, %v5248
      %v5250 = vpop.f32.mrb[0].mxu0
      %5251 = vmatprep.mubr.bf16.mxu0 0
      %5252 = vmatmul.mubr.bf16.gmra.mrb[0].mxu0 %v5101
      %v5253 = vpop.f32.mrb[0].mxu0
      %v5254 = vadd.f32 0.0, %v5253
      %v5255 = vpop.f32.mrb[0].mxu0
      %v5256 = vpop.f32.mrb[0].mxu0
      %v5257 = vadd.f32 0.0, %v5256
      %v5258 = vpop.f32.mrb[0].mxu0
      %5259 = vmatprep.mubr.bf16.mxu0 0
      %5260 = vmatmul.mubr.bf16.gmra.mrb[0].mxu0 %v5103
      %v5261 = vpop.f32.mrb[0].mxu0
      %v5262 = vadd.f32 0.0, %v5261
      %v5263 = vpop.f32.mrb[0].mxu0
      %v5264 = vpop.f32.mrb[0].mxu0
      %v5265 = vadd.f32 0.0, %v5264
      %v5266 = vpop.f32.mrb[0].mxu0
      %5267 = vmatprep.mubr.bf16.mxu0 0
      %5268 = vmatmul.mubr.bf16.gmra.mrb[0].mxu0 %v5105
      %v5269 = vpop.f32.mrb[0].mxu0
      %v5270 = vadd.f32 0.0, %v5269
      %v5271 = vpop.f32.mrb[0].mxu0
      %v5272 = vpop.f32.mrb[0].mxu0
      %v5273 = vadd.f32 0.0, %v5272
      %v5274 = vpop.f32.mrb[0].mxu0
      %5275 = vmatprep.mubr.bf16.mxu0 0
      %5276 = vmatmul.mubr.bf16.gmra.mrb[0].mxu0 %v5107
      %v5277 = vpop.f32.mrb[0].mxu0
      %v5278 = vadd.f32 0.0, %v5277
      %v5279 = vpop.f32.mrb[0].mxu0
      %v5280 = vpop.f32.mrb[0].mxu0
      %v5281 = vadd.f32 0.0, %v5280
      %v5282 = vpop.f32.mrb[0].mxu0
      %5283 = vmatprep.mubr.bf16.mxu0 0
      %5284 = vmatmul.mubr.bf16.gmra.mrb[0].mxu0 %v5109
      %v5285 = vpop.f32.mrb[0].mxu0
      %v5286 = vadd.f32 0.0, %v5285
      %v5287 = vpop.f32.mrb[0].mxu0
      %v5288 = vpop.f32.mrb[0].mxu0
      %v5289 = vadd.f32 0.0, %v5288
      %v5290 = vpop.f32.mrb[0].mxu0
      %5291 = vmatprep.mubr.bf16.mxu0 0
      %5292 = vmatmul.mubr.bf16.gmra.mrb[0].mxu0 %v5111
      %v5293 = vpop.f32.mrb[0].mxu0
      %v5294 = vadd.f32 0.0, %v5293
      %v5295 = vpop.f32.mrb[0].mxu0
      %v5296 = vpop.f32.mrb[0].mxu0
      %v5297 = vadd.f32 0.0, %v5296
      %v5298 = vpop.f32.mrb[0].mxu0
      %5299 = vmatprep.mubr.bf16.mxu0 0
      %5300 = vmatmul.mubr.bf16.gmra.mrb[0].mxu0 %v5113
      %v5301 = vpop.f32.mrb[0].mxu0
      %v5302 = vadd.f32 0.0, %v5301
      %v5303 = vpop.f32.mrb[0].mxu0
      %v5304 = vpop.f32.mrb[0].mxu0
      %v5305 = vadd.f32 0.0, %v5304
      %v5306 = vpop.f32.mrb[0].mxu0
      %5307 = vmatprep.mubr.bf16.mxu0 0
      %5308 = vmatmul.mubr.bf16.gmra.mrb[0].mxu0 %v5115
      %v5309 = vpop.f32.mrb[0].mxu0
      %v5310 = vadd.f32 0.0, %v5309
      %v5311 = vpop.f32.mrb[0].mxu0
      %v5312 = vpop.f32.mrb[0].mxu0
      %v5313 = vadd.f32 0.0, %v5312
      %v5314 = vpop.f32.mrb[0].mxu0
      %5315 = vmatprep.mubr.bf16.mxu0 0
      %5316 = vmatmul.mubr.bf16.gmra.mrb[0].mxu0 %v5117
      %v5317 = vpop.f32.mrb[0].mxu0
      %v5318 = vadd.f32 0.0, %v5317
      %v5319 = vpop.f32.mrb[0].mxu0
      %v5320 = vpop.f32.mrb[0].mxu0
      %v5321 = vadd.f32 0.0, %v5320
      %v5322 = vpop.f32.mrb[0].mxu0
      %5323 = vmatprep.mubr.bf16.mxu0 0
      %5324 = vmatmul.mubr.bf16.gmra.mrb[0].mxu0 %v5119
      %v5325 = vpop.f32.mrb[0].mxu0
      %v5326 = vadd.f32 0.0, %v5325
      %v5327 = vpop.f32.mrb[0].mxu0
      %v5328 = vpop.f32.mrb[0].mxu0
      %v5329 = vadd.f32 0.0, %v5328
      %v5330 = vpop.f32.mrb[0].mxu0
      %5331 = vmatprep.mubr.bf16.mxu0 0
      %5332 = vmatmul.mubr.bf16.gmra.mrb[0].mxu0 %v5121
      %v5333 = vpop.f32.mrb[0].mxu0
      %v5334 = vadd.f32 0.0, %v5333
      %v5335 = vpop.f32.mrb[0].mxu0
      %v5336 = vpop.f32.mrb[0].mxu0
      %v5337 = vadd.f32 0.0, %v5336
      %v5338 = vpop.f32.mrb[0].mxu0
      %5339 = vmatprep.mubr.bf16.mxu0 0
      %5340 = vmatmul.mubr.bf16.gmra.mrb[0].mxu0 %v5122
      %v5341 = vpop.f32.mrb[0].mxu0
      %v5342 = vadd.f32 0.0, %v5341
      %v5343 = vpop.f32.mrb[0].mxu0
      %v5344 = vpop.f32.mrb[0].mxu0
      %v5345 = vadd.f32 0.0, %v5344
      %v5346 = vpop.f32.mrb[0].mxu0
      %5347 = vdwg.mxu0
      %v5348 = vadd.f32 %v5010, %v5222
      %v5349 = vadd.f32 %v5011, %v5225
      %v5350 = vadd.f32 %v5012, %v5230
      %v5351 = vadd.f32 %v5013, %v5233
      %v5352 = vadd.f32 %v5014, %v5238
      %v5353 = vadd.f32 %v5015, %v5241
      %v5354 = vadd.f32 %v5016, %v5246
      %v5355 = vadd.f32 %v5017, %v5249
      %v5356 = vadd.f32 %v5018, %v5254
      %v5357 = vadd.f32 %v5019, %v5257
      %v5358 = vadd.f32 %v5020, %v5262
      %v5359 = vadd.f32 %v5021, %v5265
      %v5360 = vadd.f32 %v5022, %v5270
      %v5361 = vadd.f32 %v5023, %v5273
      %v5362 = vadd.f32 %v5024, %v5278
      %v5363 = vadd.f32 %v5025, %v5281
      %v5364 = vadd.f32 %v5026, %v5286
      %v5365 = vadd.f32 %v5027, %v5289
      %v5366 = vadd.f32 %v5028, %v5294
      %v5367 = vadd.f32 %v5029, %v5297
      %v5368 = vadd.f32 %v5030, %v5302
      %v5369 = vadd.f32 %v5031, %v5305
      %v5370 = vadd.f32 %v5032, %v5310
      %v5371 = vadd.f32 %v5033, %v5313
      %v5372 = vadd.f32 %v5034, %v5318
      %v5373 = vadd.f32 %v5035, %v5321
      %v5374 = vadd.f32 %v5036, %v5326
      %v5375 = vadd.f32 %v5037, %v5329
      %v5376 = vadd.f32 %v5038, %v5334
      %v5377 = vadd.f32 %v5039, %v5337
      %v5378 = vadd.f32 %v5040, %v5342
      %v5379 = vadd.f32 %v5041, %v5345
      %v5380 = vld [vmem:[%s6] sm:$0x1]
      %v5382 = vlaneseq
      %v5383 = vshrl.u32 %v5382, 7
      %v5384 = vsub.s32 0, %v5383
      %v5385 = vrot.slane %v5380, %v5384
      %v5387 = vadd.f32 %v5348, %v5385
      %v5388 = vadd.f32 %v5349, %v5385
      %v5389 = vadd.f32 %v5350, %v5385
      %v5390 = vadd.f32 %v5351, %v5385
      %v5391 = vadd.f32 %v5352, %v5385
      %v5392 = vadd.f32 %v5353, %v5385
      %v5393 = vadd.f32 %v5354, %v5385
      %v5394 = vadd.f32 %v5355, %v5385
      %v5395 = vadd.f32 %v5356, %v5385
      %v5396 = vadd.f32 %v5357, %v5385
      %v5397 = vadd.f32 %v5358, %v5385
      %v5398 = vadd.f32 %v5359, %v5385
      %v5399 = vadd.f32 %v5360, %v5385
      %v5400 = vadd.f32 %v5361, %v5385
      %v5401 = vadd.f32 %v5362, %v5385
      %v5402 = vadd.f32 %v5363, %v5385
      %v5403 = vadd.f32 %v5364, %v5385
      %v5404 = vadd.f32 %v5365, %v5385
      %v5405 = vadd.f32 %v5366, %v5385
      %v5406 = vadd.f32 %v5367, %v5385
      %v5407 = vadd.f32 %v5368, %v5385
      %v5408 = vadd.f32 %v5369, %v5385
      %v5409 = vadd.f32 %v5370, %v5385
      %v5410 = vadd.f32 %v5371, %v5385
      %v5411 = vadd.f32 %v5372, %v5385
      %v5412 = vadd.f32 %v5373, %v5385
      %v5413 = vadd.f32 %v5374, %v5385
      %v5414 = vadd.f32 %v5375, %v5385
      %v5415 = vadd.f32 %v5376, %v5385
      %v5416 = vadd.f32 %v5377, %v5385
      %v5417 = vadd.f32 %v5378, %v5385
      %v5418 = vadd.f32 %v5379, %v5385
      %v5419 = vsub.f32 0.0, %v5387
      %v5420 = vsub.f32 0.0, %v5388
      %v5421 = vsub.f32 0.0, %v5389
      %v5422 = vsub.f32 0.0, %v5390
      %v5423 = vsub.f32 0.0, %v5391
      %v5424 = vsub.f32 0.0, %v5392
      %v5425 = vsub.f32 0.0, %v5393
      %v5426 = vsub.f32 0.0, %v5394
      %v5427 = vsub.f32 0.0, %v5395
      %v5428 = vsub.f32 0.0, %v5396
      %v5429 = vsub.f32 0.0, %v5397
      %v5430 = vsub.f32 0.0, %v5398
      %v5431 = vsub.f32 0.0, %v5399
      %v5432 = vsub.f32 0.0, %v5400
      %v5433 = vsub.f32 0.0, %v5401
      %v5434 = vsub.f32 0.0, %v5402
      %v5435 = vsub.f32 0.0, %v5403
      %v5436 = vsub.f32 0.0, %v5404
      %v5437 = vsub.f32 0.0, %v5405
      %v5438 = vsub.f32 0.0, %v5406
      %v5439 = vsub.f32 0.0, %v5407
      %v5440 = vsub.f32 0.0, %v5408
      %v5441 = vsub.f32 0.0, %v5409
      %v5442 = vsub.f32 0.0, %v5410
      %v5443 = vsub.f32 0.0, %v5411
      %v5444 = vsub.f32 0.0, %v5412
      %v5445 = vsub.f32 0.0, %v5413
      %v5446 = vsub.f32 0.0, %v5414
      %v5447 = vsub.f32 0.0, %v5415
      %v5448 = vsub.f32 0.0, %v5416
      %v5449 = vsub.f32 0.0, %v5417
      %v5450 = vsub.f32 0.0, %v5418
      %v5451 = vmul.f32 %v5419, 1.442695
      %v5452 = vpow.pop %v5451
      %v5453 = vmul.f32 %v5420, 1.442695
      %v5454 = vpow.pop %v5453
      %v5455 = vmul.f32 %v5421, 1.442695
      %v5456 = vpow.pop %v5455
      %v5457 = vmul.f32 %v5422, 1.442695
      %v5458 = vpow.pop %v5457
      %v5459 = vmul.f32 %v5423, 1.442695
      %v5460 = vpow.pop %v5459
      %v5461 = vmul.f32 %v5424, 1.442695
      %v5462 = vpow.pop %v5461
      %v5463 = vmul.f32 %v5425, 1.442695
      %v5464 = vpow.pop %v5463
      %v5465 = vmul.f32 %v5426, 1.442695
      %v5466 = vpow.pop %v5465
      %v5467 = vmul.f32 %v5427, 1.442695
      %v5468 = vpow.pop %v5467
      %v5469 = vmul.f32 %v5428, 1.442695
      %v5470 = vpow.pop %v5469
      %v5471 = vmul.f32 %v5429, 1.442695
      %v5472 = vpow.pop %v5471
      %v5473 = vmul.f32 %v5430, 1.442695
      %v5474 = vpow.pop %v5473
      %v5475 = vmul.f32 %v5431, 1.442695
      %v5476 = vpow.pop %v5475
      %v5477 = vmul.f32 %v5432, 1.442695
      %v5478 = vpow.pop %v5477
      %v5479 = vmul.f32 %v5433, 1.442695
      %v5480 = vpow.pop %v5479
      %v5481 = vmul.f32 %v5434, 1.442695
      %v5482 = vpow.pop %v5481
      %v5483 = vmul.f32 %v5435, 1.442695
      %v5484 = vpow.pop %v5483
      %v5485 = vmul.f32 %v5436, 1.442695
      %v5486 = vpow.pop %v5485
      %v5487 = vmul.f32 %v5437, 1.442695
      %v5488 = vpow.pop %v5487
      %v5489 = vmul.f32 %v5438, 1.442695
      %v5490 = vpow.pop %v5489
      %v5491 = vmul.f32 %v5439, 1.442695
      %v5492 = vpow.pop %v5491
      %v5493 = vmul.f32 %v5440, 1.442695
      %v5494 = vpow.pop %v5493
      %v5495 = vmul.f32 %v5441, 1.442695
      %v5496 = vpow.pop %v5495
      %v5497 = vmul.f32 %v5442, 1.442695
      %v5498 = vpow.pop %v5497
      %v5499 = vmul.f32 %v5443, 1.442695
      %v5500 = vpow.pop %v5499
      %v5501 = vmul.f32 %v5444, 1.442695
      %v5502 = vpow.pop %v5501
      %v5503 = vmul.f32 %v5445, 1.442695
      %v5504 = vpow.pop %v5503
      %v5505 = vmul.f32 %v5446, 1.442695
      %v5506 = vpow.pop %v5505
      %v5507 = vmul.f32 %v5447, 1.442695
      %v5508 = vpow.pop %v5507
      %v5509 = vmul.f32 %v5448, 1.442695
      %v5510 = vpow.pop %v5509
      %v5511 = vmul.f32 %v5449, 1.442695
      %v5512 = vpow.pop %v5511
      %v5513 = vmul.f32 %v5450, 1.442695
      %v5514 = vpow.pop %v5513
      %v5515 = vadd.f32 %v5452, 1.0
      %v5516 = vadd.f32 %v5454, 1.0
      %v5517 = vadd.f32 %v5456, 1.0
      %v5518 = vadd.f32 %v5458, 1.0
      %v5519 = vadd.f32 %v5460, 1.0
      %v5520 = vadd.f32 %v5462, 1.0
      %v5521 = vadd.f32 %v5464, 1.0
      %v5522 = vadd.f32 %v5466, 1.0
      %v5523 = vadd.f32 %v5468, 1.0
      %v5524 = vadd.f32 %v5470, 1.0
      %v5525 = vadd.f32 %v5472, 1.0
      %v5526 = vadd.f32 %v5474, 1.0
      %v5527 = vadd.f32 %v5476, 1.0
      %v5528 = vadd.f32 %v5478, 1.0
      %v5529 = vadd.f32 %v5480, 1.0
      %v5530 = vadd.f32 %v5482, 1.0
      %v5531 = vadd.f32 %v5484, 1.0
      %v5532 = vadd.f32 %v5486, 1.0
      %v5533 = vadd.f32 %v5488, 1.0
      %v5534 = vadd.f32 %v5490, 1.0
      %v5535 = vadd.f32 %v5492, 1.0
      %v5536 = vadd.f32 %v5494, 1.0
      %v5537 = vadd.f32 %v5496, 1.0
      %v5538 = vadd.f32 %v5498, 1.0
      %v5539 = vadd.f32 %v5500, 1.0
      %v5540 = vadd.f32 %v5502, 1.0
      %v5541 = vadd.f32 %v5504, 1.0
      %v5542 = vadd.f32 %v5506, 1.0
      %v5543 = vadd.f32 %v5508, 1.0
      %v5544 = vadd.f32 %v5510, 1.0
      %v5545 = vadd.f32 %v5512, 1.0
      %v5546 = vadd.f32 %v5514, 1.0
      %v5547 = vrcp.pop %v5515
      %v5548 = vrcp.pop %v5516
      %v5549 = vrcp.pop %v5517
      %v5550 = vrcp.pop %v5518
      %v5551 = vrcp.pop %v5519
      %v5552 = vrcp.pop %v5520
      %v5553 = vrcp.pop %v5521
      %v5554 = vrcp.pop %v5522
      %v5555 = vrcp.pop %v5523
      %v5556 = vrcp.pop %v5524
      %v5557 = vrcp.pop %v5525
      %v5558 = vrcp.pop %v5526
      %v5559 = vrcp.pop %v5527
      %v5560 = vrcp.pop %v5528
      %v5561 = vrcp.pop %v5529
      %v5562 = vrcp.pop %v5530
      %v5563 = vrcp.pop %v5531
      %v5564 = vrcp.pop %v5532
      %v5565 = vrcp.pop %v5533
      %v5566 = vrcp.pop %v5534
      %v5567 = vrcp.pop %v5535
      %v5568 = vrcp.pop %v5536
      %v5569 = vrcp.pop %v5537
      %v5570 = vrcp.pop %v5538
      %v5571 = vrcp.pop %v5539
      %v5572 = vrcp.pop %v5540
      %v5573 = vrcp.pop %v5541
      %v5574 = vrcp.pop %v5542
      %v5575 = vrcp.pop %v5543
      %v5576 = vrcp.pop %v5544
      %v5577 = vrcp.pop %v5545
      %v5578 = vrcp.pop %v5546
      %v5579 = vmul.f32 %v5387, %v5547
      %v5580 = vmul.f32 %v5388, %v5548
      %v5581 = vmul.f32 %v5389, %v5549
      %v5582 = vmul.f32 %v5390, %v5550
      %v5583 = vmul.f32 %v5391, %v5551
      %v5584 = vmul.f32 %v5392, %v5552
      %v5585 = vmul.f32 %v5393, %v5553
      %v5586 = vmul.f32 %v5394, %v5554
      %v5587 = vmul.f32 %v5395, %v5555
      %v5588 = vmul.f32 %v5396, %v5556
      %v5589 = vmul.f32 %v5397, %v5557
      %v5590 = vmul.f32 %v5398, %v5558
      %v5591 = vmul.f32 %v5399, %v5559
      %v5592 = vmul.f32 %v5400, %v5560
      %v5593 = vmul.f32 %v5401, %v5561
      %v5594 = vmul.f32 %v5402, %v5562
      %v5595 = vmul.f32 %v5403, %v5563
      %v5596 = vmul.f32 %v5404, %v5564
      %v5597 = vmul.f32 %v5405, %v5565
      %v5598 = vmul.f32 %v5406, %v5566
      %v5599 = vmul.f32 %v5407, %v5567
      %v5600 = vmul.f32 %v5408, %v5568
      %v5601 = vmul.f32 %v5409, %v5569
      %v5602 = vmul.f32 %v5410, %v5570
      %v5603 = vmul.f32 %v5411, %v5571
      %v5604 = vmul.f32 %v5412, %v5572
      %v5605 = vmul.f32 %v5413, %v5573
      %v5606 = vmul.f32 %v5414, %v5574
      %v5607 = vmul.f32 %v5415, %v5575
      %v5608 = vmul.f32 %v5416, %v5576
      %v5609 = vmul.f32 %v5417, %v5577
      %v5610 = vmul.f32 %v5418, %v5578
      %v5611 = vunpack.c.l.bf16 %v1149
      %v5612 = vunpack.c.h.bf16 %v1149
      %v5613 = vunpack.c.l.bf16 %v1150
      %v5614 = vunpack.c.h.bf16 %v1150
      %v5615 = vunpack.c.l.bf16 %v1151
      %v5616 = vunpack.c.h.bf16 %v1151
      %v5617 = vunpack.c.l.bf16 %v1152
      %v5618 = vunpack.c.h.bf16 %v1152
      %v5619 = vunpack.c.l.bf16 %v1153
      %v5620 = vunpack.c.h.bf16 %v1153
      %v5621 = vunpack.c.l.bf16 %v1154
      %v5622 = vunpack.c.h.bf16 %v1154
      %v5623 = vunpack.c.l.bf16 %v1155
      %v5624 = vunpack.c.h.bf16 %v1155
      %v5625 = vunpack.c.l.bf16 %v1156
      %v5626 = vunpack.c.h.bf16 %v1156
      %v5627 = vunpack.c.l.bf16 %v1157
      %v5628 = vunpack.c.h.bf16 %v1157
      %v5629 = vunpack.c.l.bf16 %v1158
      %v5630 = vunpack.c.h.bf16 %v1158
      %v5631 = vunpack.c.l.bf16 %v1159
      %v5632 = vunpack.c.h.bf16 %v1159
      %v5633 = vunpack.c.l.bf16 %v1160
      %v5634 = vunpack.c.h.bf16 %v1160
      %v5635 = vunpack.c.l.bf16 %v1161
      %v5636 = vunpack.c.h.bf16 %v1161
      %v5637 = vunpack.c.l.bf16 %v1162
      %v5638 = vunpack.c.h.bf16 %v1162
      %v5639 = vunpack.c.l.bf16 %v1163
      %v5640 = vunpack.c.h.bf16 %v1163
      %v5641 = vunpack.c.l.bf16 %v1164
      %v5642 = vunpack.c.h.bf16 %v1164
      %v5643 = vadd.f32 %v5611, %v5579
      %v5644 = vadd.f32 %v5612, %v5580
      %v5645 = vadd.f32 %v5613, %v5581
      %v5646 = vadd.f32 %v5614, %v5582
      %v5647 = vadd.f32 %v5615, %v5583
      %v5648 = vadd.f32 %v5616, %v5584
      %v5649 = vadd.f32 %v5617, %v5585
      %v5650 = vadd.f32 %v5618, %v5586
      %v5651 = vadd.f32 %v5619, %v5587
      %v5652 = vadd.f32 %v5620, %v5588
      %v5653 = vadd.f32 %v5621, %v5589
      %v5654 = vadd.f32 %v5622, %v5590
      %v5655 = vadd.f32 %v5623, %v5591
      %v5656 = vadd.f32 %v5624, %v5592
      %v5657 = vadd.f32 %v5625, %v5593
      %v5658 = vadd.f32 %v5626, %v5594
      %v5659 = vadd.f32 %v5627, %v5595
      %v5660 = vadd.f32 %v5628, %v5596
      %v5661 = vadd.f32 %v5629, %v5597
      %v5662 = vadd.f32 %v5630, %v5598
      %v5663 = vadd.f32 %v5631, %v5599
      %v5664 = vadd.f32 %v5632, %v5600
      %v5665 = vadd.f32 %v5633, %v5601
      %v5666 = vadd.f32 %v5634, %v5602
      %v5667 = vadd.f32 %v5635, %v5603
      %v5668 = vadd.f32 %v5636, %v5604
      %v5669 = vadd.f32 %v5637, %v5605
      %v5670 = vadd.f32 %v5638, %v5606
      %v5671 = vadd.f32 %v5639, %v5607
      %v5672 = vadd.f32 %v5640, %v5608
      %v5673 = vadd.f32 %v5641, %v5609
      %v5674 = vadd.f32 %v5642, %v5610
      %v5675 = vpack.c.bf16 %v5644, %v5643
      %v5676 = vpack.c.bf16 %v5646, %v5645
      %v5677 = vpack.c.bf16 %v5648, %v5647
      %v5678 = vpack.c.bf16 %v5650, %v5649
      %v5679 = vpack.c.bf16 %v5652, %v5651
      %v5680 = vpack.c.bf16 %v5654, %v5653
      %v5681 = vpack.c.bf16 %v5656, %v5655
      %v5682 = vpack.c.bf16 %v5658, %v5657
      %v5683 = vpack.c.bf16 %v5660, %v5659
      %v5684 = vpack.c.bf16 %v5662, %v5661
      %v5685 = vpack.c.bf16 %v5664, %v5663
      %v5686 = vpack.c.bf16 %v5666, %v5665
      %v5687 = vpack.c.bf16 %v5668, %v5667
      %v5688 = vpack.c.bf16 %v5670, %v5669
      %v5689 = vpack.c.bf16 %v5672, %v5671
      %v5690 = vpack.c.bf16 %v5674, %v5673
      %v5691 = vld [vmem:[%s7] sm:$0xf]
      %v5692 = vld [vmem:[%s7 + $0x4] sm:$0xf]
      %v5693 = vld [vmem:[%s7 + $0x8] sm:$0xf]
      %v5694 = vld [vmem:[%s7 + $0xc] sm:$0xf]
      %v5695 = vld [vmem:[%s7 + $0x10] sm:$0xf]
      %v5696 = vld [vmem:[%s7 + $0x14] sm:$0xf]
      %v5697 = vld [vmem:[%s7 + $0x18] sm:$0xf]
      %v5698 = vld [vmem:[%s7 + $0x1c] sm:$0xf]
      %v5699 = vld [vmem:[%s7 + $0x20] sm:$0xf]
      %v5700 = vld [vmem:[%s7 + $0x24] sm:$0xf]
      %v5701 = vld [vmem:[%s7 + $0x28] sm:$0xf]
      %v5702 = vld [vmem:[%s7 + $0x2c] sm:$0xf]
      %v5703 = vld [vmem:[%s7 + $0x30] sm:$0xf]
      %v5704 = vld [vmem:[%s7 + $0x34] sm:$0xf]
      %v5705 = vld [vmem:[%s7 + $0x38] sm:$0xf]
      %v5706 = vld [vmem:[%s7 + $0x3c] sm:$0xf]
      %v5707 = vld [vmem:[%s7 + $0x40] sm:$0xf]
      %v5708 = vld [vmem:[%s7 + $0x44] sm:$0xf]
      %v5709 = vld [vmem:[%s7 + $0x48] sm:$0xf]
      %v5710 = vld [vmem:[%s7 + $0x4c] sm:$0xf]
      %v5711 = vld [vmem:[%s7 + $0x50] sm:$0xf]
      %v5712 = vld [vmem:[%s7 + $0x54] sm:$0xf]
      %v5713 = vld [vmem:[%s7 + $0x58] sm:$0xf]
      %v5714 = vld [vmem:[%s7 + $0x5c] sm:$0xf]
      %v5715 = vld [vmem:[%s7 + $0x60] sm:$0xf]
      %v5716 = vld [vmem:[%s7 + $0x64] sm:$0xf]
      %v5717 = vld [vmem:[%s7 + $0x68] sm:$0xf]
      %v5718 = vld [vmem:[%s7 + $0x6c] sm:$0xf]
      %v5719 = vld [vmem:[%s7 + $0x70] sm:$0xf]
      %v5720 = vld [vmem:[%s7 + $0x74] sm:$0xf]
      %v5721 = vld [vmem:[%s7 + $0x78] sm:$0xf]
      %v5722 = vld [vmem:[%s7 + $0x7c] sm:$0xf]
      %v5723 = vld [vmem:[%s8] sm:$0x1]
      %v5725 = vlaneseq
      %v5726 = vshrl.u32 %v5725, 7
      %v5727 = vsub.s32 0, %v5726
      %v5728 = vrot.slane %v5723, %v5727
      %v5762 = vunpack.c.l.b16 %v5691
      %v5763 = vunpack.c.l.b16 %v5692
      %v5764 = vunpack.c.l.b16 %v5693
      %v5765 = vunpack.c.l.b16 %v5694
      %v5766 = vunpack.c.l.b16 %v5695
      %v5767 = vunpack.c.l.b16 %v5696
      %v5768 = vunpack.c.l.b16 %v5697
      %v5769 = vunpack.c.l.b16 %v5698
      %v5770 = vunpack.c.l.b16 %v5699
      %v5771 = vunpack.c.l.b16 %v5700
      %v5772 = vunpack.c.l.b16 %v5701
      %v5773 = vunpack.c.l.b16 %v5702
      %v5774 = vunpack.c.l.b16 %v5703
      %v5775 = vunpack.c.l.b16 %v5704
      %v5776 = vunpack.c.l.b16 %v5705
      %v5777 = vunpack.c.l.b16 %v5706
      %v5778 = vunpack.c.l.b16 %v5707
      %v5779 = vunpack.c.l.b16 %v5708
      %v5780 = vunpack.c.l.b16 %v5709
      %v5781 = vunpack.c.l.b16 %v5710
      %v5782 = vunpack.c.l.b16 %v5711
      %v5783 = vunpack.c.l.b16 %v5712
      %v5784 = vunpack.c.l.b16 %v5713
      %v5785 = vunpack.c.l.b16 %v5714
      %v5786 = vunpack.c.l.b16 %v5715
      %v5787 = vunpack.c.l.b16 %v5716
      %v5788 = vunpack.c.l.b16 %v5717
      %v5789 = vunpack.c.l.b16 %v5718
      %v5790 = vunpack.c.l.b16 %v5719
      %v5791 = vunpack.c.l.b16 %v5720
      %v5792 = vunpack.c.l.b16 %v5721
      %v5793 = vunpack.c.l.b16 %v5722
      %v5794 = vpack.c.b16 %v5763, %v5762
      %v5795 = vpack.c.b16 %v5765, %v5764
      %v5796 = vpack.c.b16 %v5767, %v5766
      %v5797 = vpack.c.b16 %v5769, %v5768
      %v5798 = vpack.c.b16 %v5771, %v5770
      %v5799 = vpack.c.b16 %v5773, %v5772
      %v5800 = vpack.c.b16 %v5775, %v5774
      %v5801 = vpack.c.b16 %v5777, %v5776
      %v5802 = vpack.c.b16 %v5779, %v5778
      %v5803 = vpack.c.b16 %v5781, %v5780
      %v5804 = vpack.c.b16 %v5783, %v5782
      %v5805 = vpack.c.b16 %v5785, %v5784
      %v5806 = vpack.c.b16 %v5787, %v5786
      %v5807 = vpack.c.b16 %v5789, %v5788
      %v5808 = vpack.c.b16 %v5791, %v5790
      %v5809 = vpack.c.b16 %v5793, %v5792
      %5826 = vmatprep.subr.bf16.mxu0 0
      %5827 = vmatpush1.bf16.msra.mxu0 %v5794
      %5828 = vmatprep.subr.bf16.mxu0 0
      %5829 = vmatpush1.bf16.msra.mxu0 %v5795
      %5830 = vmatprep.subr.bf16.mxu0 0
      %5831 = vmatpush1.bf16.msra.mxu0 %v5796
      %5832 = vmatprep.subr.bf16.mxu0 0
      %5833 = vmatpush1.bf16.msra.mxu0 %v5797
      %5834 = vmatprep.subr.bf16.mxu0 0
      %5835 = vmatpush1.bf16.msra.mxu0 %v5798
      %5836 = vmatprep.subr.bf16.mxu0 0
      %5837 = vmatpush1.bf16.msra.mxu0 %v5799
      %5838 = vmatprep.subr.bf16.mxu0 0
      %5839 = vmatpush1.bf16.msra.mxu0 %v5800
      %5840 = vmatprep.subr.bf16.mxu0 0
      %5841 = vmatpush1.bf16.msra.mxu0 %v5801
      %5842 = vmatprep.subr.bf16.mxu0 0
      %5843 = vmatpush1.bf16.msra.mxu0 %v5802
      %5844 = vmatprep.subr.bf16.mxu0 0
      %5845 = vmatpush1.bf16.msra.mxu0 %v5803
      %5846 = vmatprep.subr.bf16.mxu0 0
      %5847 = vmatpush1.bf16.msra.mxu0 %v5804
      %5848 = vmatprep.subr.bf16.mxu0 0
      %5849 = vmatpush1.bf16.msra.mxu0 %v5805
      %5850 = vmatprep.subr.bf16.mxu0 0
      %5851 = vmatpush1.bf16.msra.mxu0 %v5806
      %5852 = vmatprep.subr.bf16.mxu0 0
      %5853 = vmatpush1.bf16.msra.mxu0 %v5807
      %5854 = vmatprep.subr.bf16.mxu0 0
      %5855 = vmatpush1.bf16.msra.mxu0 %v5808
      %5856 = vmatprep.subr.bf16.mxu0 0
      %5857 = vmatpush1.bf16.msra.mxu0 %v5809
      %5858 = vmatprep.mubr.bf16.mxu0 %v1165
      %5859 = vmatmul.mubr.bf16.gmra.mrb[0].mxu0 %v5675
      %v5860 = vpop.f32.mrb[0].mxu0
      %v5861 = vadd.f32 %v5728, %v5860
      %v5862 = vpop.f32.mrb[0].mxu0
      %v5863 = vpop.f32.mrb[0].mxu0
      %v5864 = vadd.f32 %v5728, %v5863
      %v5865 = vpop.f32.mrb[0].mxu0
      %5866 = vmatprep.mubr.bf16.mxu0 %v1166
      %5867 = vmatmul.mubr.bf16.gmra.mrb[0].mxu0 %v5676
      %v5868 = vpop.f32.mrb[0].mxu0
      %v5869 = vadd.f32 %v5728, %v5868
      %v5870 = vpop.f32.mrb[0].mxu0
      %v5871 = vpop.f32.mrb[0].mxu0
      %v5872 = vadd.f32 %v5728, %v5871
      %v5873 = vpop.f32.mrb[0].mxu0
      %5874 = vmatprep.mubr.bf16.mxu0 %v1167
      %5875 = vmatmul.mubr.bf16.gmra.mrb[0].mxu0 %v5677
      %v5876 = vpop.f32.mrb[0].mxu0
      %v5877 = vadd.f32 %v5728, %v5876
      %v5878 = vpop.f32.mrb[0].mxu0
      %v5879 = vpop.f32.mrb[0].mxu0
      %v5880 = vadd.f32 %v5728, %v5879
      %v5881 = vpop.f32.mrb[0].mxu0
      %5882 = vmatprep.mubr.bf16.mxu0 %v1168
      %5883 = vmatmul.mubr.bf16.gmra.mrb[0].mxu0 %v5678
      %v5884 = vpop.f32.mrb[0].mxu0
      %v5885 = vadd.f32 %v5728, %v5884
      %v5886 = vpop.f32.mrb[0].mxu0
      %v5887 = vpop.f32.mrb[0].mxu0
      %v5888 = vadd.f32 %v5728, %v5887
      %v5889 = vpop.f32.mrb[0].mxu0
      %5890 = vmatprep.mubr.bf16.mxu0 %v1169
      %5891 = vmatmul.mubr.bf16.gmra.mrb[0].mxu0 %v5679
      %v5892 = vpop.f32.mrb[0].mxu0
      %v5893 = vadd.f32 %v5728, %v5892
      %v5894 = vpop.f32.mrb[0].mxu0
      %v5895 = vpop.f32.mrb[0].mxu0
      %v5896 = vadd.f32 %v5728, %v5895
      %v5897 = vpop.f32.mrb[0].mxu0
      %5898 = vmatprep.mubr.bf16.mxu0 %v1170
      %5899 = vmatmul.mubr.bf16.gmra.mrb[0].mxu0 %v5680
      %v5900 = vpop.f32.mrb[0].mxu0
      %v5901 = vadd.f32 %v5728, %v5900
      %v5902 = vpop.f32.mrb[0].mxu0
      %v5903 = vpop.f32.mrb[0].mxu0
      %v5904 = vadd.f32 %v5728, %v5903
      %v5905 = vpop.f32.mrb[0].mxu0
      %5906 = vmatprep.mubr.bf16.mxu0 %v1171
      %5907 = vmatmul.mubr.bf16.gmra.mrb[0].mxu0 %v5681
      %v5908 = vpop.f32.mrb[0].mxu0
      %v5909 = vadd.f32 %v5728, %v5908
      %v5910 = vpop.f32.mrb[0].mxu0
      %v5911 = vpop.f32.mrb[0].mxu0
      %v5912 = vadd.f32 %v5728, %v5911
      %v5913 = vpop.f32.mrb[0].mxu0
      %5914 = vmatprep.mubr.bf16.mxu0 %v1172
      %5915 = vmatmul.mubr.bf16.gmra.mrb[0].mxu0 %v5682
      %v5916 = vpop.f32.mrb[0].mxu0
      %v5917 = vadd.f32 %v5728, %v5916
      %v5918 = vpop.f32.mrb[0].mxu0
      %v5919 = vpop.f32.mrb[0].mxu0
      %v5920 = vadd.f32 %v5728, %v5919
      %v5921 = vpop.f32.mrb[0].mxu0
      %5922 = vmatprep.mubr.bf16.mxu0 %v1173
      %5923 = vmatmul.mubr.bf16.gmra.mrb[0].mxu0 %v5683
      %v5924 = vpop.f32.mrb[0].mxu0
      %v5925 = vadd.f32 %v5728, %v5924
      %v5926 = vpop.f32.mrb[0].mxu0
      %v5927 = vpop.f32.mrb[0].mxu0
      %v5928 = vadd.f32 %v5728, %v5927
      %v5929 = vpop.f32.mrb[0].mxu0
      %5930 = vmatprep.mubr.bf16.mxu0 %v1174
      %5931 = vmatmul.mubr.bf16.gmra.mrb[0].mxu0 %v5684
      %v5932 = vpop.f32.mrb[0].mxu0
      %v5933 = vadd.f32 %v5728, %v5932
      %v5934 = vpop.f32.mrb[0].mxu0
      %v5935 = vpop.f32.mrb[0].mxu0
      %v5936 = vadd.f32 %v5728, %v5935
      %v5937 = vpop.f32.mrb[0].mxu0
      %5938 = vmatprep.mubr.bf16.mxu0 %v1175
      %5939 = vmatmul.mubr.bf16.gmra.mrb[0].mxu0 %v5685
      %v5940 = vpop.f32.mrb[0].mxu0
      %v5941 = vadd.f32 %v5728, %v5940
      %v5942 = vpop.f32.mrb[0].mxu0
      %v5943 = vpop.f32.mrb[0].mxu0
      %v5944 = vadd.f32 %v5728, %v5943
      %v5945 = vpop.f32.mrb[0].mxu0
      %5946 = vmatprep.mubr.bf16.mxu0 %v1176
      %5947 = vmatmul.mubr.bf16.gmra.mrb[0].mxu0 %v5686
      %v5948 = vpop.f32.mrb[0].mxu0
      %v5949 = vadd.f32 %v5728, %v5948
      %v5950 = vpop.f32.mrb[0].mxu0
      %v5951 = vpop.f32.mrb[0].mxu0
      %v5952 = vadd.f32 %v5728, %v5951
      %v5953 = vpop.f32.mrb[0].mxu0
      %5954 = vmatprep.mubr.bf16.mxu0 %v1177
      %5955 = vmatmul.mubr.bf16.gmra.mrb[0].mxu0 %v5687
      %v5956 = vpop.f32.mrb[0].mxu0
      %v5957 = vadd.f32 %v5728, %v5956
      %v5958 = vpop.f32.mrb[0].mxu0
      %v5959 = vpop.f32.mrb[0].mxu0
      %v5960 = vadd.f32 %v5728, %v5959
      %v5961 = vpop.f32.mrb[0].mxu0
      %5962 = vmatprep.mubr.bf16.mxu0 %v1178
      %5963 = vmatmul.mubr.bf16.gmra.mrb[0].mxu0 %v5688
      %v5964 = vpop.f32.mrb[0].mxu0
      %v5965 = vadd.f32 %v5728, %v5964
      %v5966 = vpop.f32.mrb[0].mxu0
      %v5967 = vpop.f32.mrb[0].mxu0
      %v5968 = vadd.f32 %v5728, %v5967
      %v5969 = vpop.f32.mrb[0].mxu0
      %5970 = vmatprep.mubr.bf16.mxu0 %v1179
      %5971 = vmatmul.mubr.bf16.gmra.mrb[0].mxu0 %v5689
      %v5972 = vpop.f32.mrb[0].mxu0
      %v5973 = vadd.f32 %v5728, %v5972
      %v5974 = vpop.f32.mrb[0].mxu0
      %v5975 = vpop.f32.mrb[0].mxu0
      %v5976 = vadd.f32 %v5728, %v5975
      %v5977 = vpop.f32.mrb[0].mxu0
      %5978 = vmatprep.mubr.bf16.mxu0 %v1180
      %5979 = vmatmul.mubr.bf16.gmra.mrb[0].mxu0 %v5690
      %v5980 = vpop.f32.mrb[0].mxu0
      %v5981 = vadd.f32 %v5728, %v5980
      %v5982 = vpop.f32.mrb[0].mxu0
      %v5983 = vpop.f32.mrb[0].mxu0
      %v5984 = vadd.f32 %v5728, %v5983
      %v5985 = vpop.f32.mrb[0].mxu0
      %5986 = vdwg.mxu0
      %v5987 = vsub.f32 0.0, %v5861
      %v5988 = vsub.f32 0.0, %v5864
      %v5989 = vsub.f32 0.0, %v5869
      %v5990 = vsub.f32 0.0, %v5872
      %v5991 = vsub.f32 0.0, %v5877
      %v5992 = vsub.f32 0.0, %v5880
      %v5993 = vsub.f32 0.0, %v5885
      %v5994 = vsub.f32 0.0, %v5888
      %v5995 = vsub.f32 0.0, %v5893
      %v5996 = vsub.f32 0.0, %v5896
      %v5997 = vsub.f32 0.0, %v5901
      %v5998 = vsub.f32 0.0, %v5904
      %v5999 = vsub.f32 0.0, %v5909
      %v6000 = vsub.f32 0.0, %v5912
      %v6001 = vsub.f32 0.0, %v5917
      %v6002 = vsub.f32 0.0, %v5920
      %v6003 = vsub.f32 0.0, %v5925
      %v6004 = vsub.f32 0.0, %v5928
      %v6005 = vsub.f32 0.0, %v5933
      %v6006 = vsub.f32 0.0, %v5936
      %v6007 = vsub.f32 0.0, %v5941
      %v6008 = vsub.f32 0.0, %v5944
      %v6009 = vsub.f32 0.0, %v5949
      %v6010 = vsub.f32 0.0, %v5952
      %v6011 = vsub.f32 0.0, %v5957
      %v6012 = vsub.f32 0.0, %v5960
      %v6013 = vsub.f32 0.0, %v5965
      %v6014 = vsub.f32 0.0, %v5968
      %v6015 = vsub.f32 0.0, %v5973
      %v6016 = vsub.f32 0.0, %v5976
      %v6017 = vsub.f32 0.0, %v5981
      %v6018 = vsub.f32 0.0, %v5984
      %v6019 = vmul.f32 %v5987, 1.442695
      %v6020 = vpow.pop %v6019
      %v6021 = vmul.f32 %v5988, 1.442695
      %v6022 = vpow.pop %v6021
      %v6023 = vmul.f32 %v5989, 1.442695
      %v6024 = vpow.pop %v6023
      %v6025 = vmul.f32 %v5990, 1.442695
      %v6026 = vpow.pop %v6025
      %v6027 = vmul.f32 %v5991, 1.442695
      %v6028 = vpow.pop %v6027
      %v6029 = vmul.f32 %v5992, 1.442695
      %v6030 = vpow.pop %v6029
      %v6031 = vmul.f32 %v5993, 1.442695
      %v6032 = vpow.pop %v6031
      %v6033 = vmul.f32 %v5994, 1.442695
      %v6034 = vpow.pop %v6033
      %v6035 = vmul.f32 %v5995, 1.442695
      %v6036 = vpow.pop %v6035
      %v6037 = vmul.f32 %v5996, 1.442695
      %v6038 = vpow.pop %v6037
      %v6039 = vmul.f32 %v5997, 1.442695
      %v6040 = vpow.pop %v6039
      %v6041 = vmul.f32 %v5998, 1.442695
      %v6042 = vpow.pop %v6041
      %v6043 = vmul.f32 %v5999, 1.442695
      %v6044 = vpow.pop %v6043
      %v6045 = vmul.f32 %v6000, 1.442695
      %v6046 = vpow.pop %v6045
      %v6047 = vmul.f32 %v6001, 1.442695
      %v6048 = vpow.pop %v6047
      %v6049 = vmul.f32 %v6002, 1.442695
      %v6050 = vpow.pop %v6049
      %v6051 = vmul.f32 %v6003, 1.442695
      %v6052 = vpow.pop %v6051
      %v6053 = vmul.f32 %v6004, 1.442695
      %v6054 = vpow.pop %v6053
      %v6055 = vmul.f32 %v6005, 1.442695
      %v6056 = vpow.pop %v6055
      %v6057 = vmul.f32 %v6006, 1.442695
      %v6058 = vpow.pop %v6057
      %v6059 = vmul.f32 %v6007, 1.442695
      %v6060 = vpow.pop %v6059
      %v6061 = vmul.f32 %v6008, 1.442695
      %v6062 = vpow.pop %v6061
      %v6063 = vmul.f32 %v6009, 1.442695
      %v6064 = vpow.pop %v6063
      %v6065 = vmul.f32 %v6010, 1.442695
      %v6066 = vpow.pop %v6065
      %v6067 = vmul.f32 %v6011, 1.442695
      %v6068 = vpow.pop %v6067
      %v6069 = vmul.f32 %v6012, 1.442695
      %v6070 = vpow.pop %v6069
      %v6071 = vmul.f32 %v6013, 1.442695
      %v6072 = vpow.pop %v6071
      %v6073 = vmul.f32 %v6014, 1.442695
      %v6074 = vpow.pop %v6073
      %v6075 = vmul.f32 %v6015, 1.442695
      %v6076 = vpow.pop %v6075
      %v6077 = vmul.f32 %v6016, 1.442695
      %v6078 = vpow.pop %v6077
      %v6079 = vmul.f32 %v6017, 1.442695
      %v6080 = vpow.pop %v6079
      %v6081 = vmul.f32 %v6018, 1.442695
      %v6082 = vpow.pop %v6081
      %v6083 = vadd.f32 %v6020, 1.0
      %v6084 = vadd.f32 %v6022, 1.0
      %v6085 = vadd.f32 %v6024, 1.0
      %v6086 = vadd.f32 %v6026, 1.0
      %v6087 = vadd.f32 %v6028, 1.0
      %v6088 = vadd.f32 %v6030, 1.0
      %v6089 = vadd.f32 %v6032, 1.0
      %v6090 = vadd.f32 %v6034, 1.0
      %v6091 = vadd.f32 %v6036, 1.0
      %v6092 = vadd.f32 %v6038, 1.0
      %v6093 = vadd.f32 %v6040, 1.0
      %v6094 = vadd.f32 %v6042, 1.0
      %v6095 = vadd.f32 %v6044, 1.0
      %v6096 = vadd.f32 %v6046, 1.0
      %v6097 = vadd.f32 %v6048, 1.0
      %v6098 = vadd.f32 %v6050, 1.0
      %v6099 = vadd.f32 %v6052, 1.0
      %v6100 = vadd.f32 %v6054, 1.0
      %v6101 = vadd.f32 %v6056, 1.0
      %v6102 = vadd.f32 %v6058, 1.0
      %v6103 = vadd.f32 %v6060, 1.0
      %v6104 = vadd.f32 %v6062, 1.0
      %v6105 = vadd.f32 %v6064, 1.0
      %v6106 = vadd.f32 %v6066, 1.0
      %v6107 = vadd.f32 %v6068, 1.0
      %v6108 = vadd.f32 %v6070, 1.0
      %v6109 = vadd.f32 %v6072, 1.0
      %v6110 = vadd.f32 %v6074, 1.0
      %v6111 = vadd.f32 %v6076, 1.0
      %v6112 = vadd.f32 %v6078, 1.0
      %v6113 = vadd.f32 %v6080, 1.0
      %v6114 = vadd.f32 %v6082, 1.0
      %v6115 = vrcp.pop %v6083
      %v6116 = vrcp.pop %v6084
      %v6117 = vrcp.pop %v6085
      %v6118 = vrcp.pop %v6086
      %v6119 = vrcp.pop %v6087
      %v6120 = vrcp.pop %v6088
      %v6121 = vrcp.pop %v6089
      %v6122 = vrcp.pop %v6090
      %v6123 = vrcp.pop %v6091
      %v6124 = vrcp.pop %v6092
      %v6125 = vrcp.pop %v6093
      %v6126 = vrcp.pop %v6094
      %v6127 = vrcp.pop %v6095
      %v6128 = vrcp.pop %v6096
      %v6129 = vrcp.pop %v6097
      %v6130 = vrcp.pop %v6098
      %v6131 = vrcp.pop %v6099
      %v6132 = vrcp.pop %v6100
      %v6133 = vrcp.pop %v6101
      %v6134 = vrcp.pop %v6102
      %v6135 = vrcp.pop %v6103
      %v6136 = vrcp.pop %v6104
      %v6137 = vrcp.pop %v6105
      %v6138 = vrcp.pop %v6106
      %v6139 = vrcp.pop %v6107
      %v6140 = vrcp.pop %v6108
      %v6141 = vrcp.pop %v6109
      %v6142 = vrcp.pop %v6110
      %v6143 = vrcp.pop %v6111
      %v6144 = vrcp.pop %v6112
      %v6145 = vrcp.pop %v6113
      %v6146 = vrcp.pop %v6114
      %v6147 = vmul.f32 %v5861, %v6115
      %v6148 = vmul.f32 %v5864, %v6116
      %v6149 = vmul.f32 %v5869, %v6117
      %v6150 = vmul.f32 %v5872, %v6118
      %v6151 = vmul.f32 %v5877, %v6119
      %v6152 = vmul.f32 %v5880, %v6120
      %v6153 = vmul.f32 %v5885, %v6121
      %v6154 = vmul.f32 %v5888, %v6122
      %v6155 = vmul.f32 %v5893, %v6123
      %v6156 = vmul.f32 %v5896, %v6124
      %v6157 = vmul.f32 %v5901, %v6125
      %v6158 = vmul.f32 %v5904, %v6126
      %v6159 = vmul.f32 %v5909, %v6127
      %v6160 = vmul.f32 %v5912, %v6128
      %v6161 = vmul.f32 %v5917, %v6129
      %v6162 = vmul.f32 %v5920, %v6130
      %v6163 = vmul.f32 %v5925, %v6131
      %v6164 = vmul.f32 %v5928, %v6132
      %v6165 = vmul.f32 %v5933, %v6133
      %v6166 = vmul.f32 %v5936, %v6134
      %v6167 = vmul.f32 %v5941, %v6135
      %v6168 = vmul.f32 %v5944, %v6136
      %v6169 = vmul.f32 %v5949, %v6137
      %v6170 = vmul.f32 %v5952, %v6138
      %v6171 = vmul.f32 %v5957, %v6139
      %v6172 = vmul.f32 %v5960, %v6140
      %v6173 = vmul.f32 %v5965, %v6141
      %v6174 = vmul.f32 %v5968, %v6142
      %v6175 = vmul.f32 %v5973, %v6143
      %v6176 = vmul.f32 %v5976, %v6144
      %v6177 = vmul.f32 %v5981, %v6145
      %v6178 = vmul.f32 %v5984, %v6146
      %v6179 = vpack.c.bf16 %v6148, %v6147
      %v6180 = vpack.c.bf16 %v6150, %v6149
      %v6181 = vpack.c.bf16 %v6152, %v6151
      %v6182 = vpack.c.bf16 %v6154, %v6153
      %v6183 = vpack.c.bf16 %v6156, %v6155
      %v6184 = vpack.c.bf16 %v6158, %v6157
      %v6185 = vpack.c.bf16 %v6160, %v6159
      %v6186 = vpack.c.bf16 %v6162, %v6161
      %v6187 = vpack.c.bf16 %v6164, %v6163
      %v6188 = vpack.c.bf16 %v6166, %v6165
      %v6189 = vpack.c.bf16 %v6168, %v6167
      %v6190 = vpack.c.bf16 %v6170, %v6169
      %v6191 = vpack.c.bf16 %v6172, %v6171
      %v6192 = vpack.c.bf16 %v6174, %v6173
      %v6193 = vpack.c.bf16 %v6176, %v6175
      %v6194 = vpack.c.bf16 %v6178, %v6177
      %v6211 = vunpack.c.l.b16 %v6179
      %v6212 = vunpack.c.h.b16 %v6179
      %v6213 = vunpack.c.l.b16 %v6180
      %v6214 = vunpack.c.h.b16 %v6180
      %v6215 = vunpack.c.l.b16 %v6181
      %v6216 = vunpack.c.h.b16 %v6181
      %v6217 = vunpack.c.l.b16 %v6182
      %v6218 = vunpack.c.h.b16 %v6182
      %v6219 = vunpack.c.l.b16 %v6183
      %v6220 = vunpack.c.h.b16 %v6183
      %v6221 = vunpack.c.l.b16 %v6184
      %v6222 = vunpack.c.h.b16 %v6184
      %v6223 = vunpack.c.l.b16 %v6185
      %v6224 = vunpack.c.h.b16 %v6185
      %v6225 = vunpack.c.l.b16 %v6186
      %v6226 = vunpack.c.h.b16 %v6186
      %v6227 = vunpack.c.l.b16 %v6187
      %v6228 = vunpack.c.h.b16 %v6187
      %v6229 = vunpack.c.l.b16 %v6188
      %v6230 = vunpack.c.h.b16 %v6188
      %v6231 = vunpack.c.l.b16 %v6189
      %v6232 = vunpack.c.h.b16 %v6189
      %v6233 = vunpack.c.l.b16 %v6190
      %v6234 = vunpack.c.h.b16 %v6190
      %v6235 = vunpack.c.l.b16 %v6191
      %v6236 = vunpack.c.h.b16 %v6191
      %v6237 = vunpack.c.l.b16 %v6192
      %v6238 = vunpack.c.h.b16 %v6192
      %v6239 = vunpack.c.l.b16 %v6193
      %v6240 = vunpack.c.h.b16 %v6193
      %v6241 = vunpack.c.l.b16 %v6194
      %v6242 = vunpack.c.h.b16 %v6194
      %v6243 = vpack.c.b16 %v6211, %v6211
      %v6244 = vpack.c.b16 %v6212, %v6212
      %v6245 = vpack.c.b16 %v6213, %v6213
      %v6246 = vpack.c.b16 %v6214, %v6214
      %v6247 = vpack.c.b16 %v6215, %v6215
      %v6248 = vpack.c.b16 %v6216, %v6216
      %v6249 = vpack.c.b16 %v6217, %v6217
      %v6250 = vpack.c.b16 %v6218, %v6218
      %v6251 = vpack.c.b16 %v6219, %v6219
      %v6252 = vpack.c.b16 %v6220, %v6220
      %v6253 = vpack.c.b16 %v6221, %v6221
      %v6254 = vpack.c.b16 %v6222, %v6222
      %v6255 = vpack.c.b16 %v6223, %v6223
      %v6256 = vpack.c.b16 %v6224, %v6224
      %v6257 = vpack.c.b16 %v6225, %v6225
      %v6258 = vpack.c.b16 %v6226, %v6226
      %v6259 = vpack.c.b16 %v6227, %v6227
      %v6260 = vpack.c.b16 %v6228, %v6228
      %v6261 = vpack.c.b16 %v6229, %v6229
      %v6262 = vpack.c.b16 %v6230, %v6230
      %v6263 = vpack.c.b16 %v6231, %v6231
      %v6264 = vpack.c.b16 %v6232, %v6232
      %v6265 = vpack.c.b16 %v6233, %v6233
      %v6266 = vpack.c.b16 %v6234, %v6234
      %v6267 = vpack.c.b16 %v6235, %v6235
      %v6268 = vpack.c.b16 %v6236, %v6236
      %v6269 = vpack.c.b16 %v6237, %v6237
      %v6270 = vpack.c.b16 %v6238, %v6238
      %v6271 = vpack.c.b16 %v6239, %v6239
      %v6272 = vpack.c.b16 %v6240, %v6240
      %v6273 = vpack.c.b16 %v6241, %v6241
      %v6274 = vpack.c.b16 %v6242, %v6242
      %6307 = vst [vmem:[%s332] sm:$0xf] %v6243
      %6308 = vst [vmem:[%s332 + $0x4] sm:$0xf] %v6244
      %6309 = vst [vmem:[%s332 + $0x8] sm:$0xf] %v6245
      %6310 = vst [vmem:[%s332 + $0xc] sm:$0xf] %v6246
      %6311 = vst [vmem:[%s332 + $0x10] sm:$0xf] %v6247
      %6312 = vst [vmem:[%s332 + $0x14] sm:$0xf] %v6248
      %6313 = vst [vmem:[%s332 + $0x18] sm:$0xf] %v6249
      %6314 = vst [vmem:[%s332 + $0x1c] sm:$0xf] %v6250
      %6315 = vst [vmem:[%s332 + $0x20] sm:$0xf] %v6251
      %6316 = vst [vmem:[%s332 + $0x24] sm:$0xf] %v6252
      %6317 = vst [vmem:[%s332 + $0x28] sm:$0xf] %v6253
      %6318 = vst [vmem:[%s332 + $0x2c] sm:$0xf] %v6254
      %6319 = vst [vmem:[%s332 + $0x30] sm:$0xf] %v6255
      %6320 = vst [vmem:[%s332 + $0x34] sm:$0xf] %v6256
      %6321 = vst [vmem:[%s332 + $0x38] sm:$0xf] %v6257
      %6322 = vst [vmem:[%s332 + $0x3c] sm:$0xf] %v6258
      %6323 = vst [vmem:[%s332 + $0x40] sm:$0xf] %v6259
      %6324 = vst [vmem:[%s332 + $0x44] sm:$0xf] %v6260
      %6325 = vst [vmem:[%s332 + $0x48] sm:$0xf] %v6261
      %6326 = vst [vmem:[%s332 + $0x4c] sm:$0xf] %v6262
      %6327 = vst [vmem:[%s332 + $0x50] sm:$0xf] %v6263
      %6328 = vst [vmem:[%s332 + $0x54] sm:$0xf] %v6264
      %6329 = vst [vmem:[%s332 + $0x58] sm:$0xf] %v6265
      %6330 = vst [vmem:[%s332 + $0x5c] sm:$0xf] %v6266
      %6331 = vst [vmem:[%s332 + $0x60] sm:$0xf] %v6267
      %6332 = vst [vmem:[%s332 + $0x64] sm:$0xf] %v6268
      %6333 = vst [vmem:[%s332 + $0x68] sm:$0xf] %v6269
      %6334 = vst [vmem:[%s332 + $0x6c] sm:$0xf] %v6270
      %6335 = vst [vmem:[%s332 + $0x70] sm:$0xf] %v6271
      %6336 = vst [vmem:[%s332 + $0x74] sm:$0xf] %v6272
      %6337 = vst [vmem:[%s332 + $0x78] sm:$0xf] %v6273
      %6338 = vst [vmem:[%s332 + $0x7c] sm:$0xf] %v6274
      %p6339 = scmp.lt.s32.totalorder %s20, 1
      %s6340 = scalar_select %p6339, %s20, 1
      %s6341 = smul.addr %s6340, 32
      %s6342 = smul.addr %s6341, 4
      %s6343 = scalar_lea.vmem %s9, %s6342
      // Predicated region
      $region57: #{c3_forward.1} parent=55 // pred_check
        %p6344 = pneg %p232
      $region58: #{c3_forward.1} parent=55 // pred_check_branch
        %6346 = sbr.rel (%p6344) target = $region60
      $region59: #{c3_forward.1} parent=55 // pred_region
        _
      $region60: #{c3_forward.1} parent=55 // pred_fallthru
        _
    $region56: #{c3_forward.1} parent=5 // pred_fallthru
      _
    %p6347 = scmp.le.s32.totalorder 2, %s15
    // Predicated region
    $region61: #{c3_forward.1} parent=5 // pred_check
      %p6348 = pneg %p6347
    $region62: #{c3_forward.1} parent=5 // pred_check_branch
      %6350 = sbr.rel (%p6348) target = $region64
    $region63: #{c3_forward.1} parent=5 // pred_region
      %s6351 = ssub.s32 %s15, 2
      // Predicated region
      $region65: #{c3_forward.1} parent=63 // pred_check
        %p6352 = pneg %p238
      $region66: #{c3_forward.1} parent=63 // pred_check_branch
        %6354 = sbr.rel (%p6352) target = $region68
      $region67: #{c3_forward.1} parent=63 // pred_region
        %p6355 = scmp.lt.s32.totalorder %s21, 1
        %s6356 = scalar_select %p6355, %s21, 1
        %s6357 = smul.addr %s6356, 32
        %s6358 = smul.addr %s6357, 4
        %s6359 = scalar_lea.vmem %s9, %s6358
      $region68: #{c3_forward.1} parent=63 // pred_fallthru
        _
    $region64: #{c3_forward.1} parent=5 // pred_fallthru
      _
  $region6: #{c3_forward.1} parent=0 // loop_footer
    %s19 = sadd.s32 1, %s15
  $region7: #{c3_forward.1} parent=0 // loop_footer_branch
    %14 = sbr.rel target = $region3
  $region8: #{c3_forward.1} parent=0 // loop_exit
    _

</llo_original>
